<compile_context>
chip_gen: v5e
topology: v5e:2x2
jax: 0.10.0
libtpu: 0.0.40
codegen_flags: <defaults>
</compile_context>

<pallas_src>
from functools import partial

import jax
import jax.numpy as jnp
from jax.experimental import pallas as pl
from jax.experimental.pallas import tpu as pltpu


# ---------------------------------------------------------------------------
# Tiling helpers
# ---------------------------------------------------------------------------

def _vmem_cap_bytes():
    # ~3/4 of physical VMEM: ~96 MiB on v5e/v6e (128 MiB), ~48 MiB on v7x (64).
    try:
        phys = int(pltpu.get_tpu_info().vmem_capacity_bytes)
    except Exception:
        phys = 64 << 20  # conservative (v7x per-TensorCore VMEM)
    return max(phys * 3 // 4, 32 << 20)


def _pick_cout_tile(coutp):
    # Give big layers >=2 output-channel tiles; otherwise use the full Cout.
    for t in (256, 128):
        if coutp > t and coutp % t == 0:
            return t
    return coutp


def _pick_row_tile(H, W, cin_for_operand, tco, *, acc_budget=2 << 20,
                   operand_budget=4 << 20):
    """Largest divisor-of-H row tile whose f32 accumulator (and, for the
    concatenated-K path, the bf16 (rows, 9*Cin) operand) stays small, preferring
    >=2 row tiles so the pipeline has steps to overlap and both v7x TensorCores
    get work even at N == 1."""
    cands = [t for t in range(H, 0, -1) if H % t == 0 and (t * W) % 8 == 0]
    if not cands:
        return H

    def fits(t):
        rows = t * W
        if rows * tco * 4 > acc_budget:
            return False
        if cin_for_operand and rows * 9 * cin_for_operand * 2 > operand_budget:
            return False
        return True

    for t in cands:
        if H // t >= 2 and fits(t):
            return t
    for t in cands:
        if fits(t):
            return t
    return cands[-1]


# ---------------------------------------------------------------------------
# Kernel 1: implicit-GEMM 3x3 conv (pad=1) + fused BN partial statistics
# ---------------------------------------------------------------------------

def _conv3x3_stats_kernel(x_ref, w_ref, y_ref, stats_ref, tile_ref, *,
                          use_concat):
    """One (cout-tile, image, row-tile) grid step.

    x_ref:     (1, H, W+2, Cin)  bf16  full NHWC plane of image n (W-padded),
                                      VMEM-resident across the row/cout axes.
    w_ref:     (9, Cin, TCO)     bf16  tap-major weights.
    y_ref:     (th*W, TCO)       f32   conv output rows for this row tile.
    stats_ref: (1, 1, 2, TCO)    f32   per-row-tile [sum, sum_sq] partials.
    tile_ref:  (th+2, W+2, Cin)  bf16  VMEM scratch for the haloed input tile.
    """
    _, H, wp2, cin = x_ref.shape
    W = wp2 - 2
    rows, tco = y_ref.shape
    th = rows // W
    i = pl.program_id(2)          # row-tile index (last grid axis, both orders)
    nrt = pl.num_programs(2)
    h0 = i * th

    # Stage the (th+2, W+2, Cin) input tile: W is zero-padded by the producer;
    # the two H-halo rows come from the resident plane, zeroed at the borders.
    tile_ref[1:th + 1, :, :] = x_ref[0, pl.ds(h0, th), :, :]
    tile_ref[0:1, :, :] = x_ref[0, pl.ds(jnp.maximum(h0 - 1, 0), 1), :, :]
    tile_ref[th + 1:th + 2, :, :] = (
        x_ref[0, pl.ds(jnp.minimum(h0 + th, H - 1), 1), :, :])

    @pl.when(i == 0)
    def _():
        tile_ref[0:1, :, :] = jnp.zeros((1, wp2, cin), tile_ref.dtype)

    @pl.when(i == nrt - 1)
    def _():
        tile_ref[th + 1:th + 2, :, :] = jnp.zeros((1, wp2, cin), tile_ref.dtype)

    if use_concat:
        # One MXU dot with K = 9*Cin: fills the 256-wide contraction dim on
        # v6e/v7x (128-wide on v5e) and avoids 8 f32 accumulator round trips.
        taps = [tile_ref[kh:kh + th, kw:kw + W, :].reshape(rows, cin)
                for kh in range(3) for kw in range(3)]
        xcat = jnp.concatenate(taps, axis=1)                   # (rows, 9*cin)
        acc = jnp.dot(xcat, w_ref[...].reshape(9 * cin, tco),
                      preferred_element_type=jnp.float32)
    else:
        # Tiny-Cin fallback (e.g. Cin=4 first layer): 9 small-K dots.
        acc = jnp.zeros((rows, tco), jnp.float32)
        t = 0
        for kh in range(3):
            for kw in range(3):
                win = tile_ref[kh:kh + th, kw:kw + W, :].reshape(rows, cin)
                acc = acc + jnp.dot(win, w_ref[t],
                                    preferred_element_type=jnp.float32)
                t += 1

    # Conv bias intentionally omitted: with train-mode BatchNorm right after,
    # a per-channel bias cancels exactly in the normalization.
    y_ref[...] = acc

    # Fused BatchNorm partial statistics (reduced over (N, row-tiles) in JAX).
    stats_ref[0, 0, 0:1, :] = jnp.sum(acc, axis=0, keepdims=True)
    stats_ref[0, 0, 1:2, :] = jnp.sum(acc * acc, axis=0, keepdims=True)


def conv3x3_stats(x_wpad, w9):
    """x_wpad: (N, H, W+2, Cin) bf16 NHWC (zero-padded along W only).
       w9:     (9, Cin, Coutp)  bf16 tap-major weights.

    Returns:
      y     (N*H*W, Coutp)     f32  conv rows (ordered n, h, w)
      stats (N, nrt, 2, Coutp) f32  per-(image, row-tile) [sum, sum_sq] of y.
    """
    N, H, Wp2, Cin = x_wpad.shape
    W = Wp2 - 2
    assert w9.shape[0] == 9 and w9.shape[1] == Cin, (w9.shape, Cin)
    Coutp = w9.shape[2]

    tco = _pick_cout_tile(Coutp)
    ncot = Coutp // tco
    use_concat = (Cin % 8 == 0) and (Cin < 256)
    th = _pick_row_tile(H, W, Cin if use_concat else 0, tco)
    nrt = H // th
    assert (th * W) % 8 == 0, "row-tile rows must be sublane aligned"

    # Weight-residency heuristic: image-outer order re-fetches weights ~(N-1)x,
    # cout-outer order re-fetches the activation plane ~(ncot-1)*N times.
    cout_outer = (N - 1) * w9.size * 2 >= (ncot - 1) * N * H * Wp2 * Cin * 2
    if cout_outer:
        grid = (ncot, N, nrt)
        x_map = lambda j, n, i: (n, 0, 0, 0)
        w_map = lambda j, n, i: (0, 0, j)
        y_map = lambda j, n, i: (n * nrt + i, j)
        s_map = lambda j, n, i: (n, i, 0, j)
    else:
        grid = (N, ncot, nrt)
        x_map = lambda n, j, i: (n, 0, 0, 0)
        w_map = lambda n, j, i: (0, 0, j)
        y_map = lambda n, j, i: (n * nrt + i, j)
        s_map = lambda n, j, i: (n, i, 0, j)

    # Per-generation scoped-VMEM budget.
    plane = H * Wp2 * Cin * 2
    need = (2 * (plane + 9 * Cin * tco * 2 + th * W * tco * 4 + 2 * tco * 4)
            + (th + 2) * Wp2 * Cin * 2
            + (th * W * 9 * Cin * 2 if use_concat else 0)
            + (4 << 20))
    vmem_limit = int(min(max(need, 32 << 20), _vmem_cap_bytes()))
    # TODO(synk): for planes too large to keep VMEM-resident, switch x to a
    # manual halo DMA (memory_space=pl.ANY + make_async_copy) per row tile.

    cost = pl.CostEstimate(
        flops=2 * N * H * W * 9 * Cin * Coutp,
        transcendentals=0,
        bytes_accessed=int(x_wpad.size * 2 + w9.size * 2
                           + N * H * W * Coutp * 4 + N * nrt * 2 * Coutp * 4),
    )

    y, stats = pl.pallas_call(
        partial(_conv3x3_stats_kernel, use_concat=use_concat),
        out_shape=(jax.ShapeDtypeStruct((N * H * W, Coutp), jnp.float32),
                   jax.ShapeDtypeStruct((N, nrt, 2, Coutp), jnp.float32)),
        grid_spec=pltpu.PrefetchScalarGridSpec(
            num_scalar_prefetch=0,
            grid=grid,
            in_specs=[
                pl.BlockSpec((1, H, Wp2, Cin), x_map),   # resident per image
                pl.BlockSpec((9, Cin, tco), w_map),
            ],
            out_specs=[
                pl.BlockSpec((th * W, tco), y_map),
                pl.BlockSpec((1, 1, 2, tco), s_map),
            ],
            scratch_shapes=[pltpu.VMEM((th + 2, Wp2, Cin), jnp.bfloat16)],
        ),
        compiler_params=pltpu.CompilerParams(
            dimension_semantics=("parallel", "parallel", "parallel"),
            vmem_limit_bytes=vmem_limit),
        cost_estimate=cost,
    )(x_wpad, w9)
    return y, stats


# ---------------------------------------------------------------------------
# Kernel 2: fused BN normalize + affine + ReLU -> next conv's (W-padded) input
# ---------------------------------------------------------------------------

def _bn_relu_kernel(y_ref, scale_ref, shift_ref, o_ref):
    _, tb, wp2, c = o_ref.shape
    w = wp2 - 2
    v = jnp.maximum(y_ref[...] * scale_ref[...] + shift_ref[...], 0.0)
    v = v.reshape(tb, w, c).astype(o_ref.dtype)
    zcol = jnp.zeros((tb, 1, c), o_ref.dtype)
    o_ref[0, :, 0:1, :] = zcol
    o_ref[0, :, wp2 - 1:wp2, :] = zcol
    o_ref[0, :, 1:w + 1, :] = v


def bn_relu_to_wpadded_nhwc(y, scale, shift, *, N, H, W, out_dtype):
    """y: (N*H*W, C) f32, scale/shift: (1, C) f32.  Emits the next conv's input
    directly: NHWC, zero-padded along W, in `out_dtype` (bf16 between layers),
    removing the separate pad/cast HBM pass."""
    M, C = y.shape
    assert M == N * H * W
    tb = _pick_row_tile(H, W, 0, C, acc_budget=4 << 20)
    nrb = H // tb
    return pl.pallas_call(
        _bn_relu_kernel,
        out_shape=jax.ShapeDtypeStruct((N, H, W + 2, C), out_dtype),
        grid_spec=pltpu.PrefetchScalarGridSpec(
            num_scalar_prefetch=0,
            grid=(N, nrb),
            in_specs=[
                pl.BlockSpec((tb * W, C), lambda n, i: (n * nrb + i, 0)),
                pl.BlockSpec((1, C), lambda n, i: (0, 0)),   # VMEM-resident
                pl.BlockSpec((1, C), lambda n, i: (0, 0)),
            ],
            out_specs=pl.BlockSpec((1, tb, W + 2, C), lambda n, i: (n, i, 0, 0)),
        ),
        compiler_params=pltpu.CompilerParams(
            dimension_semantics=("parallel", "parallel")),
    )(y, scale, shift)


# ---------------------------------------------------------------------------
# Layer building blocks (NHWC internally, lane-dense padded channels)
# ---------------------------------------------------------------------------

def conv_bn_relu_layer(x_wpad, w9, gamma, beta, *, out_dtype, eps=1e-5):
    """Conv2d(3x3, pad=1) -> BatchNorm2d (training batch stats) -> ReLU."""
    N, H, Wp2, _ = x_wpad.shape
    W = Wp2 - 2
    Cp = w9.shape[2]
    y, stats = conv3x3_stats(x_wpad, w9)
    cnt = float(N * H * W)
    s = stats.sum(axis=(0, 1))                 # tiny (2, Cp) reduction in JAX
    mean = s[0] / cnt
    # NOTE: E[x^2]-E[x]^2 in f32 (biased, train-mode BN); switch to a shifted
    # two-pass form if |mean| >> std ever matters for very large planes.
    var = jnp.maximum(s[1] / cnt - mean * mean, 0.0)
    inv = gamma * jax.lax.rsqrt(var + eps)
    scale = inv.reshape(1, Cp)
    shift = (beta - mean * inv).reshape(1, Cp)
    return bn_relu_to_wpadded_nhwc(y, scale, shift, N=N, H=H, W=W,
                                   out_dtype=out_dtype)


def _pool_pad_cast(x_nhwc):
    # nn.MaxPool2d(2) + W-pad + bf16 cast, fused by XLA into one cheap pass.
    # TODO(synk): fuse this into a Pallas prep kernel to save the extra HBM
    # round trip of the pre-pool activation.
    N, H, W, C = x_nhwc.shape
    p = x_nhwc.reshape(N, H // 2, 2, W // 2, 2, C).max(axis=(2, 4))
    p = jnp.pad(p, ((0, 0), (0, 0), (1, 1), (0, 0)))
    return p.astype(jnp.bfloat16)


# ---------------------------------------------------------------------------
# `down` forward: MaxPool2d(2) -> double_conv(in_ch, out_ch)
# ---------------------------------------------------------------------------

@partial(jax.jit, static_argnames=("out_ch",))
def down_forward(x_nchw, prep, *, out_ch):
    x = jnp.transpose(x_nchw, (0, 2, 3, 1))            # NCHW -> NHWC (once)
    x = _pool_pad_cast(x)
    x = conv_bn_relu_layer(x, prep["w1"], prep["g1"], prep["be1"],
                           out_dtype=jnp.bfloat16)     # bf16 -> next conv input
    x = conv_bn_relu_layer(x, prep["w2"], prep["g2"], prep["be2"],
                           out_dtype=jnp.float32)
    W = x.shape[2] - 2
    x = x[:, :, 1:W + 1, :out_ch]                      # drop W pad + channel pad
    return jnp.transpose(x, (0, 3, 1, 2))              # NHWC -> NCHW (once)


def prepare_params(params, in_ch, out_ch):
    """One-time (outside jit) weight prep: transpose to (3,3,Cin,Cout), pad the
    output (and conv2's input) channels to a lane-dense width >=128, cast to
    bf16 and reshape tap-major to (9, Cin, Coutp).  Conv biases are dropped:
    with train-mode BatchNorm right after each conv they cancel exactly."""
    cpad = 128 if out_ch < 128 else out_ch

    def prep_w(w, cin_pad, cout_pad):
        w = jnp.transpose(w, (2, 3, 1, 0))             # (3, 3, Cin, Cout)
        _, _, ci, co = w.shape
        w = jnp.pad(w, ((0, 0), (0, 0), (0, cin_pad - ci), (0, cout_pad - co)))
        return w.reshape(9, cin_pad, cout_pad).astype(jnp.bfloat16)

    def prep_bn(g, b, cout_pad):
        pad = cout_pad - g.shape[0]
        return (jnp.pad(g, (0, pad)).astype(jnp.float32),
                jnp.pad(b, (0, pad)).astype(jnp.float32))

    w1 = prep_w(params["w1"], in_ch, cpad)
    w2 = prep_w(params["w2"], cpad, cpad)
    g1, be1 = prep_bn(params["g1"], params["be1"], cpad)
    g2, be2 = prep_bn(params["g2"], params["be2"], cpad)
    return dict(w1=w1, g1=g1, be1=be1, w2=w2, g2=g2, be2=be2)


# ---------------------------------------------------------------------------
# Deterministic synthetic parameters
# ---------------------------------------------------------------------------

def init_conv(key, out_ch, in_ch, ksize):
    kw, kb = jax.random.split(key)
    fan_in = in_ch * ksize * ksize
    w = jax.random.normal(kw, (out_ch, in_ch, ksize, ksize),
                          jnp.float32) / jnp.sqrt(fan_in)
    b = 0.01 * jax.random.normal(kb, (out_ch,), jnp.float32)
    return w, b


def init_bn(key, ch):
    kg, kb = jax.random.split(key)
    gamma = 1.0 + 0.1 * jax.random.normal(kg, (ch,), jnp.float32)
    beta = 0.1 * jax.random.normal(kb, (ch,), jnp.float32)
    return gamma, beta


def init_down_params(key, in_ch, out_ch):
    k1, k2, k3, k4 = jax.random.split(key, 4)
    w1, b1 = init_conv(k1, out_ch, in_ch, 3)
    g1, be1 = init_bn(k2, out_ch)
    w2, b2 = init_conv(k3, out_ch, out_ch, 3)
    g2, be2 = init_bn(k4, out_ch)
    # b1/b2 kept for interface faithfulness; they cancel under train-mode BN.
    return dict(w1=w1, b1=b1, g1=g1, be1=be1, w2=w2, b2=b2, g2=g2, be2=be2)


if __name__ == "__main__":
    key = jax.random.PRNGKey(0)
    k_x, k_p = jax.random.split(key)

    in_ch, out_ch = 4, 8
    x = jax.random.normal(k_x, (2, in_ch, 16, 16), jnp.float32)  # NCHW input
    params = init_down_params(k_p, in_ch, out_ch)
    prep = prepare_params(params, in_ch, out_ch)                 # once, outside jit

    out = down_forward(x, prep, out_ch=out_ch)
    out = jax.block_until_ready(out)

    assert out.shape == (2, out_ch, 8, 8), out.shape
    assert out.dtype == jnp.float32
    assert bool(jnp.all(jnp.isfinite(out)))
    print("KERNEL_OK")
</pallas_src>

<mosaic_0001>
module attributes {stable_mosaic.version = 11 : i64} {
  func.func @_conv3x3_stats_kernel(%arg0: i32, %arg1: i32, %arg2: i32, %arg3: memref<1x8x10x4xbf16, #tpu.memory_space<vmem>>, %arg4: memref<9x4x128xbf16, #tpu.memory_space<vmem>>, %arg5: memref<32x128xf32, #tpu.memory_space<vmem>>, %arg6: memref<1x1x2x128xf32, #tpu.memory_space<vmem>>, %arg7: memref<6x10x4xbf16, #tpu.memory_space<vmem>>) attributes {dimension_semantics = [#tpu.dimension_semantics<parallel>, #tpu.dimension_semantics<parallel>, #tpu.dimension_semantics<parallel>], iteration_bounds = array<i64: 1, 2, 2>, scalar_prefetch = 0 : i64, scratch_operands = 1 : i64, tpu.core_type = #tpu.core_type<tc>, window_params = [{transform_indices = @transform_0, window_bounds = array<i64: 1, 8, 10, 4>}, {transform_indices = @transform_1, window_bounds = array<i64: 9, 4, 128>}, {transform_indices = @transform_2, window_bounds = array<i64: 32, 128>}, {transform_indices = @transform_3, window_bounds = array<i64: 1, 1, 2, 128>}]} {
    %c4_i32 = arith.constant 4 : i32
    %0 = arith.muli %arg2, %c4_i32 : i32
    %c0 = arith.constant 0 : index
    %1 = arith.index_cast %0 : i32 to index
    %c0_0 = arith.constant 0 : index
    %c0_1 = arith.constant 0 : index
    %2 = vector.load %arg3[%c0, %1, %c0_0, %c0_1] : memref<1x8x10x4xbf16, #tpu.memory_space<vmem>>, vector<1x4x10x4xbf16>
    %3 = vector.shape_cast %2 : vector<1x4x10x4xbf16> to vector<4x10x4xbf16>
    %c1 = arith.constant 1 : index
    %c0_2 = arith.constant 0 : index
    %c0_3 = arith.constant 0 : index
    %4 = vector.load %arg7[%c1, %c0_2, %c0_3] : memref<6x10x4xbf16, #tpu.memory_space<vmem>>, vector<4x10x4xbf16>
    tpu.vector_store %arg7[%c1, %c0_2, %c0_3], %3 {strides = array<i32>} : memref<6x10x4xbf16, #tpu.memory_space<vmem>>, vector<4x10x4xbf16>,
    %c1_i32 = arith.constant 1 : i32
    %5 = arith.subi %0, %c1_i32 : i32
    %c0_i32 = arith.constant 0 : i32
    %6 = arith.maxsi %5, %c0_i32 : i32
    %c0_4 = arith.constant 0 : index
    %7 = arith.index_cast %6 : i32 to index
    %c0_5 = arith.constant 0 : index
    %c0_6 = arith.constant 0 : index
    %8 = vector.load %arg3[%c0_4, %7, %c0_5, %c0_6] : memref<1x8x10x4xbf16, #tpu.memory_space<vmem>>, vector<1x1x10x4xbf16>
    %9 = vector.shape_cast %8 : vector<1x1x10x4xbf16> to vector<1x10x4xbf16>
    %c0_7 = arith.constant 0 : index
    %c0_8 = arith.constant 0 : index
    %c0_9 = arith.constant 0 : index
    %10 = vector.load %arg7[%c0_7, %c0_8, %c0_9] : memref<6x10x4xbf16, #tpu.memory_space<vmem>>, vector<1x10x4xbf16>
    tpu.vector_store %arg7[%c0_7, %c0_8, %c0_9], %9 {strides = array<i32>} : memref<6x10x4xbf16, #tpu.memory_space<vmem>>, vector<1x10x4xbf16>,
    %c4_i32_10 = arith.constant 4 : i32
    %11 = arith.addi %0, %c4_i32_10 : i32
    %c7_i32 = arith.constant 7 : i32
    %12 = arith.minsi %11, %c7_i32 : i32
    %c0_11 = arith.constant 0 : index
    %13 = arith.index_cast %12 : i32 to index
    %c0_12 = arith.constant 0 : index
    %c0_13 = arith.constant 0 : index
    %14 = vector.load %arg3[%c0_11, %13, %c0_12, %c0_13] : memref<1x8x10x4xbf16, #tpu.memory_space<vmem>>, vector<1x1x10x4xbf16>
    %15 = vector.shape_cast %14 : vector<1x1x10x4xbf16> to vector<1x10x4xbf16>
    %c5 = arith.constant 5 : index
    %c0_14 = arith.constant 0 : index
    %c0_15 = arith.constant 0 : index
    %16 = vector.load %arg7[%c5, %c0_14, %c0_15] : memref<6x10x4xbf16, #tpu.memory_space<vmem>>, vector<1x10x4xbf16>
    tpu.vector_store %arg7[%c5, %c0_14, %c0_15], %15 {strides = array<i32>} : memref<6x10x4xbf16, #tpu.memory_space<vmem>>, vector<1x10x4xbf16>,
    %c0_i32_16 = arith.constant 0 : i32
    %17 = arith.cmpi eq, %arg2, %c0_i32_16 : i32
    %18 = arith.extui %17 : i1 to i32
    %c0_i32_17 = arith.constant 0 : i32
    %19 = arith.cmpi ne, %18, %c0_i32_17 : i32
    scf.if %19 {
      %cst_89 = arith.constant 0.000000e+00 : bf16
      %90 = vector.broadcast %cst_89 : bf16 to vector<1x10x4xbf16>
      %c0_90 = arith.constant 0 : index
      %c0_91 = arith.constant 0 : index
      %c0_92 = arith.constant 0 : index
      %91 = vector.load %arg7[%c0_90, %c0_91, %c0_92] : memref<6x10x4xbf16, #tpu.memory_space<vmem>>, vector<1x10x4xbf16>
      tpu.vector_store %arg7[%c0_90, %c0_91, %c0_92], %90 {strides = array<i32>} : memref<6x10x4xbf16, #tpu.memory_space<vmem>>, vector<1x10x4xbf16>,
    } else {
    }
    %c1_i32_18 = arith.constant 1 : i32
    %20 = arith.cmpi eq, %arg2, %c1_i32_18 : i32
    %21 = arith.extui %20 : i1 to i32
    %c0_i32_19 = arith.constant 0 : i32
    %22 = arith.cmpi ne, %21, %c0_i32_19 : i32
    scf.if %22 {
      %cst_89 = arith.constant 0.000000e+00 : bf16
      %90 = vector.broadcast %cst_89 : bf16 to vector<1x10x4xbf16>
      %c5_90 = arith.constant 5 : index
      %c0_91 = arith.constant 0 : index
      %c0_92 = arith.constant 0 : index
      %91 = vector.load %arg7[%c5_90, %c0_91, %c0_92] : memref<6x10x4xbf16, #tpu.memory_space<vmem>>, vector<1x10x4xbf16>
      tpu.vector_store %arg7[%c5_90, %c0_91, %c0_92], %90 {strides = array<i32>} : memref<6x10x4xbf16, #tpu.memory_space<vmem>>, vector<1x10x4xbf16>,
    } else {
    }
    %cst = arith.constant 0.000000e+00 : f32
    %23 = vector.broadcast %cst : f32 to vector<32x128xf32>
    %c0_20 = arith.constant 0 : index
    %c0_21 = arith.constant 0 : index
    %c0_22 = arith.constant 0 : index
    %24 = vector.load %arg7[%c0_20, %c0_21, %c0_22] : memref<6x10x4xbf16, #tpu.memory_space<vmem>>, vector<4x8x4xbf16>
    %25 = vector.shape_cast %24 : vector<4x8x4xbf16> to vector<32x4xbf16>
    %c0_23 = arith.constant 0 : index
    %c0_24 = arith.constant 0 : index
    %c0_25 = arith.constant 0 : index
    %26 = vector.load %arg4[%c0_23, %c0_24, %c0_25] : memref<9x4x128xbf16, #tpu.memory_space<vmem>>, vector<1x4x128xbf16>
    %27 = vector.shape_cast %26 : vector<1x4x128xbf16> to vector<4x128xbf16>
    %cst_26 = arith.constant dense<0.000000e+00> : vector<32x128xf32>
    %28 = tpu.matmul %25, %27, %cst_26 {dimension_numbers = #tpu.dot_dimension_numbers<[1], [0], [0], [1], [0, 0, 1, 1], [], []>} : vector<32x4xbf16>, vector<4x128xbf16>, vector<32x128xf32> -> vector<32x128xf32>
    %29 = arith.addf %23, %28 : vector<32x128xf32>
    %c0_27 = arith.constant 0 : index
    %c1_28 = arith.constant 1 : index
    %c0_29 = arith.constant 0 : index
    %30 = vector.load %arg7[%c0_27, %c1_28, %c0_29] : memref<6x10x4xbf16, #tpu.memory_space<vmem>>, vector<4x8x4xbf16>
    %31 = vector.shape_cast %30 : vector<4x8x4xbf16> to vector<32x4xbf16>
    %c1_30 = arith.constant 1 : index
    %c0_31 = arith.constant 0 : index
    %c0_32 = arith.constant 0 : index
    %32 = vector.load %arg4[%c1_30, %c0_31, %c0_32] : memref<9x4x128xbf16, #tpu.memory_space<vmem>>, vector<1x4x128xbf16>
    %33 = vector.shape_cast %32 : vector<1x4x128xbf16> to vector<4x128xbf16>
    %cst_33 = arith.constant dense<0.000000e+00> : vector<32x128xf32>
    %34 = tpu.matmul %31, %33, %cst_33 {dimension_numbers = #tpu.dot_dimension_numbers<[1], [0], [0], [1], [0, 0, 1, 1], [], []>} : vector<32x4xbf16>, vector<4x128xbf16>, vector<32x128xf32> -> vector<32x128xf32>
    %35 = arith.addf %29, %34 : vector<32x128xf32>
    %c0_34 = arith.constant 0 : index
    %c2 = arith.constant 2 : index
    %c0_35 = arith.constant 0 : index
    %36 = vector.load %arg7[%c0_34, %c2, %c0_35] : memref<6x10x4xbf16, #tpu.memory_space<vmem>>, vector<4x8x4xbf16>
    %37 = vector.shape_cast %36 : vector<4x8x4xbf16> to vector<32x4xbf16>
    %c2_36 = arith.constant 2 : index
    %c0_37 = arith.constant 0 : index
    %c0_38 = arith.constant 0 : index
    %38 = vector.load %arg4[%c2_36, %c0_37, %c0_38] : memref<9x4x128xbf16, #tpu.memory_space<vmem>>, vector<1x4x128xbf16>
    %39 = vector.shape_cast %38 : vector<1x4x128xbf16> to vector<4x128xbf16>
    %cst_39 = arith.constant dense<0.000000e+00> : vector<32x128xf32>
    %40 = tpu.matmul %37, %39, %cst_39 {dimension_numbers = #tpu.dot_dimension_numbers<[1], [0], [0], [1], [0, 0, 1, 1], [], []>} : vector<32x4xbf16>, vector<4x128xbf16>, vector<32x128xf32> -> vector<32x128xf32>
    %41 = arith.addf %35, %40 : vector<32x128xf32>
    %c1_40 = arith.constant 1 : index
    %c0_41 = arith.constant 0 : index
    %c0_42 = arith.constant 0 : index
    %42 = vector.load %arg7[%c1_40, %c0_41, %c0_42] : memref<6x10x4xbf16, #tpu.memory_space<vmem>>, vector<4x8x4xbf16>
    %43 = vector.shape_cast %42 : vector<4x8x4xbf16> to vector<32x4xbf16>
    %c3 = arith.constant 3 : index
    %c0_43 = arith.constant 0 : index
    %c0_44 = arith.constant 0 : index
    %44 = vector.load %arg4[%c3, %c0_43, %c0_44] : memref<9x4x128xbf16, #tpu.memory_space<vmem>>, vector<1x4x128xbf16>
    %45 = vector.shape_cast %44 : vector<1x4x128xbf16> to vector<4x128xbf16>
    %cst_45 = arith.constant dense<0.000000e+00> : vector<32x128xf32>
    %46 = tpu.matmul %43, %45, %cst_45 {dimension_numbers = #tpu.dot_dimension_numbers<[1], [0], [0], [1], [0, 0, 1, 1], [], []>} : vector<32x4xbf16>, vector<4x128xbf16>, vector<32x128xf32> -> vector<32x128xf32>
    %47 = arith.addf %41, %46 : vector<32x128xf32>
    %c1_46 = arith.constant 1 : index
    %c1_47 = arith.constant 1 : index
    %c0_48 = arith.constant 0 : index
    %48 = vector.load %arg7[%c1_46, %c1_47, %c0_48] : memref<6x10x4xbf16, #tpu.memory_space<vmem>>, vector<4x8x4xbf16>
    %49 = vector.shape_cast %48 : vector<4x8x4xbf16> to vector<32x4xbf16>
    %c4 = arith.constant 4 : index
    %c0_49 = arith.constant 0 : index
    %c0_50 = arith.constant 0 : index
    %50 = vector.load %arg4[%c4, %c0_49, %c0_50] : memref<9x4x128xbf16, #tpu.memory_space<vmem>>, vector<1x4x128xbf16>
    %51 = vector.shape_cast %50 : vector<1x4x128xbf16> to vector<4x128xbf16>
    %cst_51 = arith.constant dense<0.000000e+00> : vector<32x128xf32>
    %52 = tpu.matmul %49, %51, %cst_51 {dimension_numbers = #tpu.dot_dimension_numbers<[1], [0], [0], [1], [0, 0, 1, 1], [], []>} : vector<32x4xbf16>, vector<4x128xbf16>, vector<32x128xf32> -> vector<32x128xf32>
    %53 = arith.addf %47, %52 : vector<32x128xf32>
    %c1_52 = arith.constant 1 : index
    %c2_53 = arith.constant 2 : index
    %c0_54 = arith.constant 0 : index
    %54 = vector.load %arg7[%c1_52, %c2_53, %c0_54] : memref<6x10x4xbf16, #tpu.memory_space<vmem>>, vector<4x8x4xbf16>
    %55 = vector.shape_cast %54 : vector<4x8x4xbf16> to vector<32x4xbf16>
    %c5_55 = arith.constant 5 : index
    %c0_56 = arith.constant 0 : index
    %c0_57 = arith.constant 0 : index
    %56 = vector.load %arg4[%c5_55, %c0_56, %c0_57] : memref<9x4x128xbf16, #tpu.memory_space<vmem>>, vector<1x4x128xbf16>
    %57 = vector.shape_cast %56 : vector<1x4x128xbf16> to vector<4x128xbf16>
    %cst_58 = arith.constant dense<0.000000e+00> : vector<32x128xf32>
    %58 = tpu.matmul %55, %57, %cst_58 {dimension_numbers = #tpu.dot_dimension_numbers<[1], [0], [0], [1], [0, 0, 1, 1], [], []>} : vector<32x4xbf16>, vector<4x128xbf16>, vector<32x128xf32> -> vector<32x128xf32>
    %59 = arith.addf %53, %58 : vector<32x128xf32>
    %c2_59 = arith.constant 2 : index
    %c0_60 = arith.constant 0 : index
    %c0_61 = arith.constant 0 : index
    %60 = vector.load %arg7[%c2_59, %c0_60, %c0_61] : memref<6x10x4xbf16, #tpu.memory_space<vmem>>, vector<4x8x4xbf16>
    %61 = vector.shape_cast %60 : vector<4x8x4xbf16> to vector<32x4xbf16>
    %c6 = arith.constant 6 : index
    %c0_62 = arith.constant 0 : index
    %c0_63 = arith.constant 0 : index
    %62 = vector.load %arg4[%c6, %c0_62, %c0_63] : memref<9x4x128xbf16, #tpu.memory_space<vmem>>, vector<1x4x128xbf16>
    %63 = vector.shape_cast %62 : vector<1x4x128xbf16> to vector<4x128xbf16>
    %cst_64 = arith.constant dense<0.000000e+00> : vector<32x128xf32>
    %64 = tpu.matmul %61, %63, %cst_64 {dimension_numbers = #tpu.dot_dimension_numbers<[1], [0], [0], [1], [0, 0, 1, 1], [], []>} : vector<32x4xbf16>, vector<4x128xbf16>, vector<32x128xf32> -> vector<32x128xf32>
    %65 = arith.addf %59, %64 : vector<32x128xf32>
    %c2_65 = arith.constant 2 : index
    %c1_66 = arith.constant 1 : index
    %c0_67 = arith.constant 0 : index
    %66 = vector.load %arg7[%c2_65, %c1_66, %c0_67] : memref<6x10x4xbf16, #tpu.memory_space<vmem>>, vector<4x8x4xbf16>
    %67 = vector.shape_cast %66 : vector<4x8x4xbf16> to vector<32x4xbf16>
    %c7 = arith.constant 7 : index
    %c0_68 = arith.constant 0 : index
    %c0_69 = arith.constant 0 : index
    %68 = vector.load %arg4[%c7, %c0_68, %c0_69] : memref<9x4x128xbf16, #tpu.memory_space<vmem>>, vector<1x4x128xbf16>
    %69 = vector.shape_cast %68 : vector<1x4x128xbf16> to vector<4x128xbf16>
    %cst_70 = arith.constant dense<0.000000e+00> : vector<32x128xf32>
    %70 = tpu.matmul %67, %69, %cst_70 {dimension_numbers = #tpu.dot_dimension_numbers<[1], [0], [0], [1], [0, 0, 1, 1], [], []>} : vector<32x4xbf16>, vector<4x128xbf16>, vector<32x128xf32> -> vector<32x128xf32>
    %71 = arith.addf %65, %70 : vector<32x128xf32>
    %c2_71 = arith.constant 2 : index
    %c2_72 = arith.constant 2 : index
    %c0_73 = arith.constant 0 : index
    %72 = vector.load %arg7[%c2_71, %c2_72, %c0_73] : memref<6x10x4xbf16, #tpu.memory_space<vmem>>, vector<4x8x4xbf16>
    %73 = vector.shape_cast %72 : vector<4x8x4xbf16> to vector<32x4xbf16>
    %c8 = arith.constant 8 : index
    %c0_74 = arith.constant 0 : index
    %c0_75 = arith.constant 0 : index
    %74 = vector.load %arg4[%c8, %c0_74, %c0_75] : memref<9x4x128xbf16, #tpu.memory_space<vmem>>, vector<1x4x128xbf16>
    %75 = vector.shape_cast %74 : vector<1x4x128xbf16> to vector<4x128xbf16>
    %cst_76 = arith.constant dense<0.000000e+00> : vector<32x128xf32>
    %76 = tpu.matmul %73, %75, %cst_76 {dimension_numbers = #tpu.dot_dimension_numbers<[1], [0], [0], [1], [0, 0, 1, 1], [], []>} : vector<32x4xbf16>, vector<4x128xbf16>, vector<32x128xf32> -> vector<32x128xf32>
    %77 = arith.addf %71, %76 : vector<32x128xf32>
    %c0_77 = arith.constant 0 : index
    %c0_78 = arith.constant 0 : index
    %78 = vector.load %arg5[%c0_77, %c0_78] : memref<32x128xf32, #tpu.memory_space<vmem>>, vector<32x128xf32>
    tpu.vector_store %arg5[%c0_77, %c0_78], %77 {strides = array<i32>} : memref<32x128xf32, #tpu.memory_space<vmem>>, vector<32x128xf32>,
    %cst_79 = arith.constant dense<0.000000e+00> : vector<128xf32>
    %79 = vector.multi_reduction <add>, %77, %cst_79 [0] : vector<32x128xf32> to vector<128xf32>
    %80 = vector.shape_cast %79 : vector<128xf32> to vector<1x128xf32>
    %c0_80 = arith.constant 0 : index
    %c0_81 = arith.constant 0 : index
    %c0_82 = arith.constant 0 : index
    %c0_83 = arith.constant 0 : index
    %81 = vector.load %arg6[%c0_80, %c0_81, %c0_82, %c0_83] : memref<1x1x2x128xf32, #tpu.memory_space<vmem>>, vector<1x1x1x128xf32>
    %82 = vector.shape_cast %81 : vector<1x1x1x128xf32> to vector<1x128xf32>
    %83 = vector.shape_cast %80 : vector<1x128xf32> to vector<1x1x1x128xf32>
    tpu.vector_store %arg6[%c0_80, %c0_81, %c0_82, %c0_83], %83 {strides = array<i32>} : memref<1x1x2x128xf32, #tpu.memory_space<vmem>>, vector<1x1x1x128xf32>,
    %84 = arith.mulf %77, %77 : vector<32x128xf32>
    %cst_84 = arith.constant dense<0.000000e+00> : vector<128xf32>
    %85 = vector.multi_reduction <add>, %84, %cst_84 [0] : vector<32x128xf32> to vector<128xf32>
    %86 = vector.shape_cast %85 : vector<128xf32> to vector<1x128xf32>
    %c0_85 = arith.constant 0 : index
    %c0_86 = arith.constant 0 : index
    %c1_87 = arith.constant 1 : index
    %c0_88 = arith.constant 0 : index
    %87 = vector.load %arg6[%c0_85, %c0_86, %c1_87, %c0_88] : memref<1x1x2x128xf32, #tpu.memory_space<vmem>>, vector<1x1x1x128xf32>
    %88 = vector.shape_cast %87 : vector<1x1x1x128xf32> to vector<1x128xf32>
    %89 = vector.shape_cast %86 : vector<1x128xf32> to vector<1x1x1x128xf32>
    tpu.vector_store %arg6[%c0_85, %c0_86, %c1_87, %c0_88], %89 {strides = array<i32>} : memref<1x1x2x128xf32, #tpu.memory_space<vmem>>, vector<1x1x1x128xf32>,
    return
  }
  func.func @transform_0(%arg0: i32, %arg1: i32, %arg2: i32) -> (i32, i32, i32, i32) {
    %c0_i32 = arith.constant 0 : i32
    %c0_i32_0 = arith.constant 0 : i32
    %c0_i32_1 = arith.constant 0 : i32
    %c0_i32_2 = arith.constant 0 : i32
    return %arg1, %c0_i32, %c0_i32_0, %c0_i32_1 : i32, i32, i32, i32
  }
  func.func @transform_1(%arg0: i32, %arg1: i32, %arg2: i32) -> (i32, i32, i32) {
    %c0_i32 = arith.constant 0 : i32
    %c0_i32_0 = arith.constant 0 : i32
    %c0_i32_1 = arith.constant 0 : i32
    return %c0_i32, %c0_i32_0, %arg0 : i32, i32, i32
  }
  func.func @transform_2(%arg0: i32, %arg1: i32, %arg2: i32) -> (i32, i32) {
    %c2_i32 = arith.constant 2 : i32
    %0 = arith.muli %arg1, %c2_i32 : i32
    %1 = arith.addi %0, %arg2 : i32
    %c0_i32 = arith.constant 0 : i32
    return %1, %arg0 : i32, i32
  }
  func.func @transform_3(%arg0: i32, %arg1: i32, %arg2: i32) -> (i32, i32, i32, i32) {
    %c0_i32 = arith.constant 0 : i32
    %c0_i32_0 = arith.constant 0 : i32
    return %arg1, %arg2, %c0_i32, %arg0 : i32, i32, i32, i32
  }
}

module attributes {stable_mosaic.version = 11 : i64} {
  func.func @_bn_relu_kernel(%arg0: i32, %arg1: i32, %arg2: memref<32x128xf32, #tpu.memory_space<vmem>>, %arg3: memref<1x128xf32, #tpu.memory_space<vmem>>, %arg4: memref<1x128xf32, #tpu.memory_space<vmem>>, %arg5: memref<1x4x10x128xbf16, #tpu.memory_space<vmem>>) attributes {dimension_semantics = [#tpu.dimension_semantics<parallel>, #tpu.dimension_semantics<parallel>], iteration_bounds = array<i64: 2, 2>, scalar_prefetch = 0 : i64, scratch_operands = 0 : i64, tpu.core_type = #tpu.core_type<tc>, window_params = [{transform_indices = @transform_0, window_bounds = array<i64: 32, 128>}, {pipeline_mode = #tpu.pipeline_mode<synchronous>, transform_indices = @transform_1, window_bounds = array<i64: 1, 128>}, {pipeline_mode = #tpu.pipeline_mode<synchronous>, transform_indices = @transform_2, window_bounds = array<i64: 1, 128>}, {transform_indices = @transform_3, window_bounds = array<i64: 1, 4, 10, 128>}]} {
    %c0 = arith.constant 0 : index
    %c0_0 = arith.constant 0 : index
    %0 = vector.load %arg2[%c0, %c0_0] : memref<32x128xf32, #tpu.memory_space<vmem>>, vector<32x128xf32>
    %c0_1 = arith.constant 0 : index
    %c0_2 = arith.constant 0 : index
    %1 = vector.load %arg3[%c0_1, %c0_2] : memref<1x128xf32, #tpu.memory_space<vmem>>, vector<1x128xf32>
    %2 = vector.broadcast %1 : vector<1x128xf32> to vector<32x128xf32>
    %3 = arith.mulf %0, %2 : vector<32x128xf32>
    %c0_3 = arith.constant 0 : index
    %c0_4 = arith.constant 0 : index
    %4 = vector.load %arg4[%c0_3, %c0_4] : memref<1x128xf32, #tpu.memory_space<vmem>>, vector<1x128xf32>
    %5 = vector.broadcast %4 : vector<1x128xf32> to vector<32x128xf32>
    %6 = arith.addf %3, %5 : vector<32x128xf32>
    %cst = arith.constant 0.000000e+00 : f32
    %7 = vector.broadcast %cst : f32 to vector<32x128xf32>
    %8 = arith.maximumf %6, %7 : vector<32x128xf32>
    %9 = vector.shape_cast %8 : vector<32x128xf32> to vector<4x8x128xf32>
    %10 = arith.truncf %9 : vector<4x8x128xf32> to vector<4x8x128xbf16>
    %cst_5 = arith.constant 0.000000e+00 : bf16
    %11 = vector.broadcast %cst_5 : bf16 to vector<4x1x128xbf16>
    %c0_6 = arith.constant 0 : index
    %c0_7 = arith.constant 0 : index
    %c0_8 = arith.constant 0 : index
    %c0_9 = arith.constant 0 : index
    %12 = vector.load %arg5[%c0_6, %c0_7, %c0_8, %c0_9] : memref<1x4x10x128xbf16, #tpu.memory_space<vmem>>, vector<1x4x1x128xbf16>
    %13 = vector.shape_cast %12 : vector<1x4x1x128xbf16> to vector<4x1x128xbf16>
    %14 = vector.shape_cast %11 : vector<4x1x128xbf16> to vector<1x4x1x128xbf16>
    tpu.vector_store %arg5[%c0_6, %c0_7, %c0_8, %c0_9], %14 {strides = array<i32>} : memref<1x4x10x128xbf16, #tpu.memory_space<vmem>>, vector<1x4x1x128xbf16>,
    %c0_10 = arith.constant 0 : index
    %c0_11 = arith.constant 0 : index
    %c9 = arith.constant 9 : index
    %c0_12 = arith.constant 0 : index
    %15 = vector.load %arg5[%c0_10, %c0_11, %c9, %c0_12] : memref<1x4x10x128xbf16, #tpu.memory_space<vmem>>, vector<1x4x1x128xbf16>
    %16 = vector.shape_cast %15 : vector<1x4x1x128xbf16> to vector<4x1x128xbf16>
    %17 = vector.shape_cast %11 : vector<4x1x128xbf16> to vector<1x4x1x128xbf16>
    tpu.vector_store %arg5[%c0_10, %c0_11, %c9, %c0_12], %17 {strides = array<i32>} : memref<1x4x10x128xbf16, #tpu.memory_space<vmem>>, vector<1x4x1x128xbf16>,
    %c0_13 = arith.constant 0 : index
    %c0_14 = arith.constant 0 : index
    %c1 = arith.constant 1 : index
    %c0_15 = arith.constant 0 : index
    %18 = vector.load %arg5[%c0_13, %c0_14, %c1, %c0_15] : memref<1x4x10x128xbf16, #tpu.memory_space<vmem>>, vector<1x4x8x128xbf16>
    %19 = vector.shape_cast %18 : vector<1x4x8x128xbf16> to vector<4x8x128xbf16>
    %20 = vector.shape_cast %10 : vector<4x8x128xbf16> to vector<1x4x8x128xbf16>
    tpu.vector_store %arg5[%c0_13, %c0_14, %c1, %c0_15], %20 {strides = array<i32>} : memref<1x4x10x128xbf16, #tpu.memory_space<vmem>>, vector<1x4x8x128xbf16>,
    return
  }
  func.func @transform_0(%arg0: i32, %arg1: i32) -> (i32, i32) {
    %c2_i32 = arith.constant 2 : i32
    %0 = arith.muli %arg0, %c2_i32 : i32
    %1 = arith.addi %0, %arg1 : i32
    %c0_i32 = arith.constant 0 : i32
    %c0_i32_0 = arith.constant 0 : i32
    return %1, %c0_i32 : i32, i32
  }
  func.func @transform_1(%arg0: i32, %arg1: i32) -> (i32, i32) {
    %c0_i32 = arith.constant 0 : i32
    %c0_i32_0 = arith.constant 0 : i32
    %c0_i32_1 = arith.constant 0 : i32
    return %c0_i32, %c0_i32_0 : i32, i32
  }
  func.func @transform_2(%arg0: i32, %arg1: i32) -> (i32, i32) {
    %c0_i32 = arith.constant 0 : i32
    %c0_i32_0 = arith.constant 0 : i32
    %c0_i32_1 = arith.constant 0 : i32
    return %c0_i32, %c0_i32_0 : i32, i32
  }
  func.func @transform_3(%arg0: i32, %arg1: i32) -> (i32, i32, i32, i32) {
    %c0_i32 = arith.constant 0 : i32
    %c0_i32_0 = arith.constant 0 : i32
    %c0_i32_1 = arith.constant 0 : i32
    return %arg0, %arg1, %c0_i32, %c0_i32_0 : i32, i32, i32, i32
  }
}

module attributes {stable_mosaic.version = 11 : i64} {
  func.func @_conv3x3_stats_kernel(%arg0: i32, %arg1: i32, %arg2: i32, %arg3: memref<1x8x10x128xbf16, #tpu.memory_space<vmem>>, %arg4: memref<9x128x128xbf16, #tpu.memory_space<vmem>>, %arg5: memref<32x128xf32, #tpu.memory_space<vmem>>, %arg6: memref<1x1x2x128xf32, #tpu.memory_space<vmem>>, %arg7: memref<6x10x128xbf16, #tpu.memory_space<vmem>>) attributes {dimension_semantics = [#tpu.dimension_semantics<parallel>, #tpu.dimension_semantics<parallel>, #tpu.dimension_semantics<parallel>], iteration_bounds = array<i64: 1, 2, 2>, scalar_prefetch = 0 : i64, scratch_operands = 1 : i64, tpu.core_type = #tpu.core_type<tc>, window_params = [{transform_indices = @transform_0, window_bounds = array<i64: 1, 8, 10, 128>}, {transform_indices = @transform_1, window_bounds = array<i64: 9, 128, 128>}, {transform_indices = @transform_2, window_bounds = array<i64: 32, 128>}, {transform_indices = @transform_3, window_bounds = array<i64: 1, 1, 2, 128>}]} {
    %c4_i32 = arith.constant 4 : i32
    %0 = arith.muli %arg2, %c4_i32 : i32
    %c0 = arith.constant 0 : index
    %1 = arith.index_cast %0 : i32 to index
    %c0_0 = arith.constant 0 : index
    %c0_1 = arith.constant 0 : index
    %2 = vector.load %arg3[%c0, %1, %c0_0, %c0_1] : memref<1x8x10x128xbf16, #tpu.memory_space<vmem>>, vector<1x4x10x128xbf16>
    %3 = vector.shape_cast %2 : vector<1x4x10x128xbf16> to vector<4x10x128xbf16>
    %c1 = arith.constant 1 : index
    %c0_2 = arith.constant 0 : index
    %c0_3 = arith.constant 0 : index
    %4 = vector.load %arg7[%c1, %c0_2, %c0_3] : memref<6x10x128xbf16, #tpu.memory_space<vmem>>, vector<4x10x128xbf16>
    tpu.vector_store %arg7[%c1, %c0_2, %c0_3], %3 {strides = array<i32>} : memref<6x10x128xbf16, #tpu.memory_space<vmem>>, vector<4x10x128xbf16>,
    %c1_i32 = arith.constant 1 : i32
    %5 = arith.subi %0, %c1_i32 : i32
    %c0_i32 = arith.constant 0 : i32
    %6 = arith.maxsi %5, %c0_i32 : i32
    %c0_4 = arith.constant 0 : index
    %7 = arith.index_cast %6 : i32 to index
    %c0_5 = arith.constant 0 : index
    %c0_6 = arith.constant 0 : index
    %8 = vector.load %arg3[%c0_4, %7, %c0_5, %c0_6] : memref<1x8x10x128xbf16, #tpu.memory_space<vmem>>, vector<1x1x10x128xbf16>
    %9 = vector.shape_cast %8 : vector<1x1x10x128xbf16> to vector<1x10x128xbf16>
    %c0_7 = arith.constant 0 : index
    %c0_8 = arith.constant 0 : index
    %c0_9 = arith.constant 0 : index
    %10 = vector.load %arg7[%c0_7, %c0_8, %c0_9] : memref<6x10x128xbf16, #tpu.memory_space<vmem>>, vector<1x10x128xbf16>
    tpu.vector_store %arg7[%c0_7, %c0_8, %c0_9], %9 {strides = array<i32>} : memref<6x10x128xbf16, #tpu.memory_space<vmem>>, vector<1x10x128xbf16>,
    %c4_i32_10 = arith.constant 4 : i32
    %11 = arith.addi %0, %c4_i32_10 : i32
    %c7_i32 = arith.constant 7 : i32
    %12 = arith.minsi %11, %c7_i32 : i32
    %c0_11 = arith.constant 0 : index
    %13 = arith.index_cast %12 : i32 to index
    %c0_12 = arith.constant 0 : index
    %c0_13 = arith.constant 0 : index
    %14 = vector.load %arg3[%c0_11, %13, %c0_12, %c0_13] : memref<1x8x10x128xbf16, #tpu.memory_space<vmem>>, vector<1x1x10x128xbf16>
    %15 = vector.shape_cast %14 : vector<1x1x10x128xbf16> to vector<1x10x128xbf16>
    %c5 = arith.constant 5 : index
    %c0_14 = arith.constant 0 : index
    %c0_15 = arith.constant 0 : index
    %16 = vector.load %arg7[%c5, %c0_14, %c0_15] : memref<6x10x128xbf16, #tpu.memory_space<vmem>>, vector<1x10x128xbf16>
    tpu.vector_store %arg7[%c5, %c0_14, %c0_15], %15 {strides = array<i32>} : memref<6x10x128xbf16, #tpu.memory_space<vmem>>, vector<1x10x128xbf16>,
    %c0_i32_16 = arith.constant 0 : i32
    %17 = arith.cmpi eq, %arg2, %c0_i32_16 : i32
    %18 = arith.extui %17 : i1 to i32
    %c0_i32_17 = arith.constant 0 : i32
    %19 = arith.cmpi ne, %18, %c0_i32_17 : i32
    scf.if %19 {
      %cst_61 = arith.constant 0.000000e+00 : bf16
      %57 = vector.broadcast %cst_61 : bf16 to vector<1x10x128xbf16>
      %c0_62 = arith.constant 0 : index
      %c0_63 = arith.constant 0 : index
      %c0_64 = arith.constant 0 : index
      %58 = vector.load %arg7[%c0_62, %c0_63, %c0_64] : memref<6x10x128xbf16, #tpu.memory_space<vmem>>, vector<1x10x128xbf16>
      tpu.vector_store %arg7[%c0_62, %c0_63, %c0_64], %57 {strides = array<i32>} : memref<6x10x128xbf16, #tpu.memory_space<vmem>>, vector<1x10x128xbf16>,
    } else {
    }
    %c1_i32_18 = arith.constant 1 : i32
    %20 = arith.cmpi eq, %arg2, %c1_i32_18 : i32
    %21 = arith.extui %20 : i1 to i32
    %c0_i32_19 = arith.constant 0 : i32
    %22 = arith.cmpi ne, %21, %c0_i32_19 : i32
    scf.if %22 {
      %cst_61 = arith.constant 0.000000e+00 : bf16
      %57 = vector.broadcast %cst_61 : bf16 to vector<1x10x128xbf16>
      %c5_62 = arith.constant 5 : index
      %c0_63 = arith.constant 0 : index
      %c0_64 = arith.constant 0 : index
      %58 = vector.load %arg7[%c5_62, %c0_63, %c0_64] : memref<6x10x128xbf16, #tpu.memory_space<vmem>>, vector<1x10x128xbf16>
      tpu.vector_store %arg7[%c5_62, %c0_63, %c0_64], %57 {strides = array<i32>} : memref<6x10x128xbf16, #tpu.memory_space<vmem>>, vector<1x10x128xbf16>,
    } else {
    }
    %c0_20 = arith.constant 0 : index
    %c0_21 = arith.constant 0 : index
    %c0_22 = arith.constant 0 : index
    %23 = vector.load %arg7[%c0_20, %c0_21, %c0_22] : memref<6x10x128xbf16, #tpu.memory_space<vmem>>, vector<4x8x128xbf16>
    %24 = vector.shape_cast %23 : vector<4x8x128xbf16> to vector<32x128xbf16>
    %c0_23 = arith.constant 0 : index
    %c1_24 = arith.constant 1 : index
    %c0_25 = arith.constant 0 : index
    %25 = vector.load %arg7[%c0_23, %c1_24, %c0_25] : memref<6x10x128xbf16, #tpu.memory_space<vmem>>, vector<4x8x128xbf16>
    %26 = vector.shape_cast %25 : vector<4x8x128xbf16> to vector<32x128xbf16>
    %c0_26 = arith.constant 0 : index
    %c2 = arith.constant 2 : index
    %c0_27 = arith.constant 0 : index
    %27 = vector.load %arg7[%c0_26, %c2, %c0_27] : memref<6x10x128xbf16, #tpu.memory_space<vmem>>, vector<4x8x128xbf16>
    %28 = vector.shape_cast %27 : vector<4x8x128xbf16> to vector<32x128xbf16>
    %c1_28 = arith.constant 1 : index
    %c0_29 = arith.constant 0 : index
    %c0_30 = arith.constant 0 : index
    %29 = vector.load %arg7[%c1_28, %c0_29, %c0_30] : memref<6x10x128xbf16, #tpu.memory_space<vmem>>, vector<4x8x128xbf16>
    %30 = vector.shape_cast %29 : vector<4x8x128xbf16> to vector<32x128xbf16>
    %c1_31 = arith.constant 1 : index
    %c1_32 = arith.constant 1 : index
    %c0_33 = arith.constant 0 : index
    %31 = vector.load %arg7[%c1_31, %c1_32, %c0_33] : memref<6x10x128xbf16, #tpu.memory_space<vmem>>, vector<4x8x128xbf16>
    %32 = vector.shape_cast %31 : vector<4x8x128xbf16> to vector<32x128xbf16>
    %c1_34 = arith.constant 1 : index
    %c2_35 = arith.constant 2 : index
    %c0_36 = arith.constant 0 : index
    %33 = vector.load %arg7[%c1_34, %c2_35, %c0_36] : memref<6x10x128xbf16, #tpu.memory_space<vmem>>, vector<4x8x128xbf16>
    %34 = vector.shape_cast %33 : vector<4x8x128xbf16> to vector<32x128xbf16>
    %c2_37 = arith.constant 2 : index
    %c0_38 = arith.constant 0 : index
    %c0_39 = arith.constant 0 : index
    %35 = vector.load %arg7[%c2_37, %c0_38, %c0_39] : memref<6x10x128xbf16, #tpu.memory_space<vmem>>, vector<4x8x128xbf16>
    %36 = vector.shape_cast %35 : vector<4x8x128xbf16> to vector<32x128xbf16>
    %c2_40 = arith.constant 2 : index
    %c1_41 = arith.constant 1 : index
    %c0_42 = arith.constant 0 : index
    %37 = vector.load %arg7[%c2_40, %c1_41, %c0_42] : memref<6x10x128xbf16, #tpu.memory_space<vmem>>, vector<4x8x128xbf16>
    %38 = vector.shape_cast %37 : vector<4x8x128xbf16> to vector<32x128xbf16>
    %c2_43 = arith.constant 2 : index
    %c2_44 = arith.constant 2 : index
    %c0_45 = arith.constant 0 : index
    %39 = vector.load %arg7[%c2_43, %c2_44, %c0_45] : memref<6x10x128xbf16, #tpu.memory_space<vmem>>, vector<4x8x128xbf16>
    %40 = vector.shape_cast %39 : vector<4x8x128xbf16> to vector<32x128xbf16>
    %41 = tpu.concatenate %24, %26, %28, %30, %32, %34, %36, %38, %40 in 1 : vector<32x128xbf16>, vector<32x128xbf16>, vector<32x128xbf16>, vector<32x128xbf16>, vector<32x128xbf16>, vector<32x128xbf16>, vector<32x128xbf16>, vector<32x128xbf16>, vector<32x128xbf16> -> vector<32x1152xbf16>
    %c0_46 = arith.constant 0 : index
    %c0_47 = arith.constant 0 : index
    %c0_48 = arith.constant 0 : index
    %42 = vector.load %arg4[%c0_46, %c0_47, %c0_48] : memref<9x128x128xbf16, #tpu.memory_space<vmem>>, vector<9x128x128xbf16>
    %43 = vector.shape_cast %42 : vector<9x128x128xbf16> to vector<1152x128xbf16>
    %cst = arith.constant dense<0.000000e+00> : vector<32x128xf32>
    %44 = tpu.matmul %41, %43, %cst {dimension_numbers = #tpu.dot_dimension_numbers<[1], [0], [0], [1], [0, 0, 1, 1], [], []>} : vector<32x1152xbf16>, vector<1152x128xbf16>, vector<32x128xf32> -> vector<32x128xf32>
    %c0_49 = arith.constant 0 : index
    %c0_50 = arith.constant 0 : index
    %45 = vector.load %arg5[%c0_49, %c0_50] : memref<32x128xf32, #tpu.memory_space<vmem>>, vector<32x128xf32>
    tpu.vector_store %arg5[%c0_49, %c0_50], %44 {strides = array<i32>} : memref<32x128xf32, #tpu.memory_space<vmem>>, vector<32x128xf32>,
    %cst_51 = arith.constant dense<0.000000e+00> : vector<128xf32>
    %46 = vector.multi_reduction <add>, %44, %cst_51 [0] : vector<32x128xf32> to vector<128xf32>
    %47 = vector.shape_cast %46 : vector<128xf32> to vector<1x128xf32>
    %c0_52 = arith.constant 0 : index
    %c0_53 = arith.constant 0 : index
    %c0_54 = arith.constant 0 : index
    %c0_55 = arith.constant 0 : index
    %48 = vector.load %arg6[%c0_52, %c0_53, %c0_54, %c0_55] : memref<1x1x2x128xf32, #tpu.memory_space<vmem>>, vector<1x1x1x128xf32>
    %49 = vector.shape_cast %48 : vector<1x1x1x128xf32> to vector<1x128xf32>
    %50 = vector.shape_cast %47 : vector<1x128xf32> to vector<1x1x1x128xf32>
    tpu.vector_store %arg6[%c0_52, %c0_53, %c0_54, %c0_55], %50 {strides = array<i32>} : memref<1x1x2x128xf32, #tpu.memory_space<vmem>>, vector<1x1x1x128xf32>,
    %51 = arith.mulf %44, %44 : vector<32x128xf32>
    %cst_56 = arith.constant dense<0.000000e+00> : vector<128xf32>
    %52 = vector.multi_reduction <add>, %51, %cst_56 [0] : vector<32x128xf32> to vector<128xf32>
    %53 = vector.shape_cast %52 : vector<128xf32> to vector<1x128xf32>
    %c0_57 = arith.constant 0 : index
    %c0_58 = arith.constant 0 : index
    %c1_59 = arith.constant 1 : index
    %c0_60 = arith.constant 0 : index
    %54 = vector.load %arg6[%c0_57, %c0_58, %c1_59, %c0_60] : memref<1x1x2x128xf32, #tpu.memory_space<vmem>>, vector<1x1x1x128xf32>
    %55 = vector.shape_cast %54 : vector<1x1x1x128xf32> to vector<1x128xf32>
    %56 = vector.shape_cast %53 : vector<1x128xf32> to vector<1x1x1x128xf32>
    tpu.vector_store %arg6[%c0_57, %c0_58, %c1_59, %c0_60], %56 {strides = array<i32>} : memref<1x1x2x128xf32, #tpu.memory_space<vmem>>, vector<1x1x1x128xf32>,
    return
  }
  func.func @transform_0(%arg0: i32, %arg1: i32, %arg2: i32) -> (i32, i32, i32, i32) {
    %c0_i32 = arith.constant 0 : i32
    %c0_i32_0 = arith.constant 0 : i32
    %c0_i32_1 = arith.constant 0 : i32
    %c0_i32_2 = arith.constant 0 : i32
    return %arg1, %c0_i32, %c0_i32_0, %c0_i32_1 : i32, i32, i32, i32
  }
  func.func @transform_1(%arg0: i32, %arg1: i32, %arg2: i32) -> (i32, i32, i32) {
    %c0_i32 = arith.constant 0 : i32
    %c0_i32_0 = arith.constant 0 : i32
    %c0_i32_1 = arith.constant 0 : i32
    return %c0_i32, %c0_i32_0, %arg0 : i32, i32, i32
  }
  func.func @transform_2(%arg0: i32, %arg1: i32, %arg2: i32) -> (i32, i32) {
    %c2_i32 = arith.constant 2 : i32
    %0 = arith.muli %arg1, %c2_i32 : i32
    %1 = arith.addi %0, %arg2 : i32
    %c0_i32 = arith.constant 0 : i32
    return %1, %arg0 : i32, i32
  }
  func.func @transform_3(%arg0: i32, %arg1: i32, %arg2: i32) -> (i32, i32, i32, i32) {
    %c0_i32 = arith.constant 0 : i32
    %c0_i32_0 = arith.constant 0 : i32
    return %arg1, %arg2, %c0_i32, %arg0 : i32, i32, i32, i32
  }
}

module attributes {stable_mosaic.version = 11 : i64} {
  func.func @_bn_relu_kernel(%arg0: i32, %arg1: i32, %arg2: memref<32x128xf32, #tpu.memory_space<vmem>>, %arg3: memref<1x128xf32, #tpu.memory_space<vmem>>, %arg4: memref<1x128xf32, #tpu.memory_space<vmem>>, %arg5: memref<1x4x10x128xf32, #tpu.memory_space<vmem>>) attributes {dimension_semantics = [#tpu.dimension_semantics<parallel>, #tpu.dimension_semantics<parallel>], iteration_bounds = array<i64: 2, 2>, scalar_prefetch = 0 : i64, scratch_operands = 0 : i64, tpu.core_type = #tpu.core_type<tc>, window_params = [{transform_indices = @transform_0, window_bounds = array<i64: 32, 128>}, {pipeline_mode = #tpu.pipeline_mode<synchronous>, transform_indices = @transform_1, window_bounds = array<i64: 1, 128>}, {pipeline_mode = #tpu.pipeline_mode<synchronous>, transform_indices = @transform_2, window_bounds = array<i64: 1, 128>}, {transform_indices = @transform_3, window_bounds = array<i64: 1, 4, 10, 128>}]} {
    %c0 = arith.constant 0 : index
    %c0_0 = arith.constant 0 : index
    %0 = vector.load %arg2[%c0, %c0_0] : memref<32x128xf32, #tpu.memory_space<vmem>>, vector<32x128xf32>
    %c0_1 = arith.constant 0 : index
    %c0_2 = arith.constant 0 : index
    %1 = vector.load %arg3[%c0_1, %c0_2] : memref<1x128xf32, #tpu.memory_space<vmem>>, vector<1x128xf32>
    %2 = vector.broadcast %1 : vector<1x128xf32> to vector<32x128xf32>
    %3 = arith.mulf %0, %2 : vector<32x128xf32>
    %c0_3 = arith.constant 0 : index
    %c0_4 = arith.constant 0 : index
    %4 = vector.load %arg4[%c0_3, %c0_4] : memref<1x128xf32, #tpu.memory_space<vmem>>, vector<1x128xf32>
    %5 = vector.broadcast %4 : vector<1x128xf32> to vector<32x128xf32>
    %6 = arith.addf %3, %5 : vector<32x128xf32>
    %cst = arith.constant 0.000000e+00 : f32
    %7 = vector.broadcast %cst : f32 to vector<32x128xf32>
    %8 = arith.maximumf %6, %7 : vector<32x128xf32>
    %9 = vector.shape_cast %8 : vector<32x128xf32> to vector<4x8x128xf32>
    %cst_5 = arith.constant 0.000000e+00 : f32
    %10 = vector.broadcast %cst_5 : f32 to vector<4x1x128xf32>
    %c0_6 = arith.constant 0 : index
    %c0_7 = arith.constant 0 : index
    %c0_8 = arith.constant 0 : index
    %c0_9 = arith.constant 0 : index
    %11 = vector.load %arg5[%c0_6, %c0_7, %c0_8, %c0_9] : memref<1x4x10x128xf32, #tpu.memory_space<vmem>>, vector<1x4x1x128xf32>
    %12 = vector.shape_cast %11 : vector<1x4x1x128xf32> to vector<4x1x128xf32>
    %13 = vector.shape_cast %10 : vector<4x1x128xf32> to vector<1x4x1x128xf32>
    tpu.vector_store %arg5[%c0_6, %c0_7, %c0_8, %c0_9], %13 {strides = array<i32>} : memref<1x4x10x128xf32, #tpu.memory_space<vmem>>, vector<1x4x1x128xf32>,
    %c0_10 = arith.constant 0 : index
    %c0_11 = arith.constant 0 : index
    %c9 = arith.constant 9 : index
    %c0_12 = arith.constant 0 : index
    %14 = vector.load %arg5[%c0_10, %c0_11, %c9, %c0_12] : memref<1x4x10x128xf32, #tpu.memory_space<vmem>>, vector<1x4x1x128xf32>
    %15 = vector.shape_cast %14 : vector<1x4x1x128xf32> to vector<4x1x128xf32>
    %16 = vector.shape_cast %10 : vector<4x1x128xf32> to vector<1x4x1x128xf32>
    tpu.vector_store %arg5[%c0_10, %c0_11, %c9, %c0_12], %16 {strides = array<i32>} : memref<1x4x10x128xf32, #tpu.memory_space<vmem>>, vector<1x4x1x128xf32>,
    %c0_13 = arith.constant 0 : index
    %c0_14 = arith.constant 0 : index
    %c1 = arith.constant 1 : index
    %c0_15 = arith.constant 0 : index
    %17 = vector.load %arg5[%c0_13, %c0_14, %c1, %c0_15] : memref<1x4x10x128xf32, #tpu.memory_space<vmem>>, vector<1x4x8x128xf32>
    %18 = vector.shape_cast %17 : vector<1x4x8x128xf32> to vector<4x8x128xf32>
    %19 = vector.shape_cast %9 : vector<4x8x128xf32> to vector<1x4x8x128xf32>
    tpu.vector_store %arg5[%c0_13, %c0_14, %c1, %c0_15], %19 {strides = array<i32>} : memref<1x4x10x128xf32, #tpu.memory_space<vmem>>, vector<1x4x8x128xf32>,
    return
  }
  func.func @transform_0(%arg0: i32, %arg1: i32) -> (i32, i32) {
    %c2_i32 = arith.constant 2 : i32
    %0 = arith.muli %arg0, %c2_i32 : i32
    %1 = arith.addi %0, %arg1 : i32
    %c0_i32 = arith.constant 0 : i32
    %c0_i32_0 = arith.constant 0 : i32
    return %1, %c0_i32 : i32, i32
  }
  func.func @transform_1(%arg0: i32, %arg1: i32) -> (i32, i32) {
    %c0_i32 = arith.constant 0 : i32
    %c0_i32_0 = arith.constant 0 : i32
    %c0_i32_1 = arith.constant 0 : i32
    return %c0_i32, %c0_i32_0 : i32, i32
  }
  func.func @transform_2(%arg0: i32, %arg1: i32) -> (i32, i32) {
    %c0_i32 = arith.constant 0 : i32
    %c0_i32_0 = arith.constant 0 : i32
    %c0_i32_1 = arith.constant 0 : i32
    return %c0_i32, %c0_i32_0 : i32, i32
  }
  func.func @transform_3(%arg0: i32, %arg1: i32) -> (i32, i32, i32, i32) {
    %c0_i32 = arith.constant 0 : i32
    %c0_i32_0 = arith.constant 0 : i32
    %c0_i32_1 = arith.constant 0 : i32
    return %arg0, %arg1, %c0_i32, %c0_i32_0 : i32, i32, i32, i32
  }
}

</mosaic_0001>

<llo_original>
// kernel: down_forward.5
$region0: #{down_forward.5}
  #allocation0 [shape = 'u32[]', space=smem, size = 0x4, offset = 0x4, fixed_abs, tag = 'smem constant byte address 0x4 - core index']
  #allocation1 [shape = 'u32[72,128]{1,0:T(1,128)}', space=vmem, size = 0x9000, scoped, tag = 'internal scratch']
  %s0 = inlined_call_operand.vmem [shape: f32[128,128], index: 0, kind: input, shape index: {}]
  %s1 = inlined_call_operand.vmem [shape: f32[1,128], index: 1, kind: input, shape index: {}]
  %s2 = inlined_call_operand.vmem [shape: f32[1,128], index: 2, kind: input, shape index: {}]
  %s3 = inlined_call_operand.vmem [shape: bf16[2,8,10,128], index: 3, kind: output, shape index: {}]
  %s4 = sld [smem:[#allocation0]]
  $region45: #{down_forward.5} parent=0
    _
  %s6 = ssub.s32 1, %s4
  %s7 = scalar_select 0, %s6, %s4
  loop: start=0, step=1, limit=6
  $region2: #{down_forward.5} parent=0 // loop_pre_header
    _
  $region3: #{down_forward.5} parent=0 // loop_header
    %s9 = sphi 0, %s13
    %p10 = scmp.ge.s32.totalorder %s9, 6
    %s16 = sphi 0, %s28
    %s17 = sphi 0, %s24
    %s18 = sphi 0, %s16
    %s19 = sphi 0, %s17
    %s20 = sphi 0, %s18
    %s21 = sphi 0, %s19
    %s35 = sphi 0, %s37
    %s38 = sphi 0, %s35
    %s39 = sphi 0, %s38
    %s55 = sphi 0, %s39
    %s59 = sphi 0, %s59
    %s61 = sphi 0, %s59
    %s62 = sphi 0, %s61
    %s76 = sphi 0, %s62
    %s80 = sphi 0, %s80
    %s82 = sphi 0, %s80
    %s83 = sphi 0, %s82
    %s97 = sphi 0, %s83
    %s105 = sphi 0, %s107
    %s108 = sphi 0, %s105
    %s109 = sphi 0, %s108
    %s125 = sphi 0, %s109
  $region4: #{down_forward.5} parent=0 // loop_header_branch
    %12 = sbr.rel (%p10) target = $region8
  $region5: #{down_forward.5} parent=0 // loop_body
    %s14 = ssub.s32 %s9, 1
    %s15 = ssub.s32 %s9, 2
    %s22 = sadd.s32 1, %s17
    %p23 = scmp.ge.s32.totalorder %s22, 2
    %s24 = scalar_select %p23, 0, %s22
    %s25 = sadd.s32 1, %s16
    %s26 = scalar_select %p23, %s25, %s16
    %p27 = scmp.ge.s32.totalorder %s26, 2
    %s28 = scalar_select %p27, 0, %s26
    %s29 = smul.u32 %s16, 2
    %s30 = sadd.s32 %s29, %s17
    %s31 = smul.u32 %s28, 2
    %s32 = sadd.s32 %s31, %s24
    %s33 = ssub.s32 %s30, %s32
    %p34 = scmp.eq.s32.totalorder %s33, 0
    %s36 = sadd.s32 %s35, 1
    %s37 = scalar_select %p34, %s35, %s36
    %p40 = pneg %p34
    %p41 = scmp.eq.s32.totalorder %s9, 3
    %p42 = por %p40, %p41
    %p43 = scmp.ne.s32.totalorder %s35, %s38
    %p44 = scmp.eq.s32.totalorder %s9, 0
    %p45 = por %p43, %p44
    %p46 = scmp.ne.s32.totalorder %s35, %s38
    %p47 = scmp.eq.s32.totalorder %s14, 3
    %p48 = por %p46, %p47
    %p49 = scmp.ne.s32.totalorder %s38, %s39
    %p50 = scmp.eq.s32.totalorder %s14, 0
    %p51 = por %p49, %p50
    %p52 = scmp.ne.s32.totalorder %s38, %s39
    %p53 = scmp.eq.s32.totalorder %s15, 3
    %p54 = por %p52, %p53
    %p56 = scmp.ne.s32.totalorder %s39, %s55
    %p57 = scmp.eq.s32.totalorder %s15, 0
    %p58 = por %p56, %p57
    %s60 = sadd.s32 %s59, 1
    %p63 = scmp.eq.s32.totalorder %s9, 3
    %p64 = scmp.ne.s32.totalorder %s59, %s61
    %p65 = scmp.eq.s32.totalorder %s9, 0
    %p66 = por %p64, %p65
    %p67 = scmp.ne.s32.totalorder %s59, %s61
    %p68 = scmp.eq.s32.totalorder %s14, 3
    %p69 = por %p67, %p68
    %p70 = scmp.ne.s32.totalorder %s61, %s62
    %p71 = scmp.eq.s32.totalorder %s14, 0
    %p72 = por %p70, %p71
    %p73 = scmp.ne.s32.totalorder %s61, %s62
    %p74 = scmp.eq.s32.totalorder %s15, 3
    %p75 = por %p73, %p74
    %p77 = scmp.ne.s32.totalorder %s62, %s76
    %p78 = scmp.eq.s32.totalorder %s15, 0
    %p79 = por %p77, %p78
    %s81 = sadd.s32 %s80, 1
    %p84 = scmp.eq.s32.totalorder %s9, 3
    %p85 = scmp.ne.s32.totalorder %s80, %s82
    %p86 = scmp.eq.s32.totalorder %s9, 0
    %p87 = por %p85, %p86
    %p88 = scmp.ne.s32.totalorder %s80, %s82
    %p89 = scmp.eq.s32.totalorder %s14, 3
    %p90 = por %p88, %p89
    %p91 = scmp.ne.s32.totalorder %s82, %s83
    %p92 = scmp.eq.s32.totalorder %s14, 0
    %p93 = por %p91, %p92
    %p94 = scmp.ne.s32.totalorder %s82, %s83
    %p95 = scmp.eq.s32.totalorder %s15, 3
    %p96 = por %p94, %p95
    %p98 = scmp.ne.s32.totalorder %s83, %s97
    %p99 = scmp.eq.s32.totalorder %s15, 0
    %p100 = por %p98, %p99
    %s101 = ssub.s32 %s16, %s28
    %s102 = ssub.s32 %s17, %s24
    %s103 = sor.u32 %s101, %s102
    %p104 = scmp.eq.s32.totalorder %s103, 0
    %s106 = sadd.s32 %s105, 1
    %s107 = scalar_select %p104, %s105, %s106
    %p110 = pneg %p104
    %p111 = scmp.eq.s32.totalorder %s9, 3
    %p112 = por %p110, %p111
    %p113 = scmp.ne.s32.totalorder %s105, %s108
    %p114 = scmp.eq.s32.totalorder %s9, 0
    %p115 = por %p113, %p114
    %p116 = scmp.ne.s32.totalorder %s105, %s108
    %p117 = scmp.eq.s32.totalorder %s14, 3
    %p118 = por %p116, %p117
    %p119 = scmp.ne.s32.totalorder %s108, %s109
    %p120 = scmp.eq.s32.totalorder %s14, 0
    %p121 = por %p119, %p120
    %p122 = scmp.ne.s32.totalorder %s108, %s109
    %p123 = scmp.eq.s32.totalorder %s15, 3
    %p124 = por %p122, %p123
    %p126 = scmp.ne.s32.totalorder %s109, %s125
    %p127 = scmp.eq.s32.totalorder %s15, 0
    %p128 = por %p126, %p127
    %p129 = scmp.le.s32.totalorder 1, %s9
    %p130 = scmp.lt.s32.totalorder %s9, 5
    %p131 = pnand %p129, %p130
    %p132 = pneg %p131
    // Predicated region
    $region9: #{down_forward.5} parent=5 // pred_check
      _
    $region10: #{down_forward.5} parent=5 // pred_check_branch
      %134 = sbr.rel (%p131) target = $region12
    $region11: #{down_forward.5} parent=5 // pred_region
      %s135 = ssub.s32 %s9, 1
      // Predicated region
      $region13: #{down_forward.5} parent=11 // pred_check
        %p136 = pneg %p72
      $region14: #{down_forward.5} parent=11 // pred_check_branch
        %138 = sbr.rel (%p136) target = $region16
      $region15: #{down_forward.5} parent=11 // pred_region
        _
      $region16: #{down_forward.5} parent=11 // pred_fallthru
        _
      // Predicated region
      $region17: #{down_forward.5} parent=11 // pred_check
        %p139 = pneg %p93
      $region18: #{down_forward.5} parent=11 // pred_check_branch
        %141 = sbr.rel (%p139) target = $region20
      $region19: #{down_forward.5} parent=11 // pred_region
        _
      $region20: #{down_forward.5} parent=11 // pred_fallthru
        _
    $region12: #{down_forward.5} parent=5 // pred_fallthru
      _
    %p142 = scmp.lt.s32.totalorder %s9, 4
    // Predicated region
    $region21: #{down_forward.5} parent=5 // pred_check
      %p143 = pneg %p142
    $region22: #{down_forward.5} parent=5 // pred_check_branch
      %145 = sbr.rel (%p143) target = $region24
    $region23: #{down_forward.5} parent=5 // pred_region
      // Predicated region
      $region25: #{down_forward.5} parent=23 // pred_check
        %p146 = pneg %p45
      $region26: #{down_forward.5} parent=23 // pred_check_branch
        %148 = sbr.rel (%p146) target = $region28
      $region27: #{down_forward.5} parent=23 // pred_region
        %s149 = smul.u32 %s16, 2
        %s150 = sadd.s32 %s149, %s17
        %s151 = smul.u32 4, %s150
        %p152 = scmp.lt.s32.totalorder %s151, 15
        %s153 = scalar_select %p152, %s151, 15
        %s154 = smul.addr %s153, 8
        %s155 = scalar_lea.vmem %s0, %s154
        %s156 = smul.u32 %s16, 2
        %s157 = sadd.s32 %s156, %s17
        %s158 = smul.u32 4, %s157
      $region28: #{down_forward.5} parent=23 // pred_fallthru
        _
    $region24: #{down_forward.5} parent=5 // pred_fallthru
      _
    %p159 = scmp.le.s32.totalorder 1, %s9
    %p160 = scmp.lt.s32.totalorder %s9, 5
    %p161 = pnand %p159, %p160
    %p162 = pneg %p161
    // Predicated region
    $region29: #{down_forward.5} parent=5 // pred_check
      _
    $region30: #{down_forward.5} parent=5 // pred_check_branch
      %164 = sbr.rel (%p161) target = $region32
    $region31: #{down_forward.5} parent=5 // pred_region
      %s165 = ssub.s32 %s9, 1
      %s166 = smul.u32 %s18, 2
      %s167 = sadd.s32 %s166, %s19
      %s168 = smul.u32 4, %s167
      %p169 = scmp.lt.s32.totalorder %s168, 15
      %s170 = scalar_select %p169, %s168, 15
      %s171 = smul.addr %s170, 8
      %s172 = scalar_lea.vmem %s0, %s171
      %p173 = pneg %p51
      %p174 = pneg %p48
      %p175 = pneg %p72
      %p176 = pneg %p69
      %p177 = pneg %p93
      %p178 = pneg %p90
      %p179 = pneg %p121
      %p180 = pneg %p118
      %s181 = smul.u32 4, %s19
      %p182 = scmp.lt.s32.totalorder %s18, 1
      %s183 = scalar_select %p182, %s18, 1
      %p184 = scmp.lt.s32.totalorder %s181, 7
      %s185 = scalar_select %p184, %s181, 7
      %s186 = smul.addr %s185, 2
      %s187 = smul.addr %s183, 16
      %s188 = sadd.s32 %s186, %s187
      %s189 = smul.addr %s188, 4
      %s190 = scalar_lea.vmem %s3, %s189
      %s191 = smul.u32 %s18, 2
      %s192 = sadd.s32 %s191, %s19
      %s193 = smul.u32 4, %s192
      %p194 = scmp.lt.s32.totalorder %s193, 15
      %s195 = scalar_select %p194, %s193, 15
      %s196 = smul.addr %s195, 8
      %s197 = scalar_lea.vmem %s0, %s196
      %s198 = smul.u32 %s18, 2
      %s199 = sadd.s32 %s198, %s19
      %s200 = smul.u32 4, %s199
      %s201 = smul.u32 4, %s19
      %p202 = scmp.lt.s32.totalorder %s18, 1
      %s203 = scalar_select %p202, %s18, 1
      %p204 = scmp.lt.s32.totalorder %s201, 7
      %s205 = scalar_select %p204, %s201, 7
      %s206 = smul.addr %s205, 2
      %s207 = smul.addr %s203, 16
      %s208 = sadd.s32 %s206, %s207
      %s209 = smul.addr %s208, 4
      %s210 = scalar_lea.vmem %s3, %s209
      %s211 = smul.u32 4, %s19
      %v213 = vld [vmem:[%s197] sm:$0xff]
      %v214 = vld [vmem:[%s197 + $0x8] sm:$0xff]
      %v215 = vld [vmem:[%s197 + $0x10] sm:$0xff]
      %v216 = vld [vmem:[%s197 + $0x18] sm:$0xff]
      %v217 = vld [vmem:[%s1] sm:$0x1]
      %v219 = vperm.slane %v217, 0
      %v221 = vmul.f32 %v213, %v219
      %v222 = vmul.f32 %v214, %v219
      %v223 = vmul.f32 %v215, %v219
      %v224 = vmul.f32 %v216, %v219
      %v225 = vld [vmem:[%s2] sm:$0x1]
      %v227 = vperm.slane %v225, 0
      %v229 = vadd.f32 %v221, %v227
      %v230 = vadd.f32 %v222, %v227
      %v231 = vadd.f32 %v223, %v227
      %v232 = vadd.f32 %v224, %v227
      %v233 = vmax.f32 %v229, 0.0
      %v234 = vmax.f32 %v230, 0.0
      %v235 = vmax.f32 %v231, 0.0
      %v236 = vmax.f32 %v232, 0.0
      %v237 = vpack.c.bf16 %v233, %v233
      %v238 = vpack.c.bf16 %v234, %v234
      %v239 = vpack.c.bf16 %v235, %v235
      %v240 = vpack.c.bf16 %v236, %v236
      %vm241 = vcmask 1040384
      %vm242 = vsmask.f32 256
      %vm243 = vmand %vm241, %vm242
      %v244 = vld [vmem:[%s210] sm:$0x1]
      %v245 = vsel %vm243, 0, %v244
      %246 = vst [vmem:[%s210] sm:$0x1] %v245
      %v247 = vld [vmem:[%s210 + $0x8] sm:$0x1]
      %v248 = vsel %vm243, 0, %v247
      %249 = vst [vmem:[%s210 + $0x8] sm:$0x1] %v248
      %v250 = vld [vmem:[%s210 + $0x10] sm:$0x1]
      %v251 = vsel %vm243, 0, %v250
      %252 = vst [vmem:[%s210 + $0x10] sm:$0x1] %v251
      %v253 = vld [vmem:[%s210 + $0x18] sm:$0x1]
      %v254 = vsel %vm243, 0, %v253
      %255 = vst [vmem:[%s210 + $0x18] sm:$0x1] %v254
      %vm256 = vsmask.f32 7938
      %vm257 = vmand %vm241, %vm256
      %v258 = vld [vmem:[%s210 + $0x4] sm:$0x1]
      %v259 = vsel %vm257, 0, %v258
      %260 = vst [vmem:[%s210 + $0x4] sm:$0x1] %v259
      %v261 = vld [vmem:[%s210 + $0xc] sm:$0x1]
      %v262 = vsel %vm257, 0, %v261
      %263 = vst [vmem:[%s210 + $0xc] sm:$0x1] %v262
      %v264 = vld [vmem:[%s210 + $0x14] sm:$0x1]
      %v265 = vsel %vm257, 0, %v264
      %266 = vst [vmem:[%s210 + $0x14] sm:$0x1] %v265
      %v267 = vld [vmem:[%s210 + $0x1c] sm:$0x1]
      %v268 = vsel %vm257, 0, %v267
      %269 = vst [vmem:[%s210 + $0x1c] sm:$0x1] %v268
      %v271 = vshrl.u32 %v237, 16
      %v273 = vrot.slane %v271, 7
      %v274 = vshll.u32 %v237, 16
      %v276 = vor.u32 %v273, %v274
      %v277 = vrot.slane %v273, 4
      %v279 = vshrl.u32 %v238, 16
      %v281 = vrot.slane %v279, 7
      %v282 = vshll.u32 %v238, 16
      %v284 = vor.u32 %v281, %v282
      %v285 = vrot.slane %v281, 4
      %v287 = vshrl.u32 %v239, 16
      %v289 = vrot.slane %v287, 7
      %v290 = vshll.u32 %v239, 16
      %v292 = vor.u32 %v289, %v290
      %v293 = vrot.slane %v289, 4
      %v295 = vshrl.u32 %v240, 16
      %v297 = vrot.slane %v295, 7
      %v298 = vshll.u32 %v240, 16
      %v300 = vor.u32 %v297, %v298
      %v301 = vrot.slane %v297, 4
      %vm310 = vcmask 1043456
      %vm311 = vmand %vm310, %vm256
      %v312 = vld [vmem:[%s210] sm:$0xf]
      %v313 = vsel %vm311, %v276, %v312
      %314 = vst [vmem:[%s210] sm:$0xf] %v313
      %v315 = vld [vmem:[%s210 + $0x4] sm:$0x1]
      %v316 = vsel %vm243, %v277, %v315
      %317 = vst [vmem:[%s210 + $0x4] sm:$0x1] %v316
      %v318 = vld [vmem:[%s210 + $0x8] sm:$0xf]
      %v319 = vsel %vm311, %v284, %v318
      %320 = vst [vmem:[%s210 + $0x8] sm:$0xf] %v319
      %v321 = vld [vmem:[%s210 + $0xc] sm:$0x1]
      %v322 = vsel %vm243, %v285, %v321
      %323 = vst [vmem:[%s210 + $0xc] sm:$0x1] %v322
      %v324 = vld [vmem:[%s210 + $0x10] sm:$0xf]
      %v325 = vsel %vm311, %v292, %v324
      %326 = vst [vmem:[%s210 + $0x10] sm:$0xf] %v325
      %v327 = vld [vmem:[%s210 + $0x14] sm:$0x1]
      %v328 = vsel %vm243, %v293, %v327
      %329 = vst [vmem:[%s210 + $0x14] sm:$0x1] %v328
      %v330 = vld [vmem:[%s210 + $0x18] sm:$0xf]
      %v331 = vsel %vm311, %v300, %v330
      %332 = vst [vmem:[%s210 + $0x18] sm:$0xf] %v331
      %v333 = vld [vmem:[%s210 + $0x1c] sm:$0x1]
      %v334 = vsel %vm243, %v301, %v333
      %335 = vst [vmem:[%s210 + $0x1c] sm:$0x1] %v334
      %s336 = smul.u32 4, %s19
      %p337 = scmp.lt.s32.totalorder %s18, 1
      %s338 = scalar_select %p337, %s18, 1
      %p339 = scmp.lt.s32.totalorder %s336, 7
      %s340 = scalar_select %p339, %s336, 7
      %s341 = smul.addr %s340, 2
      %s342 = smul.addr %s338, 16
      %s343 = sadd.s32 %s341, %s342
      %s344 = smul.addr %s343, 4
      %s345 = scalar_lea.vmem %s3, %s344
      // Predicated region
      $region33: #{down_forward.5} parent=31 // pred_check
        %p346 = pneg %p118
      $region34: #{down_forward.5} parent=31 // pred_check_branch
        %348 = sbr.rel (%p346) target = $region36
      $region35: #{down_forward.5} parent=31 // pred_region
        %s349 = smul.u32 4, %s19
      $region36: #{down_forward.5} parent=31 // pred_fallthru
        _
    $region32: #{down_forward.5} parent=5 // pred_fallthru
      _
    %p350 = scmp.le.s32.totalorder 2, %s9
    // Predicated region
    $region37: #{down_forward.5} parent=5 // pred_check
      %p351 = pneg %p350
    $region38: #{down_forward.5} parent=5 // pred_check_branch
      %353 = sbr.rel (%p351) target = $region40
    $region39: #{down_forward.5} parent=5 // pred_region
      %s354 = ssub.s32 %s9, 2
      // Predicated region
      $region41: #{down_forward.5} parent=39 // pred_check
        %p355 = pneg %p124
      $region42: #{down_forward.5} parent=39 // pred_check_branch
        %357 = sbr.rel (%p355) target = $region44
      $region43: #{down_forward.5} parent=39 // pred_region
        %s358 = smul.u32 4, %s21
        %p359 = scmp.lt.s32.totalorder %s20, 1
        %s360 = scalar_select %p359, %s20, 1
        %p361 = scmp.lt.s32.totalorder %s358, 7
        %s362 = scalar_select %p361, %s358, 7
        %s363 = smul.addr %s362, 2
        %s364 = smul.addr %s360, 16
        %s365 = sadd.s32 %s363, %s364
        %s366 = smul.addr %s365, 4
        %s367 = scalar_lea.vmem %s3, %s366
      $region44: #{down_forward.5} parent=39 // pred_fallthru
        _
    $region40: #{down_forward.5} parent=5 // pred_fallthru
      _
  $region6: #{down_forward.5} parent=0 // loop_footer
    %s13 = sadd.s32 1, %s9
  $region7: #{down_forward.5} parent=0 // loop_footer_branch
    %8 = sbr.rel target = $region3
  $region8: #{down_forward.5} parent=0 // loop_exit
    _

// kernel: down_forward.4
$region0: #{down_forward.4}
  #allocation0 [shape = 'u32[]', space=smem, size = 0x4, offset = 0x4, fixed_abs, tag = 'smem constant byte address 0x4 - core index']
  #allocation1 [shape = 'u32[72,128]{1,0:T(1,128)}', space=vmem, size = 0x9000, scoped, tag = 'internal scratch']
  #allocation2 [shape = 'bf16[6,10,4]{2,1,0:T(8,128)(2,1)}', space=vmem, size = 0x6000, scoped, tag = 'scratch operand']
  %s0 = inlined_call_operand.vmem [shape: bf16[2,8,10,4], index: 0, kind: input, shape index: {}]
  %s1 = inlined_call_operand.vmem [shape: bf16[9,4,128], index: 1, kind: input, shape index: {}]
  %s2 = inlined_call_operand.vmem [shape: f32[128,128], index: 2, kind: output, shape index: {0}]
  %s3 = inlined_call_operand.vmem [shape: f32[2,2,2,128], index: 3, kind: output, shape index: {1}]
  %4 = xla_tuple %s2, %s3
  %s5 = sld [smem:[#allocation0]]
  $region57: #{down_forward.4} parent=0
    _
  %s7 = ssub.s32 1, %s5
  %s8 = scalar_select 0, %s7, %s5
  loop: start=0, step=1, limit=6
  $region2: #{down_forward.4} parent=0 // loop_pre_header
    _
  $region3: #{down_forward.4} parent=0 // loop_header
    %s10 = sphi 0, %s14
    %p11 = scmp.ge.s32.totalorder %s10, 6
    %s17 = sphi 0, %s36
    %s18 = sphi 0, %s32
    %s19 = sphi 0, %s28
    %s20 = sphi 0, %s17
    %s21 = sphi 0, %s18
    %s22 = sphi 0, %s19
    %s23 = sphi 0, %s20
    %s24 = sphi 0, %s21
    %s25 = sphi 0, %s22
    %s39 = sphi 0, %s41
    %s42 = sphi 0, %s39
    %s43 = sphi 0, %s42
    %s59 = sphi 0, %s43
    %s65 = sphi 0, %s67
    %s68 = sphi 0, %s65
    %s69 = sphi 0, %s68
    %s85 = sphi 0, %s69
    %s97 = sphi 0, %s99
    %s100 = sphi 0, %s97
    %s101 = sphi 0, %s100
    %s117 = sphi 0, %s101
    %s127 = sphi 0, %s129
    %s130 = sphi 0, %s127
    %s131 = sphi 0, %s130
    %s147 = sphi 0, %s131
  $region4: #{down_forward.4} parent=0 // loop_header_branch
    %13 = sbr.rel (%p11) target = $region8
  $region5: #{down_forward.4} parent=0 // loop_body
    %s15 = ssub.s32 %s10, 1
    %s16 = ssub.s32 %s10, 2
    %s26 = sadd.s32 1, %s19
    %p27 = scmp.ge.s32.totalorder %s26, 2
    %s28 = scalar_select %p27, 0, %s26
    %s29 = sadd.s32 1, %s18
    %s30 = scalar_select %p27, %s29, %s18
    %p31 = scmp.ge.s32.totalorder %s30, 2
    %s32 = scalar_select %p31, 0, %s30
    %s33 = sadd.s32 1, %s17
    %s34 = scalar_select %p31, %s33, %s17
    %p35 = scmp.ge.s32.totalorder %s34, 1
    %s36 = scalar_select %p35, 0, %s34
    %s37 = ssub.s32 %s18, %s32
    %p38 = scmp.eq.s32.totalorder %s37, 0
    %s40 = sadd.s32 %s39, 1
    %s41 = scalar_select %p38, %s39, %s40
    %p44 = pneg %p38
    %p45 = scmp.eq.s32.totalorder %s10, 3
    %p46 = por %p44, %p45
    %p47 = scmp.ne.s32.totalorder %s39, %s42
    %p48 = scmp.eq.s32.totalorder %s10, 0
    %p49 = por %p47, %p48
    %p50 = scmp.ne.s32.totalorder %s39, %s42
    %p51 = scmp.eq.s32.totalorder %s15, 3
    %p52 = por %p50, %p51
    %p53 = scmp.ne.s32.totalorder %s42, %s43
    %p54 = scmp.eq.s32.totalorder %s15, 0
    %p55 = por %p53, %p54
    %p56 = scmp.ne.s32.totalorder %s42, %s43
    %p57 = scmp.eq.s32.totalorder %s16, 3
    %p58 = por %p56, %p57
    %p60 = scmp.ne.s32.totalorder %s43, %s59
    %p61 = scmp.eq.s32.totalorder %s16, 0
    %p62 = por %p60, %p61
    %s63 = ssub.s32 %s17, %s36
    %p64 = scmp.eq.s32.totalorder %s63, 0
    %s66 = sadd.s32 %s65, 1
    %s67 = scalar_select %p64, %s65, %s66
    %p70 = pneg %p64
    %p71 = scmp.eq.s32.totalorder %s10, 3
    %p72 = por %p70, %p71
    %p73 = scmp.ne.s32.totalorder %s65, %s68
    %p74 = scmp.eq.s32.totalorder %s10, 0
    %p75 = por %p73, %p74
    %p76 = scmp.ne.s32.totalorder %s65, %s68
    %p77 = scmp.eq.s32.totalorder %s15, 3
    %p78 = por %p76, %p77
    %p79 = scmp.ne.s32.totalorder %s68, %s69
    %p80 = scmp.eq.s32.totalorder %s15, 0
    %p81 = por %p79, %p80
    %p82 = scmp.ne.s32.totalorder %s68, %s69
    %p83 = scmp.eq.s32.totalorder %s16, 3
    %p84 = por %p82, %p83
    %p86 = scmp.ne.s32.totalorder %s69, %s85
    %p87 = scmp.eq.s32.totalorder %s16, 0
    %p88 = por %p86, %p87
    %s89 = smul.u32 %s18, 2
    %s90 = sadd.s32 %s89, %s19
    %s91 = smul.u32 %s32, 2
    %s92 = sadd.s32 %s91, %s28
    %s93 = ssub.s32 %s90, %s92
    %s94 = ssub.s32 %s17, %s36
    %s95 = sor.u32 %s93, %s94
    %p96 = scmp.eq.s32.totalorder %s95, 0
    %s98 = sadd.s32 %s97, 1
    %s99 = scalar_select %p96, %s97, %s98
    %p102 = pneg %p96
    %p103 = scmp.eq.s32.totalorder %s10, 3
    %p104 = por %p102, %p103
    %p105 = scmp.ne.s32.totalorder %s97, %s100
    %p106 = scmp.eq.s32.totalorder %s10, 0
    %p107 = por %p105, %p106
    %p108 = scmp.ne.s32.totalorder %s97, %s100
    %p109 = scmp.eq.s32.totalorder %s15, 3
    %p110 = por %p108, %p109
    %p111 = scmp.ne.s32.totalorder %s100, %s101
    %p112 = scmp.eq.s32.totalorder %s15, 0
    %p113 = por %p111, %p112
    %p114 = scmp.ne.s32.totalorder %s100, %s101
    %p115 = scmp.eq.s32.totalorder %s16, 3
    %p116 = por %p114, %p115
    %p118 = scmp.ne.s32.totalorder %s101, %s117
    %p119 = scmp.eq.s32.totalorder %s16, 0
    %p120 = por %p118, %p119
    %s121 = ssub.s32 %s18, %s32
    %s122 = ssub.s32 %s19, %s28
    %s123 = sor.u32 %s121, %s122
    %s124 = ssub.s32 %s17, %s36
    %s125 = sor.u32 %s123, %s124
    %p126 = scmp.eq.s32.totalorder %s125, 0
    %s128 = sadd.s32 %s127, 1
    %s129 = scalar_select %p126, %s127, %s128
    %p132 = pneg %p126
    %p133 = scmp.eq.s32.totalorder %s10, 3
    %p134 = por %p132, %p133
    %p135 = scmp.ne.s32.totalorder %s127, %s130
    %p136 = scmp.eq.s32.totalorder %s10, 0
    %p137 = por %p135, %p136
    %p138 = scmp.ne.s32.totalorder %s127, %s130
    %p139 = scmp.eq.s32.totalorder %s15, 3
    %p140 = por %p138, %p139
    %p141 = scmp.ne.s32.totalorder %s130, %s131
    %p142 = scmp.eq.s32.totalorder %s15, 0
    %p143 = por %p141, %p142
    %p144 = scmp.ne.s32.totalorder %s130, %s131
    %p145 = scmp.eq.s32.totalorder %s16, 3
    %p146 = por %p144, %p145
    %p148 = scmp.ne.s32.totalorder %s131, %s147
    %p149 = scmp.eq.s32.totalorder %s16, 0
    %p150 = por %p148, %p149
    %p151 = scmp.le.s32.totalorder 1, %s10
    %p152 = scmp.lt.s32.totalorder %s10, 5
    %p153 = pnand %p151, %p152
    %p154 = pneg %p153
    // Predicated region
    $region9: #{down_forward.4} parent=5 // pred_check
      _
    $region10: #{down_forward.4} parent=5 // pred_check_branch
      %156 = sbr.rel (%p153) target = $region12
    $region11: #{down_forward.4} parent=5 // pred_region
      %s157 = ssub.s32 %s10, 1
      // Predicated region
      $region13: #{down_forward.4} parent=11 // pred_check
        %p158 = pneg %p81
      $region14: #{down_forward.4} parent=11 // pred_check_branch
        %160 = sbr.rel (%p158) target = $region16
      $region15: #{down_forward.4} parent=11 // pred_region
        %p161 = scmp.lt.s32.totalorder %s20, 0
        %s162 = scalar_select %p161, %s20, 0
        %s163 = smul.addr %s162, 2
        %s164 = scalar_lea.vmem %s1, %s163
      $region16: #{down_forward.4} parent=11 // pred_fallthru
        _
    $region12: #{down_forward.4} parent=5 // pred_fallthru
      _
    %p165 = scmp.lt.s32.totalorder %s10, 4
    // Predicated region
    $region17: #{down_forward.4} parent=5 // pred_check
      %p166 = pneg %p165
    $region18: #{down_forward.4} parent=5 // pred_check_branch
      %168 = sbr.rel (%p166) target = $region20
    $region19: #{down_forward.4} parent=5 // pred_region
      // Predicated region
      $region21: #{down_forward.4} parent=19 // pred_check
        %p169 = pneg %p49
      $region22: #{down_forward.4} parent=19 // pred_check_branch
        %171 = sbr.rel (%p169) target = $region24
      $region23: #{down_forward.4} parent=19 // pred_region
        %p172 = scmp.lt.s32.totalorder %s18, 1
        %s173 = scalar_select %p172, %s18, 1
        %s174 = smul.addr %s173, 16
        %s175 = smul.addr %s174, 4
        %s176 = scalar_lea.vmem %s0, %s175
      $region24: #{down_forward.4} parent=19 // pred_fallthru
        _
    $region20: #{down_forward.4} parent=5 // pred_fallthru
      _
    %p177 = scmp.le.s32.totalorder 1, %s10
    %p178 = scmp.lt.s32.totalorder %s10, 5
    %p179 = pnand %p177, %p178
    %p180 = pneg %p179
    // Predicated region
    $region25: #{down_forward.4} parent=5 // pred_check
      _
    $region26: #{down_forward.4} parent=5 // pred_check_branch
      %182 = sbr.rel (%p179) target = $region28
    $region27: #{down_forward.4} parent=5 // pred_region
      %s183 = ssub.s32 %s10, 1
      %p184 = scmp.lt.s32.totalorder %s21, 1
      %s185 = scalar_select %p184, %s21, 1
      %s186 = smul.addr %s185, 16
      %s187 = smul.addr %s186, 4
      %s188 = scalar_lea.vmem %s0, %s187
      %p189 = pneg %p55
      %p190 = pneg %p52
      %p191 = scmp.lt.s32.totalorder %s20, 0
      %s192 = scalar_select %p191, %s20, 0
      %s193 = smul.addr %s192, 2
      %s194 = scalar_lea.vmem %s1, %s193
      %p195 = pneg %p81
      %p196 = pneg %p78
      %p197 = pneg %p113
      %p198 = pneg %p110
      %s199 = smul.u32 %s21, 2
      %s200 = sadd.s32 %s199, %s22
      %s201 = smul.u32 4, %s200
      %p202 = scmp.lt.s32.totalorder %s201, 15
      %s203 = scalar_select %p202, %s201, 15
      %p204 = scmp.lt.s32.totalorder %s20, 0
      %s205 = scalar_select %p204, %s20, 0
      %s206 = sadd.s32 %s205, %s203
      %s207 = smul.addr %s206, 8
      %s208 = scalar_lea.vmem %s2, %s207
      %p209 = pneg %p143
      %p210 = pneg %p140
      %p211 = scmp.lt.s32.totalorder %s21, 1
      %s212 = scalar_select %p211, %s21, 1
      %p213 = scmp.lt.s32.totalorder %s22, 1
      %s214 = scalar_select %p213, %s22, 1
      %p215 = scmp.lt.s32.totalorder %s20, 0
      %s216 = scalar_select %p215, %s20, 0
      %s217 = sadd.s32 %s216, %s214
      %s218 = smul.addr %s212, 2
      %s219 = sadd.s32 %s217, %s218
      %s220 = smul.addr %s219, 2
      %s221 = scalar_lea.vmem %s3, %s220
      %p222 = scmp.lt.s32.totalorder %s21, 1
      %s223 = scalar_select %p222, %s21, 1
      %s224 = smul.addr %s223, 16
      %s225 = smul.addr %s224, 4
      %s226 = scalar_lea.vmem %s0, %s225
      %p227 = scmp.lt.s32.totalorder %s20, 0
      %s228 = scalar_select %p227, %s20, 0
      %s229 = smul.addr %s228, 2
      %s230 = scalar_lea.vmem %s1, %s229
      %s231 = smul.u32 %s21, 2
      %s232 = sadd.s32 %s231, %s22
      %s233 = smul.u32 4, %s232
      %p234 = scmp.lt.s32.totalorder %s233, 15
      %s235 = scalar_select %p234, %s233, 15
      %p236 = scmp.lt.s32.totalorder %s20, 0
      %s237 = scalar_select %p236, %s20, 0
      %s238 = sadd.s32 %s237, %s235
      %s239 = smul.addr %s238, 8
      %s240 = scalar_lea.vmem %s2, %s239
      %s241 = smul.u32 %s21, 2
      %s242 = sadd.s32 %s241, %s22
      %s243 = smul.u32 4, %s242
      %p244 = scmp.lt.s32.totalorder %s21, 1
      %s245 = scalar_select %p244, %s21, 1
      %p246 = scmp.lt.s32.totalorder %s22, 1
      %s247 = scalar_select %p246, %s22, 1
      %p248 = scmp.lt.s32.totalorder %s20, 0
      %s249 = scalar_select %p248, %s20, 0
      %s250 = sadd.s32 %s249, %s247
      %s251 = smul.addr %s245, 2
      %s252 = sadd.s32 %s250, %s251
      %s253 = smul.addr %s252, 2
      %s254 = scalar_lea.vmem %s3, %s253
      %s256 = smul.u32 %s22, 4
      %s257 = smul.u32 %s256, 2
      %s258 = smul.addr %s257, 4
      %s259 = scalar_lea.vmem %s226, %s258
      %v260 = vld [vmem:[%s259] sm:$0xf]
      %v261 = vld [vmem:[%s259 + $0x4] sm:$0x1]
      %v262 = vld [vmem:[%s259 + $0x8] sm:$0xf]
      %v263 = vld [vmem:[%s259 + $0xc] sm:$0x1]
      %v264 = vld [vmem:[%s259 + $0x10] sm:$0xf]
      %v265 = vld [vmem:[%s259 + $0x14] sm:$0x1]
      %v266 = vld [vmem:[%s259 + $0x18] sm:$0xf]
      %v267 = vld [vmem:[%s259 + $0x1c] sm:$0x1]
      %s268 = scalar_lea.vmem [#allocation2], 8
      %vm269 = vcmask 27648
      %270 = vst.msk [vmem:[%s268] sm:$0xf] %vm269, %v260
      %vm271 = vcmask 24576
      %272 = vst.msk [vmem:[%s268 + $0x4] sm:$0x1] %vm271, %v261
      %273 = vst.msk [vmem:[%s268 + $0x8] sm:$0xf] %vm269, %v262
      %274 = vst.msk [vmem:[%s268 + $0xc] sm:$0x1] %vm271, %v263
      %275 = vst.msk [vmem:[%s268 + $0x10] sm:$0xf] %vm269, %v264
      %276 = vst.msk [vmem:[%s268 + $0x14] sm:$0x1] %vm271, %v265
      %277 = vst.msk [vmem:[%s268 + $0x18] sm:$0xf] %vm269, %v266
      %278 = vst.msk [vmem:[%s268 + $0x1c] sm:$0x1] %vm271, %v267
      %s279 = ssub.s32 %s256, 1
      %p280 = scmp.gt.s32.totalorder %s279, 0
      %s281 = scalar_select %p280, %s279, 0
      %s282 = smul.u32 %s281, 2
      %s283 = smul.addr %s282, 4
      %s284 = scalar_lea.vmem %s226, %s283
      %v285 = vld [vmem:[%s284] sm:$0xf]
      %v286 = vld [vmem:[%s284 + $0x4] sm:$0x1]
      %287 = vst.msk [vmem:[#allocation2] sm:$0xf] %vm269, %v285
      %288 = vst.msk [vmem:[#allocation2 + $0x4] sm:$0x1] %vm271, %v286
      %s289 = sadd.s32 %s256, 4
      %p290 = scmp.lt.s32.totalorder %s289, 7
      %s291 = scalar_select %p290, %s289, 7
      %s292 = smul.u32 %s291, 2
      %s293 = smul.addr %s292, 4
      %s294 = scalar_lea.vmem %s226, %s293
      %v295 = vld [vmem:[%s294] sm:$0xf]
      %v296 = vld [vmem:[%s294 + $0x4] sm:$0x1]
      %s297 = scalar_lea.vmem [#allocation2], 40
      %298 = vst.msk [vmem:[%s297] sm:$0xf] %vm269, %v295
      %299 = vst.msk [vmem:[%s297 + $0x4] sm:$0x1] %vm271, %v296
      %p300 = scmp.eq.s32.totalorder %s22, 0
      // Predicated region
      $region29: #{down_forward.4} parent=27 // pred_check
        %p301 = pneg %p300
      $region30: #{down_forward.4} parent=27 // pred_check_branch
        %303 = sbr.rel (%p301) target = $region32
      $region31: #{down_forward.4} parent=27 // pred_region
        %304 = vst.msk [vmem:[#allocation2] sm:$0xf] %vm269, 0
        %305 = vst.msk [vmem:[#allocation2 + $0x4] sm:$0x1] %vm271, 0
      $region32: #{down_forward.4} parent=27 // pred_fallthru
        _
      %p306 = scmp.eq.s32.totalorder %s22, 1
      // Predicated region
      $region33: #{down_forward.4} parent=27 // pred_check
        %p307 = pneg %p306
      $region34: #{down_forward.4} parent=27 // pred_check_branch
        %309 = sbr.rel (%p307) target = $region36
      $region35: #{down_forward.4} parent=27 // pred_region
        %310 = vst.msk [vmem:[%s297] sm:$0xf] %vm269, 0
        %311 = vst.msk [vmem:[%s297 + $0x4] sm:$0x1] %vm271, 0
      $region36: #{down_forward.4} parent=27 // pred_fallthru
        _
      %v312 = vld [vmem:[#allocation2] sm:$0xf]
      %v313 = vld [vmem:[#allocation2 + $0x8] sm:$0xf]
      %v314 = vld [vmem:[#allocation2 + $0x10] sm:$0xf]
      %v315 = vld [vmem:[#allocation2 + $0x18] sm:$0xf]
      %v316 = vld [vmem:[%s230] sm:$0x3]
      %v317 = vld [vmem:[#allocation2 + $0x4] sm:$0x1]
      %v318 = vld [vmem:[#allocation2 + $0xc] sm:$0x1]
      %v319 = vld [vmem:[#allocation2 + $0x14] sm:$0x1]
      %v320 = vld [vmem:[#allocation2 + $0x1c] sm:$0x1]
      %vm321 = vsmask.f32 3328
      %vm322 = vsmask.f32 7440
      %vm323 = vmor %vm321, %vm322
      %v325 = vshrl.u32 %v312, 16
      %v327 = vrot.slane %v325, 4
      %v328 = vshll.u32 %v312, 16
      %v330 = vrot.slane %v328, 5
      %v331 = vor.u32 %v327, %v330
      %v332 = vrot.slane %v331, 4
      %v334 = vshll.u32 %v317, 16
      %v336 = vrot.slane %v334, 5
      %v337 = vsel %vm323, %v332, %v336
      %v339 = vshrl.u32 %v313, 16
      %v341 = vrot.slane %v339, 4
      %v342 = vshll.u32 %v313, 16
      %v344 = vrot.slane %v342, 5
      %v345 = vor.u32 %v341, %v344
      %v346 = vrot.slane %v345, 4
      %v348 = vshll.u32 %v318, 16
      %v350 = vrot.slane %v348, 5
      %v351 = vsel %vm323, %v346, %v350
      %v353 = vshrl.u32 %v314, 16
      %v355 = vrot.slane %v353, 4
      %v356 = vshll.u32 %v314, 16
      %v358 = vrot.slane %v356, 5
      %v359 = vor.u32 %v355, %v358
      %v360 = vrot.slane %v359, 4
      %v362 = vshll.u32 %v319, 16
      %v364 = vrot.slane %v362, 5
      %v365 = vsel %vm323, %v360, %v364
      %v367 = vshrl.u32 %v315, 16
      %v369 = vrot.slane %v367, 4
      %v370 = vshll.u32 %v315, 16
      %v372 = vrot.slane %v370, 5
      %v373 = vor.u32 %v369, %v372
      %v374 = vrot.slane %v373, 4
      %v376 = vshll.u32 %v320, 16
      %v378 = vrot.slane %v376, 5
      %v379 = vsel %vm323, %v374, %v378
      %s380 = scalar_lea.vmem %s230, 2
      %v381 = vld [vmem:[%s380] sm:$0x3]
      %v382 = vunpack.c.l.b16 %v337
      %v383 = vunpack.c.l.b16 %v351
      %v384 = vunpack.c.l.b16 %v365
      %v385 = vunpack.c.l.b16 %v379
      %v386 = vpack.c.b16 %v383, %v382
      %v387 = vpack.c.b16 %v385, %v384
      %vm388 = vcmask 31744
      %v390 = vsel %vm388, %v386, 0
      %v393 = vsel %vm388, %v387, 0
      %vm395 = vcmask 1041408
      %v397 = vsel %vm395, %v381, 0
      %399 = vmatpush.bf16.msra.mxu0 0
      %400 = vmatpush.bf16.msra.mxu0 0
      %401 = vmatpush.bf16.msra.mxu0 0
      %402 = vmatpush.bf16.msra.mxu0 0
      %403 = vmatpush.bf16.msra.mxu0 0
      %404 = vmatpush.bf16.msra.mxu0 0
      %405 = vmatpush.bf16.msra.mxu0 0
      %406 = vmatpush.bf16.msra.mxu0 %v397
      %407 = vmatmul.bf16.gmra.mxu0 %v390
      %v408 = vpop.f32.mrf.mxu0
      %v409 = vadd.f32 0.0, %v408
      %v410 = vpop.f32.mrf.mxu0
      %v411 = vadd.f32 0.0, %v410
      %412 = vmatmul.bf16.gmra.mxu0 %v393
      %v413 = vpop.f32.mrf.mxu0
      %v414 = vadd.f32 0.0, %v413
      %v415 = vpop.f32.mrf.mxu0
      %v416 = vadd.f32 0.0, %v415
      %417 = vdwg.mxu0
      %v422 = vunpack.c.l.b16 %v312
      %v423 = vunpack.c.l.b16 %v313
      %v424 = vunpack.c.l.b16 %v314
      %v425 = vunpack.c.l.b16 %v315
      %v426 = vpack.c.b16 %v423, %v422
      %v427 = vpack.c.b16 %v425, %v424
      %v429 = vsel %vm388, %v426, 0
      %v432 = vsel %vm388, %v427, 0
      %v435 = vsel %vm395, %v316, 0
      %437 = vmatpush.bf16.msra.mxu0 0
      %438 = vmatpush.bf16.msra.mxu0 0
      %439 = vmatpush.bf16.msra.mxu0 0
      %440 = vmatpush.bf16.msra.mxu0 0
      %441 = vmatpush.bf16.msra.mxu0 0
      %442 = vmatpush.bf16.msra.mxu0 0
      %443 = vmatpush.bf16.msra.mxu0 0
      %444 = vmatpush.bf16.msra.mxu0 %v435
      %445 = vmatmul.bf16.gmra.mxu0 %v429
      %v446 = vpop.f32.mrf.mxu0
      %v447 = vadd.f32 %v409, %v446
      %v448 = vpop.f32.mrf.mxu0
      %v449 = vadd.f32 %v411, %v448
      %450 = vmatmul.bf16.gmra.mxu0 %v432
      %v451 = vpop.f32.mrf.mxu0
      %v452 = vadd.f32 %v414, %v451
      %v453 = vpop.f32.mrf.mxu0
      %v454 = vadd.f32 %v416, %v453
      %455 = vdwg.mxu0
      %v456 = vld [vmem:[#allocation2] sm:$0xe]
      %v457 = vld [vmem:[#allocation2 + $0x8] sm:$0xe]
      %v458 = vld [vmem:[#allocation2 + $0x10] sm:$0xe]
      %v459 = vld [vmem:[#allocation2 + $0x18] sm:$0xe]
      %vm468 = vcmask 1042432
      %vm469 = vcmask 1046532
      %vm470 = vmor %vm468, %vm469
      %v471 = vrot.slane %v456, 5
      %v472 = vrot.slane %v471, 4
      %v473 = vrot.slane %v317, 5
      %v474 = vsel %vm470, %v472, %v473
      %v475 = vrot.slane %v457, 5
      %v476 = vrot.slane %v475, 4
      %v477 = vrot.slane %v318, 5
      %v478 = vsel %vm470, %v476, %v477
      %v479 = vrot.slane %v458, 5
      %v480 = vrot.slane %v479, 4
      %v481 = vrot.slane %v319, 5
      %v482 = vsel %vm470, %v480, %v481
      %v483 = vrot.slane %v459, 5
      %v484 = vrot.slane %v483, 4
      %v485 = vrot.slane %v320, 5
      %v486 = vsel %vm470, %v484, %v485
      %s487 = scalar_lea.vmem %s230, 4
      %v488 = vld [vmem:[%s487] sm:$0x3]
      %v489 = vunpack.c.l.b16 %v474
      %v490 = vunpack.c.l.b16 %v478
      %v491 = vunpack.c.l.b16 %v482
      %v492 = vunpack.c.l.b16 %v486
      %v493 = vpack.c.b16 %v490, %v489
      %v494 = vpack.c.b16 %v492, %v491
      %v496 = vsel %vm388, %v493, 0
      %v499 = vsel %vm388, %v494, 0
      %v502 = vsel %vm395, %v488, 0
      %504 = vmatpush.bf16.msra.mxu0 0
      %505 = vmatpush.bf16.msra.mxu0 0
      %506 = vmatpush.bf16.msra.mxu0 0
      %507 = vmatpush.bf16.msra.mxu0 0
      %508 = vmatpush.bf16.msra.mxu0 0
      %509 = vmatpush.bf16.msra.mxu0 0
      %510 = vmatpush.bf16.msra.mxu0 0
      %511 = vmatpush.bf16.msra.mxu0 %v502
      %512 = vmatmul.bf16.gmra.mxu0 %v496
      %v513 = vpop.f32.mrf.mxu0
      %v514 = vadd.f32 0.0, %v513
      %v515 = vpop.f32.mrf.mxu0
      %v516 = vadd.f32 0.0, %v515
      %517 = vmatmul.bf16.gmra.mxu0 %v499
      %v518 = vpop.f32.mrf.mxu0
      %v519 = vadd.f32 0.0, %v518
      %v520 = vpop.f32.mrf.mxu0
      %v521 = vadd.f32 0.0, %v520
      %522 = vdwg.mxu0
      %v523 = vadd.f32 %v447, %v514
      %v524 = vadd.f32 %v449, %v516
      %v525 = vadd.f32 %v452, %v519
      %v526 = vadd.f32 %v454, %v521
      %v527 = vld [vmem:[%s268] sm:$0xf]
      %v528 = vld [vmem:[%s268 + $0x8] sm:$0xf]
      %v529 = vld [vmem:[%s268 + $0x10] sm:$0xf]
      %v530 = vld [vmem:[%s268 + $0x18] sm:$0xf]
      %s531 = scalar_lea.vmem %s230, 6
      %v532 = vld [vmem:[%s531] sm:$0x3]
      %v537 = vunpack.c.l.b16 %v527
      %v538 = vunpack.c.l.b16 %v528
      %v539 = vunpack.c.l.b16 %v529
      %v540 = vunpack.c.l.b16 %v530
      %v541 = vpack.c.b16 %v538, %v537
      %v542 = vpack.c.b16 %v540, %v539
      %v544 = vsel %vm388, %v541, 0
      %v547 = vsel %vm388, %v542, 0
      %v550 = vsel %vm395, %v532, 0
      %552 = vmatpush.bf16.msra.mxu0 0
      %553 = vmatpush.bf16.msra.mxu0 0
      %554 = vmatpush.bf16.msra.mxu0 0
      %555 = vmatpush.bf16.msra.mxu0 0
      %556 = vmatpush.bf16.msra.mxu0 0
      %557 = vmatpush.bf16.msra.mxu0 0
      %558 = vmatpush.bf16.msra.mxu0 0
      %559 = vmatpush.bf16.msra.mxu0 %v550
      %560 = vmatmul.bf16.gmra.mxu0 %v544
      %v561 = vpop.f32.mrf.mxu0
      %v562 = vadd.f32 0.0, %v561
      %v563 = vpop.f32.mrf.mxu0
      %v564 = vadd.f32 0.0, %v563
      %565 = vmatmul.bf16.gmra.mxu0 %v547
      %v566 = vpop.f32.mrf.mxu0
      %v567 = vadd.f32 0.0, %v566
      %v568 = vpop.f32.mrf.mxu0
      %v569 = vadd.f32 0.0, %v568
      %570 = vdwg.mxu0
      %v571 = vadd.f32 %v523, %v562
      %v572 = vadd.f32 %v524, %v564
      %v573 = vadd.f32 %v525, %v567
      %v574 = vadd.f32 %v526, %v569
      %v575 = vld [vmem:[%s268] sm:$0xf]
      %v576 = vld [vmem:[%s268 + $0x4] sm:$0x1]
      %v577 = vld [vmem:[%s268 + $0x8] sm:$0xf]
      %v578 = vld [vmem:[%s268 + $0xc] sm:$0x1]
      %v579 = vld [vmem:[%s268 + $0x10] sm:$0xf]
      %v580 = vld [vmem:[%s268 + $0x14] sm:$0x1]
      %v581 = vld [vmem:[%s268 + $0x18] sm:$0xf]
      %v582 = vld [vmem:[%s268 + $0x1c] sm:$0x1]
      %v584 = vshrl.u32 %v575, 16
      %v586 = vrot.slane %v584, 4
      %v587 = vshll.u32 %v575, 16
      %v589 = vrot.slane %v587, 5
      %v590 = vor.u32 %v586, %v589
      %v591 = vrot.slane %v590, 4
      %v593 = vshll.u32 %v576, 16
      %v595 = vrot.slane %v593, 5
      %v596 = vsel %vm323, %v591, %v595
      %v598 = vshrl.u32 %v577, 16
      %v600 = vrot.slane %v598, 4
      %v601 = vshll.u32 %v577, 16
      %v603 = vrot.slane %v601, 5
      %v604 = vor.u32 %v600, %v603
      %v605 = vrot.slane %v604, 4
      %v607 = vshll.u32 %v578, 16
      %v609 = vrot.slane %v607, 5
      %v610 = vsel %vm323, %v605, %v609
      %v612 = vshrl.u32 %v579, 16
      %v614 = vrot.slane %v612, 4
      %v615 = vshll.u32 %v579, 16
      %v617 = vrot.slane %v615, 5
      %v618 = vor.u32 %v614, %v617
      %v619 = vrot.slane %v618, 4
      %v621 = vshll.u32 %v580, 16
      %v623 = vrot.slane %v621, 5
      %v624 = vsel %vm323, %v619, %v623
      %v626 = vshrl.u32 %v581, 16
      %v628 = vrot.slane %v626, 4
      %v629 = vshll.u32 %v581, 16
      %v631 = vrot.slane %v629, 5
      %v632 = vor.u32 %v628, %v631
      %v633 = vrot.slane %v632, 4
      %v635 = vshll.u32 %v582, 16
      %v637 = vrot.slane %v635, 5
      %v638 = vsel %vm323, %v633, %v637
      %s639 = scalar_lea.vmem %s230, 8
      %v640 = vld [vmem:[%s639] sm:$0x3]
      %v641 = vunpack.c.l.b16 %v596
      %v642 = vunpack.c.l.b16 %v610
      %v643 = vunpack.c.l.b16 %v624
      %v644 = vunpack.c.l.b16 %v638
      %v645 = vpack.c.b16 %v642, %v641
      %v646 = vpack.c.b16 %v644, %v643
      %v648 = vsel %vm388, %v645, 0
      %v651 = vsel %vm388, %v646, 0
      %v654 = vsel %vm395, %v640, 0
      %656 = vmatpush.bf16.msra.mxu0 0
      %657 = vmatpush.bf16.msra.mxu0 0
      %658 = vmatpush.bf16.msra.mxu0 0
      %659 = vmatpush.bf16.msra.mxu0 0
      %660 = vmatpush.bf16.msra.mxu0 0
      %661 = vmatpush.bf16.msra.mxu0 0
      %662 = vmatpush.bf16.msra.mxu0 0
      %663 = vmatpush.bf16.msra.mxu0 %v654
      %664 = vmatmul.bf16.gmra.mxu0 %v648
      %v665 = vpop.f32.mrf.mxu0
      %v666 = vadd.f32 0.0, %v665
      %v667 = vpop.f32.mrf.mxu0
      %v668 = vadd.f32 0.0, %v667
      %669 = vmatmul.bf16.gmra.mxu0 %v651
      %v670 = vpop.f32.mrf.mxu0
      %v671 = vadd.f32 0.0, %v670
      %v672 = vpop.f32.mrf.mxu0
      %v673 = vadd.f32 0.0, %v672
      %674 = vdwg.mxu0
      %v675 = vadd.f32 %v571, %v666
      %v676 = vadd.f32 %v572, %v668
      %v677 = vadd.f32 %v573, %v671
      %v678 = vadd.f32 %v574, %v673
      %v679 = vld [vmem:[%s268] sm:$0xe]
      %v680 = vld [vmem:[%s268 + $0x8] sm:$0xe]
      %v681 = vld [vmem:[%s268 + $0x10] sm:$0xe]
      %v682 = vld [vmem:[%s268 + $0x18] sm:$0xe]
      %v691 = vrot.slane %v679, 5
      %v692 = vrot.slane %v691, 4
      %v693 = vrot.slane %v576, 5
      %v694 = vsel %vm470, %v692, %v693
      %v695 = vrot.slane %v680, 5
      %v696 = vrot.slane %v695, 4
      %v697 = vrot.slane %v578, 5
      %v698 = vsel %vm470, %v696, %v697
      %v699 = vrot.slane %v681, 5
      %v700 = vrot.slane %v699, 4
      %v701 = vrot.slane %v580, 5
      %v702 = vsel %vm470, %v700, %v701
      %v703 = vrot.slane %v682, 5
      %v704 = vrot.slane %v703, 4
      %v705 = vrot.slane %v582, 5
      %v706 = vsel %vm470, %v704, %v705
      %s707 = scalar_lea.vmem %s230, 10
      %v708 = vld [vmem:[%s707] sm:$0x3]
      %v709 = vunpack.c.l.b16 %v694
      %v710 = vunpack.c.l.b16 %v698
      %v711 = vunpack.c.l.b16 %v702
      %v712 = vunpack.c.l.b16 %v706
      %v713 = vpack.c.b16 %v710, %v709
      %v714 = vpack.c.b16 %v712, %v711
      %v716 = vsel %vm388, %v713, 0
      %v719 = vsel %vm388, %v714, 0
      %v722 = vsel %vm395, %v708, 0
      %724 = vmatpush.bf16.msra.mxu0 0
      %725 = vmatpush.bf16.msra.mxu0 0
      %726 = vmatpush.bf16.msra.mxu0 0
      %727 = vmatpush.bf16.msra.mxu0 0
      %728 = vmatpush.bf16.msra.mxu0 0
      %729 = vmatpush.bf16.msra.mxu0 0
      %730 = vmatpush.bf16.msra.mxu0 0
      %731 = vmatpush.bf16.msra.mxu0 %v722
      %732 = vmatmul.bf16.gmra.mxu0 %v716
      %v733 = vpop.f32.mrf.mxu0
      %v734 = vadd.f32 0.0, %v733
      %v735 = vpop.f32.mrf.mxu0
      %v736 = vadd.f32 0.0, %v735
      %737 = vmatmul.bf16.gmra.mxu0 %v719
      %v738 = vpop.f32.mrf.mxu0
      %v739 = vadd.f32 0.0, %v738
      %v740 = vpop.f32.mrf.mxu0
      %v741 = vadd.f32 0.0, %v740
      %742 = vdwg.mxu0
      %v743 = vadd.f32 %v675, %v734
      %v744 = vadd.f32 %v676, %v736
      %v745 = vadd.f32 %v677, %v739
      %v746 = vadd.f32 %v678, %v741
      %s747 = scalar_lea.vmem [#allocation2], 16
      %v748 = vld [vmem:[%s747] sm:$0xf]
      %v749 = vld [vmem:[%s747 + $0x8] sm:$0xf]
      %v750 = vld [vmem:[%s747 + $0x10] sm:$0xf]
      %v751 = vld [vmem:[%s747 + $0x18] sm:$0xf]
      %s752 = scalar_lea.vmem %s230, 12
      %v753 = vld [vmem:[%s752] sm:$0x3]
      %v758 = vunpack.c.l.b16 %v748
      %v759 = vunpack.c.l.b16 %v749
      %v760 = vunpack.c.l.b16 %v750
      %v761 = vunpack.c.l.b16 %v751
      %v762 = vpack.c.b16 %v759, %v758
      %v763 = vpack.c.b16 %v761, %v760
      %v765 = vsel %vm388, %v762, 0
      %v768 = vsel %vm388, %v763, 0
      %v771 = vsel %vm395, %v753, 0
      %773 = vmatpush.bf16.msra.mxu0 0
      %774 = vmatpush.bf16.msra.mxu0 0
      %775 = vmatpush.bf16.msra.mxu0 0
      %776 = vmatpush.bf16.msra.mxu0 0
      %777 = vmatpush.bf16.msra.mxu0 0
      %778 = vmatpush.bf16.msra.mxu0 0
      %779 = vmatpush.bf16.msra.mxu0 0
      %780 = vmatpush.bf16.msra.mxu0 %v771
      %781 = vmatmul.bf16.gmra.mxu0 %v765
      %v782 = vpop.f32.mrf.mxu0
      %v783 = vadd.f32 0.0, %v782
      %v784 = vpop.f32.mrf.mxu0
      %v785 = vadd.f32 0.0, %v784
      %786 = vmatmul.bf16.gmra.mxu0 %v768
      %v787 = vpop.f32.mrf.mxu0
      %v788 = vadd.f32 0.0, %v787
      %v789 = vpop.f32.mrf.mxu0
      %v790 = vadd.f32 0.0, %v789
      %791 = vdwg.mxu0
      %v792 = vadd.f32 %v743, %v783
      %v793 = vadd.f32 %v744, %v785
      %v794 = vadd.f32 %v745, %v788
      %v795 = vadd.f32 %v746, %v790
      %v796 = vld [vmem:[%s747] sm:$0xf]
      %v797 = vld [vmem:[%s747 + $0x4] sm:$0x1]
      %v798 = vld [vmem:[%s747 + $0x8] sm:$0xf]
      %v799 = vld [vmem:[%s747 + $0xc] sm:$0x1]
      %v800 = vld [vmem:[%s747 + $0x10] sm:$0xf]
      %v801 = vld [vmem:[%s747 + $0x14] sm:$0x1]
      %v802 = vld [vmem:[%s747 + $0x18] sm:$0xf]
      %v803 = vld [vmem:[%s747 + $0x1c] sm:$0x1]
      %v805 = vshrl.u32 %v796, 16
      %v807 = vrot.slane %v805, 4
      %v808 = vshll.u32 %v796, 16
      %v810 = vrot.slane %v808, 5
      %v811 = vor.u32 %v807, %v810
      %v812 = vrot.slane %v811, 4
      %v814 = vshll.u32 %v797, 16
      %v816 = vrot.slane %v814, 5
      %v817 = vsel %vm323, %v812, %v816
      %v819 = vshrl.u32 %v798, 16
      %v821 = vrot.slane %v819, 4
      %v822 = vshll.u32 %v798, 16
      %v824 = vrot.slane %v822, 5
      %v825 = vor.u32 %v821, %v824
      %v826 = vrot.slane %v825, 4
      %v828 = vshll.u32 %v799, 16
      %v830 = vrot.slane %v828, 5
      %v831 = vsel %vm323, %v826, %v830
      %v833 = vshrl.u32 %v800, 16
      %v835 = vrot.slane %v833, 4
      %v836 = vshll.u32 %v800, 16
      %v838 = vrot.slane %v836, 5
      %v839 = vor.u32 %v835, %v838
      %v840 = vrot.slane %v839, 4
      %v842 = vshll.u32 %v801, 16
      %v844 = vrot.slane %v842, 5
      %v845 = vsel %vm323, %v840, %v844
      %v847 = vshrl.u32 %v802, 16
      %v849 = vrot.slane %v847, 4
      %v850 = vshll.u32 %v802, 16
      %v852 = vrot.slane %v850, 5
      %v853 = vor.u32 %v849, %v852
      %v854 = vrot.slane %v853, 4
      %v856 = vshll.u32 %v803, 16
      %v858 = vrot.slane %v856, 5
      %v859 = vsel %vm323, %v854, %v858
      %s860 = scalar_lea.vmem %s230, 14
      %v861 = vld [vmem:[%s860] sm:$0x3]
      %v862 = vunpack.c.l.b16 %v817
      %v863 = vunpack.c.l.b16 %v831
      %v864 = vunpack.c.l.b16 %v845
      %v865 = vunpack.c.l.b16 %v859
      %v866 = vpack.c.b16 %v863, %v862
      %v867 = vpack.c.b16 %v865, %v864
      %v869 = vsel %vm388, %v866, 0
      %v872 = vsel %vm388, %v867, 0
      %v875 = vsel %vm395, %v861, 0
      %877 = vmatpush.bf16.msra.mxu0 0
      %878 = vmatpush.bf16.msra.mxu0 0
      %879 = vmatpush.bf16.msra.mxu0 0
      %880 = vmatpush.bf16.msra.mxu0 0
      %881 = vmatpush.bf16.msra.mxu0 0
      %882 = vmatpush.bf16.msra.mxu0 0
      %883 = vmatpush.bf16.msra.mxu0 0
      %884 = vmatpush.bf16.msra.mxu0 %v875
      %885 = vmatmul.bf16.gmra.mxu0 %v869
      %v886 = vpop.f32.mrf.mxu0
      %v887 = vadd.f32 0.0, %v886
      %v888 = vpop.f32.mrf.mxu0
      %v889 = vadd.f32 0.0, %v888
      %890 = vmatmul.bf16.gmra.mxu0 %v872
      %v891 = vpop.f32.mrf.mxu0
      %v892 = vadd.f32 0.0, %v891
      %v893 = vpop.f32.mrf.mxu0
      %v894 = vadd.f32 0.0, %v893
      %895 = vdwg.mxu0
      %v896 = vadd.f32 %v792, %v887
      %v897 = vadd.f32 %v793, %v889
      %v898 = vadd.f32 %v794, %v892
      %v899 = vadd.f32 %v795, %v894
      %v900 = vld [vmem:[%s747] sm:$0xe]
      %v901 = vld [vmem:[%s747 + $0x8] sm:$0xe]
      %v902 = vld [vmem:[%s747 + $0x10] sm:$0xe]
      %v903 = vld [vmem:[%s747 + $0x18] sm:$0xe]
      %v912 = vrot.slane %v900, 5
      %v913 = vrot.slane %v912, 4
      %v914 = vrot.slane %v797, 5
      %v915 = vsel %vm470, %v913, %v914
      %v916 = vrot.slane %v901, 5
      %v917 = vrot.slane %v916, 4
      %v918 = vrot.slane %v799, 5
      %v919 = vsel %vm470, %v917, %v918
      %v920 = vrot.slane %v902, 5
      %v921 = vrot.slane %v920, 4
      %v922 = vrot.slane %v801, 5
      %v923 = vsel %vm470, %v921, %v922
      %v924 = vrot.slane %v903, 5
      %v925 = vrot.slane %v924, 4
      %v926 = vrot.slane %v803, 5
      %v927 = vsel %vm470, %v925, %v926
      %s928 = scalar_lea.vmem %s230, 16
      %v929 = vld [vmem:[%s928] sm:$0x3]
      %v930 = vunpack.c.l.b16 %v915
      %v931 = vunpack.c.l.b16 %v919
      %v932 = vunpack.c.l.b16 %v923
      %v933 = vunpack.c.l.b16 %v927
      %v934 = vpack.c.b16 %v931, %v930
      %v935 = vpack.c.b16 %v933, %v932
      %v937 = vsel %vm388, %v934, 0
      %v940 = vsel %vm388, %v935, 0
      %v943 = vsel %vm395, %v929, 0
      %945 = vmatpush.bf16.msra.mxu0 0
      %946 = vmatpush.bf16.msra.mxu0 0
      %947 = vmatpush.bf16.msra.mxu0 0
      %948 = vmatpush.bf16.msra.mxu0 0
      %949 = vmatpush.bf16.msra.mxu0 0
      %950 = vmatpush.bf16.msra.mxu0 0
      %951 = vmatpush.bf16.msra.mxu0 0
      %952 = vmatpush.bf16.msra.mxu0 %v943
      %953 = vmatmul.bf16.gmra.mxu0 %v937
      %v954 = vpop.f32.mrf.mxu0
      %v955 = vadd.f32 0.0, %v954
      %v956 = vpop.f32.mrf.mxu0
      %v957 = vadd.f32 0.0, %v956
      %958 = vmatmul.bf16.gmra.mxu0 %v940
      %v959 = vpop.f32.mrf.mxu0
      %v960 = vadd.f32 0.0, %v959
      %v961 = vpop.f32.mrf.mxu0
      %v962 = vadd.f32 0.0, %v961
      %963 = vdwg.mxu0
      %v964 = vadd.f32 %v896, %v955
      %v965 = vadd.f32 %v897, %v957
      %v966 = vadd.f32 %v898, %v960
      %v967 = vadd.f32 %v899, %v962
      %968 = vst [vmem:[%s240] sm:$0xff] %v964
      %969 = vst [vmem:[%s240 + $0x8] sm:$0xff] %v965
      %970 = vst [vmem:[%s240 + $0x10] sm:$0xff] %v966
      %971 = vst [vmem:[%s240 + $0x18] sm:$0xff] %v967
      %v972 = vadd.f32 %v964, %v965
      %v973 = vadd.f32 %v972, %v966
      %v974 = vadd.f32 %v973, %v967
      %v975 = vrot.slane %v974, 4
      %v976 = vadd.f32 %v974, %v975
      %v977 = vrot.slane %v976, 2
      %v978 = vadd.f32 %v976, %v977
      %v979 = vrot.slane %v978, 1
      %v980 = vadd.f32 %v978, %v979
      %981 = vst [vmem:[%s254] sm:$0x1] %v980
      %v982 = vmul.f32 %v964, %v964
      %v983 = vmul.f32 %v965, %v965
      %v984 = vmul.f32 %v966, %v966
      %v985 = vmul.f32 %v967, %v967
      %v986 = vadd.f32 %v982, %v983
      %v987 = vadd.f32 %v986, %v984
      %v988 = vadd.f32 %v987, %v985
      %v989 = vrot.slane %v988, 4
      %v990 = vadd.f32 %v988, %v989
      %v991 = vrot.slane %v990, 2
      %v992 = vadd.f32 %v990, %v991
      %v993 = vrot.slane %v992, 1
      %v994 = vadd.f32 %v992, %v993
      %995 = vst [vmem:[%s254 + $0x1] sm:$0x1] %v994
      %s996 = smul.u32 %s21, 2
      %s997 = sadd.s32 %s996, %s22
      %s998 = smul.u32 4, %s997
      %p999 = scmp.lt.s32.totalorder %s998, 15
      %s1000 = scalar_select %p999, %s998, 15
      %p1001 = scmp.lt.s32.totalorder %s20, 0
      %s1002 = scalar_select %p1001, %s20, 0
      %s1003 = sadd.s32 %s1002, %s1000
      %s1004 = smul.addr %s1003, 8
      %s1005 = scalar_lea.vmem %s2, %s1004
      %p1006 = scmp.lt.s32.totalorder %s21, 1
      %s1007 = scalar_select %p1006, %s21, 1
      %p1008 = scmp.lt.s32.totalorder %s22, 1
      %s1009 = scalar_select %p1008, %s22, 1
      %p1010 = scmp.lt.s32.totalorder %s20, 0
      %s1011 = scalar_select %p1010, %s20, 0
      %s1012 = sadd.s32 %s1011, %s1009
      %s1013 = smul.addr %s1007, 2
      %s1014 = sadd.s32 %s1012, %s1013
      %s1015 = smul.addr %s1014, 2
      %s1016 = scalar_lea.vmem %s3, %s1015
      // Predicated region
      $region37: #{down_forward.4} parent=27 // pred_check
        %p1017 = pneg %p110
      $region38: #{down_forward.4} parent=27 // pred_check_branch
        %1019 = sbr.rel (%p1017) target = $region40
      $region39: #{down_forward.4} parent=27 // pred_region
        %s1020 = smul.u32 %s21, 2
        %s1021 = sadd.s32 %s1020, %s22
        %s1022 = smul.u32 4, %s1021
      $region40: #{down_forward.4} parent=27 // pred_fallthru
        _
      // Predicated region
      $region41: #{down_forward.4} parent=27 // pred_check
        %p1023 = pneg %p140
      $region42: #{down_forward.4} parent=27 // pred_check_branch
        %1025 = sbr.rel (%p1023) target = $region44
      $region43: #{down_forward.4} parent=27 // pred_region
        _
      $region44: #{down_forward.4} parent=27 // pred_fallthru
        _
    $region28: #{down_forward.4} parent=5 // pred_fallthru
      _
    %p1026 = scmp.le.s32.totalorder 2, %s10
    // Predicated region
    $region45: #{down_forward.4} parent=5 // pred_check
      %p1027 = pneg %p1026
    $region46: #{down_forward.4} parent=5 // pred_check_branch
      %1029 = sbr.rel (%p1027) target = $region48
    $region47: #{down_forward.4} parent=5 // pred_region
      %s1030 = ssub.s32 %s10, 2
      // Predicated region
      $region49: #{down_forward.4} parent=47 // pred_check
        %p1031 = pneg %p116
      $region50: #{down_forward.4} parent=47 // pred_check_branch
        %1033 = sbr.rel (%p1031) target = $region52
      $region51: #{down_forward.4} parent=47 // pred_region
        %s1034 = smul.u32 %s24, 2
        %s1035 = sadd.s32 %s1034, %s25
        %s1036 = smul.u32 4, %s1035
        %p1037 = scmp.lt.s32.totalorder %s1036, 15
        %s1038 = scalar_select %p1037, %s1036, 15
        %p1039 = scmp.lt.s32.totalorder %s23, 0
        %s1040 = scalar_select %p1039, %s23, 0
        %s1041 = sadd.s32 %s1040, %s1038
        %s1042 = smul.addr %s1041, 8
        %s1043 = scalar_lea.vmem %s2, %s1042
      $region52: #{down_forward.4} parent=47 // pred_fallthru
        _
      // Predicated region
      $region53: #{down_forward.4} parent=47 // pred_check
        %p1044 = pneg %p146
      $region54: #{down_forward.4} parent=47 // pred_check_branch
        %1046 = sbr.rel (%p1044) target = $region56
      $region55: #{down_forward.4} parent=47 // pred_region
        %p1047 = scmp.lt.s32.totalorder %s24, 1
        %s1048 = scalar_select %p1047, %s24, 1
        %p1049 = scmp.lt.s32.totalorder %s25, 1
        %s1050 = scalar_select %p1049, %s25, 1
        %p1051 = scmp.lt.s32.totalorder %s23, 0
        %s1052 = scalar_select %p1051, %s23, 0
        %s1053 = sadd.s32 %s1052, %s1050
        %s1054 = smul.addr %s1048, 2
        %s1055 = sadd.s32 %s1053, %s1054
        %s1056 = smul.addr %s1055, 2
        %s1057 = scalar_lea.vmem %s3, %s1056
      $region56: #{down_forward.4} parent=47 // pred_fallthru
        _
    $region48: #{down_forward.4} parent=5 // pred_fallthru
      _
  $region6: #{down_forward.4} parent=0 // loop_footer
    %s14 = sadd.s32 1, %s10
  $region7: #{down_forward.4} parent=0 // loop_footer_branch
    %9 = sbr.rel target = $region3
  $region8: #{down_forward.4} parent=0 // loop_exit
    _

// kernel: down_forward.7
$region0: #{down_forward.7}
  #allocation0 [shape = 'u32[]', space=smem, size = 0x4, offset = 0x4, fixed_abs, tag = 'smem constant byte address 0x4 - core index']
  #allocation1 [shape = 'u32[72,128]{1,0:T(1,128)}', space=vmem, size = 0x9000, scoped, tag = 'internal scratch']
  %s0 = inlined_call_operand.vmem [shape: f32[128,128], index: 0, kind: input, shape index: {}]
  %s1 = inlined_call_operand.vmem [shape: f32[1,128], index: 1, kind: input, shape index: {}]
  %s2 = inlined_call_operand.vmem [shape: f32[1,128], index: 2, kind: input, shape index: {}]
  %s3 = inlined_call_operand.vmem [shape: f32[2,8,10,128], index: 3, kind: output, shape index: {}]
  %s4 = sld [smem:[#allocation0]]
  $region45: #{down_forward.7} parent=0
    _
  %s6 = ssub.s32 1, %s4
  %s7 = scalar_select 0, %s6, %s4
  loop: start=0, step=1, limit=6
  $region2: #{down_forward.7} parent=0 // loop_pre_header
    _
  $region3: #{down_forward.7} parent=0 // loop_header
    %s9 = sphi 0, %s13
    %p10 = scmp.ge.s32.totalorder %s9, 6
    %s16 = sphi 0, %s28
    %s17 = sphi 0, %s24
    %s18 = sphi 0, %s16
    %s19 = sphi 0, %s17
    %s20 = sphi 0, %s18
    %s21 = sphi 0, %s19
    %s35 = sphi 0, %s37
    %s38 = sphi 0, %s35
    %s39 = sphi 0, %s38
    %s55 = sphi 0, %s39
    %s59 = sphi 0, %s59
    %s61 = sphi 0, %s59
    %s62 = sphi 0, %s61
    %s76 = sphi 0, %s62
    %s80 = sphi 0, %s80
    %s82 = sphi 0, %s80
    %s83 = sphi 0, %s82
    %s97 = sphi 0, %s83
    %s105 = sphi 0, %s107
    %s108 = sphi 0, %s105
    %s109 = sphi 0, %s108
    %s125 = sphi 0, %s109
  $region4: #{down_forward.7} parent=0 // loop_header_branch
    %12 = sbr.rel (%p10) target = $region8
  $region5: #{down_forward.7} parent=0 // loop_body
    %s14 = ssub.s32 %s9, 1
    %s15 = ssub.s32 %s9, 2
    %s22 = sadd.s32 1, %s17
    %p23 = scmp.ge.s32.totalorder %s22, 2
    %s24 = scalar_select %p23, 0, %s22
    %s25 = sadd.s32 1, %s16
    %s26 = scalar_select %p23, %s25, %s16
    %p27 = scmp.ge.s32.totalorder %s26, 2
    %s28 = scalar_select %p27, 0, %s26
    %s29 = smul.u32 %s16, 2
    %s30 = sadd.s32 %s29, %s17
    %s31 = smul.u32 %s28, 2
    %s32 = sadd.s32 %s31, %s24
    %s33 = ssub.s32 %s30, %s32
    %p34 = scmp.eq.s32.totalorder %s33, 0
    %s36 = sadd.s32 %s35, 1
    %s37 = scalar_select %p34, %s35, %s36
    %p40 = pneg %p34
    %p41 = scmp.eq.s32.totalorder %s9, 3
    %p42 = por %p40, %p41
    %p43 = scmp.ne.s32.totalorder %s35, %s38
    %p44 = scmp.eq.s32.totalorder %s9, 0
    %p45 = por %p43, %p44
    %p46 = scmp.ne.s32.totalorder %s35, %s38
    %p47 = scmp.eq.s32.totalorder %s14, 3
    %p48 = por %p46, %p47
    %p49 = scmp.ne.s32.totalorder %s38, %s39
    %p50 = scmp.eq.s32.totalorder %s14, 0
    %p51 = por %p49, %p50
    %p52 = scmp.ne.s32.totalorder %s38, %s39
    %p53 = scmp.eq.s32.totalorder %s15, 3
    %p54 = por %p52, %p53
    %p56 = scmp.ne.s32.totalorder %s39, %s55
    %p57 = scmp.eq.s32.totalorder %s15, 0
    %p58 = por %p56, %p57
    %s60 = sadd.s32 %s59, 1
    %p63 = scmp.eq.s32.totalorder %s9, 3
    %p64 = scmp.ne.s32.totalorder %s59, %s61
    %p65 = scmp.eq.s32.totalorder %s9, 0
    %p66 = por %p64, %p65
    %p67 = scmp.ne.s32.totalorder %s59, %s61
    %p68 = scmp.eq.s32.totalorder %s14, 3
    %p69 = por %p67, %p68
    %p70 = scmp.ne.s32.totalorder %s61, %s62
    %p71 = scmp.eq.s32.totalorder %s14, 0
    %p72 = por %p70, %p71
    %p73 = scmp.ne.s32.totalorder %s61, %s62
    %p74 = scmp.eq.s32.totalorder %s15, 3
    %p75 = por %p73, %p74
    %p77 = scmp.ne.s32.totalorder %s62, %s76
    %p78 = scmp.eq.s32.totalorder %s15, 0
    %p79 = por %p77, %p78
    %s81 = sadd.s32 %s80, 1
    %p84 = scmp.eq.s32.totalorder %s9, 3
    %p85 = scmp.ne.s32.totalorder %s80, %s82
    %p86 = scmp.eq.s32.totalorder %s9, 0
    %p87 = por %p85, %p86
    %p88 = scmp.ne.s32.totalorder %s80, %s82
    %p89 = scmp.eq.s32.totalorder %s14, 3
    %p90 = por %p88, %p89
    %p91 = scmp.ne.s32.totalorder %s82, %s83
    %p92 = scmp.eq.s32.totalorder %s14, 0
    %p93 = por %p91, %p92
    %p94 = scmp.ne.s32.totalorder %s82, %s83
    %p95 = scmp.eq.s32.totalorder %s15, 3
    %p96 = por %p94, %p95
    %p98 = scmp.ne.s32.totalorder %s83, %s97
    %p99 = scmp.eq.s32.totalorder %s15, 0
    %p100 = por %p98, %p99
    %s101 = ssub.s32 %s16, %s28
    %s102 = ssub.s32 %s17, %s24
    %s103 = sor.u32 %s101, %s102
    %p104 = scmp.eq.s32.totalorder %s103, 0
    %s106 = sadd.s32 %s105, 1
    %s107 = scalar_select %p104, %s105, %s106
    %p110 = pneg %p104
    %p111 = scmp.eq.s32.totalorder %s9, 3
    %p112 = por %p110, %p111
    %p113 = scmp.ne.s32.totalorder %s105, %s108
    %p114 = scmp.eq.s32.totalorder %s9, 0
    %p115 = por %p113, %p114
    %p116 = scmp.ne.s32.totalorder %s105, %s108
    %p117 = scmp.eq.s32.totalorder %s14, 3
    %p118 = por %p116, %p117
    %p119 = scmp.ne.s32.totalorder %s108, %s109
    %p120 = scmp.eq.s32.totalorder %s14, 0
    %p121 = por %p119, %p120
    %p122 = scmp.ne.s32.totalorder %s108, %s109
    %p123 = scmp.eq.s32.totalorder %s15, 3
    %p124 = por %p122, %p123
    %p126 = scmp.ne.s32.totalorder %s109, %s125
    %p127 = scmp.eq.s32.totalorder %s15, 0
    %p128 = por %p126, %p127
    %p129 = scmp.le.s32.totalorder 1, %s9
    %p130 = scmp.lt.s32.totalorder %s9, 5
    %p131 = pnand %p129, %p130
    %p132 = pneg %p131
    // Predicated region
    $region9: #{down_forward.7} parent=5 // pred_check
      _
    $region10: #{down_forward.7} parent=5 // pred_check_branch
      %134 = sbr.rel (%p131) target = $region12
    $region11: #{down_forward.7} parent=5 // pred_region
      %s135 = ssub.s32 %s9, 1
      // Predicated region
      $region13: #{down_forward.7} parent=11 // pred_check
        %p136 = pneg %p72
      $region14: #{down_forward.7} parent=11 // pred_check_branch
        %138 = sbr.rel (%p136) target = $region16
      $region15: #{down_forward.7} parent=11 // pred_region
        _
      $region16: #{down_forward.7} parent=11 // pred_fallthru
        _
      // Predicated region
      $region17: #{down_forward.7} parent=11 // pred_check
        %p139 = pneg %p93
      $region18: #{down_forward.7} parent=11 // pred_check_branch
        %141 = sbr.rel (%p139) target = $region20
      $region19: #{down_forward.7} parent=11 // pred_region
        _
      $region20: #{down_forward.7} parent=11 // pred_fallthru
        _
    $region12: #{down_forward.7} parent=5 // pred_fallthru
      _
    %p142 = scmp.lt.s32.totalorder %s9, 4
    // Predicated region
    $region21: #{down_forward.7} parent=5 // pred_check
      %p143 = pneg %p142
    $region22: #{down_forward.7} parent=5 // pred_check_branch
      %145 = sbr.rel (%p143) target = $region24
    $region23: #{down_forward.7} parent=5 // pred_region
      // Predicated region
      $region25: #{down_forward.7} parent=23 // pred_check
        %p146 = pneg %p45
      $region26: #{down_forward.7} parent=23 // pred_check_branch
        %148 = sbr.rel (%p146) target = $region28
      $region27: #{down_forward.7} parent=23 // pred_region
        %s149 = smul.u32 %s16, 2
        %s150 = sadd.s32 %s149, %s17
        %s151 = smul.u32 4, %s150
        %p152 = scmp.lt.s32.totalorder %s151, 15
        %s153 = scalar_select %p152, %s151, 15
        %s154 = smul.addr %s153, 8
        %s155 = scalar_lea.vmem %s0, %s154
        %s156 = smul.u32 %s16, 2
        %s157 = sadd.s32 %s156, %s17
        %s158 = smul.u32 4, %s157
      $region28: #{down_forward.7} parent=23 // pred_fallthru
        _
    $region24: #{down_forward.7} parent=5 // pred_fallthru
      _
    %p159 = scmp.le.s32.totalorder 1, %s9
    %p160 = scmp.lt.s32.totalorder %s9, 5
    %p161 = pnand %p159, %p160
    %p162 = pneg %p161
    // Predicated region
    $region29: #{down_forward.7} parent=5 // pred_check
      _
    $region30: #{down_forward.7} parent=5 // pred_check_branch
      %164 = sbr.rel (%p161) target = $region32
    $region31: #{down_forward.7} parent=5 // pred_region
      %s165 = ssub.s32 %s9, 1
      %s166 = smul.u32 %s18, 2
      %s167 = sadd.s32 %s166, %s19
      %s168 = smul.u32 4, %s167
      %p169 = scmp.lt.s32.totalorder %s168, 15
      %s170 = scalar_select %p169, %s168, 15
      %s171 = smul.addr %s170, 8
      %s172 = scalar_lea.vmem %s0, %s171
      %p173 = pneg %p51
      %p174 = pneg %p48
      %p175 = pneg %p72
      %p176 = pneg %p69
      %p177 = pneg %p93
      %p178 = pneg %p90
      %p179 = pneg %p121
      %p180 = pneg %p118
      %s181 = smul.u32 4, %s19
      %p182 = scmp.lt.s32.totalorder %s18, 1
      %s183 = scalar_select %p182, %s18, 1
      %p184 = scmp.lt.s32.totalorder %s181, 7
      %s185 = scalar_select %p184, %s181, 7
      %s186 = smul.addr %s185, 2
      %s187 = smul.addr %s183, 16
      %s188 = sadd.s32 %s186, %s187
      %s189 = smul.addr %s188, 8
      %s190 = scalar_lea.vmem %s3, %s189
      %s191 = smul.u32 %s18, 2
      %s192 = sadd.s32 %s191, %s19
      %s193 = smul.u32 4, %s192
      %p194 = scmp.lt.s32.totalorder %s193, 15
      %s195 = scalar_select %p194, %s193, 15
      %s196 = smul.addr %s195, 8
      %s197 = scalar_lea.vmem %s0, %s196
      %s198 = smul.u32 %s18, 2
      %s199 = sadd.s32 %s198, %s19
      %s200 = smul.u32 4, %s199
      %s201 = smul.u32 4, %s19
      %p202 = scmp.lt.s32.totalorder %s18, 1
      %s203 = scalar_select %p202, %s18, 1
      %p204 = scmp.lt.s32.totalorder %s201, 7
      %s205 = scalar_select %p204, %s201, 7
      %s206 = smul.addr %s205, 2
      %s207 = smul.addr %s203, 16
      %s208 = sadd.s32 %s206, %s207
      %s209 = smul.addr %s208, 8
      %s210 = scalar_lea.vmem %s3, %s209
      %s211 = smul.u32 4, %s19
      %v212 = vld [vmem:[%s197] sm:$0xff]
      %v213 = vld [vmem:[%s197 + $0x8] sm:$0xff]
      %v214 = vld [vmem:[%s197 + $0x10] sm:$0xff]
      %v215 = vld [vmem:[%s197 + $0x18] sm:$0xff]
      %v216 = vld [vmem:[%s1] sm:$0x1]
      %v218 = vperm.slane %v216, 0
      %v220 = vmul.f32 %v212, %v218
      %v221 = vmul.f32 %v213, %v218
      %v222 = vmul.f32 %v214, %v218
      %v223 = vmul.f32 %v215, %v218
      %v224 = vld [vmem:[%s2] sm:$0x1]
      %v226 = vperm.slane %v224, 0
      %v228 = vadd.f32 %v220, %v226
      %v229 = vadd.f32 %v221, %v226
      %v230 = vadd.f32 %v222, %v226
      %v231 = vadd.f32 %v223, %v226
      %v232 = vmax.f32 %v228, 0.0
      %v233 = vmax.f32 %v229, 0.0
      %v234 = vmax.f32 %v230, 0.0
      %v235 = vmax.f32 %v231, 0.0
      %236 = vst [vmem:[%s210] sm:$0x1] 0.0
      %237 = vst [vmem:[%s210 + $0x10] sm:$0x1] 0.0
      %238 = vst [vmem:[%s210 + $0x20] sm:$0x1] 0.0
      %239 = vst [vmem:[%s210 + $0x30] sm:$0x1] 0.0
      %240 = vst [vmem:[%s210 + $0x9] sm:$0x1] 0.0
      %241 = vst [vmem:[%s210 + $0x19] sm:$0x1] 0.0
      %242 = vst [vmem:[%s210 + $0x29] sm:$0x1] 0.0
      %243 = vst [vmem:[%s210 + $0x39] sm:$0x1] 0.0
      %244 = vst [vmem:[%s210 + $0x1] sm:$0xff] %v232
      %245 = vst [vmem:[%s210 + $0x11] sm:$0xff] %v233
      %246 = vst [vmem:[%s210 + $0x21] sm:$0xff] %v234
      %247 = vst [vmem:[%s210 + $0x31] sm:$0xff] %v235
      %s248 = smul.u32 4, %s19
      %p249 = scmp.lt.s32.totalorder %s18, 1
      %s250 = scalar_select %p249, %s18, 1
      %p251 = scmp.lt.s32.totalorder %s248, 7
      %s252 = scalar_select %p251, %s248, 7
      %s253 = smul.addr %s252, 2
      %s254 = smul.addr %s250, 16
      %s255 = sadd.s32 %s253, %s254
      %s256 = smul.addr %s255, 8
      %s257 = scalar_lea.vmem %s3, %s256
      // Predicated region
      $region33: #{down_forward.7} parent=31 // pred_check
        %p258 = pneg %p118
      $region34: #{down_forward.7} parent=31 // pred_check_branch
        %260 = sbr.rel (%p258) target = $region36
      $region35: #{down_forward.7} parent=31 // pred_region
        %s261 = smul.u32 4, %s19
      $region36: #{down_forward.7} parent=31 // pred_fallthru
        _
    $region32: #{down_forward.7} parent=5 // pred_fallthru
      _
    %p262 = scmp.le.s32.totalorder 2, %s9
    // Predicated region
    $region37: #{down_forward.7} parent=5 // pred_check
      %p263 = pneg %p262
    $region38: #{down_forward.7} parent=5 // pred_check_branch
      %265 = sbr.rel (%p263) target = $region40
    $region39: #{down_forward.7} parent=5 // pred_region
      %s266 = ssub.s32 %s9, 2
      // Predicated region
      $region41: #{down_forward.7} parent=39 // pred_check
        %p267 = pneg %p124
      $region42: #{down_forward.7} parent=39 // pred_check_branch
        %269 = sbr.rel (%p267) target = $region44
      $region43: #{down_forward.7} parent=39 // pred_region
        %s270 = smul.u32 4, %s21
        %p271 = scmp.lt.s32.totalorder %s20, 1
        %s272 = scalar_select %p271, %s20, 1
        %p273 = scmp.lt.s32.totalorder %s270, 7
        %s274 = scalar_select %p273, %s270, 7
        %s275 = smul.addr %s274, 2
        %s276 = smul.addr %s272, 16
        %s277 = sadd.s32 %s275, %s276
        %s278 = smul.addr %s277, 8
        %s279 = scalar_lea.vmem %s3, %s278
      $region44: #{down_forward.7} parent=39 // pred_fallthru
        _
    $region40: #{down_forward.7} parent=5 // pred_fallthru
      _
  $region6: #{down_forward.7} parent=0 // loop_footer
    %s13 = sadd.s32 1, %s9
  $region7: #{down_forward.7} parent=0 // loop_footer_branch
    %8 = sbr.rel target = $region3
  $region8: #{down_forward.7} parent=0 // loop_exit
    _

// kernel: down_forward.6
$region0: #{down_forward.6}
  #allocation0 [shape = 'u32[]', space=smem, size = 0x4, offset = 0x4, fixed_abs, tag = 'smem constant byte address 0x4 - core index']
  #allocation1 [shape = 'u32[72,128]{1,0:T(1,128)}', space=vmem, size = 0x9000, scoped, tag = 'internal scratch']
  #allocation2 [shape = 'bf16[6,10,128]{2,1,0:T(8,128)(2,1)}', space=vmem, size = 0x6000, scoped, tag = 'scratch operand']
  %s0 = inlined_call_operand.vmem [shape: bf16[2,8,10,128], index: 0, kind: input, shape index: {}]
  %s1 = inlined_call_operand.vmem [shape: bf16[9,128,128], index: 1, kind: input, shape index: {}]
  %s2 = inlined_call_operand.vmem [shape: f32[128,128], index: 2, kind: output, shape index: {0}]
  %s3 = inlined_call_operand.vmem [shape: f32[2,2,2,128], index: 3, kind: output, shape index: {1}]
  %4 = xla_tuple %s2, %s3
  %s5 = sld [smem:[#allocation0]]
  $region57: #{down_forward.6} parent=0
    _
  %s7 = ssub.s32 1, %s5
  %s8 = scalar_select 0, %s7, %s5
  loop: start=0, step=1, limit=6
  $region2: #{down_forward.6} parent=0 // loop_pre_header
    _
  $region3: #{down_forward.6} parent=0 // loop_header
    %s10 = sphi 0, %s14
    %p11 = scmp.ge.s32.totalorder %s10, 6
    %s17 = sphi 0, %s36
    %s18 = sphi 0, %s32
    %s19 = sphi 0, %s28
    %s20 = sphi 0, %s17
    %s21 = sphi 0, %s18
    %s22 = sphi 0, %s19
    %s23 = sphi 0, %s20
    %s24 = sphi 0, %s21
    %s25 = sphi 0, %s22
    %s39 = sphi 0, %s41
    %s42 = sphi 0, %s39
    %s43 = sphi 0, %s42
    %s59 = sphi 0, %s43
    %s65 = sphi 0, %s67
    %s68 = sphi 0, %s65
    %s69 = sphi 0, %s68
    %s85 = sphi 0, %s69
    %s97 = sphi 0, %s99
    %s100 = sphi 0, %s97
    %s101 = sphi 0, %s100
    %s117 = sphi 0, %s101
    %s127 = sphi 0, %s129
    %s130 = sphi 0, %s127
    %s131 = sphi 0, %s130
    %s147 = sphi 0, %s131
  $region4: #{down_forward.6} parent=0 // loop_header_branch
    %13 = sbr.rel (%p11) target = $region8
  $region5: #{down_forward.6} parent=0 // loop_body
    %s15 = ssub.s32 %s10, 1
    %s16 = ssub.s32 %s10, 2
    %s26 = sadd.s32 1, %s19
    %p27 = scmp.ge.s32.totalorder %s26, 2
    %s28 = scalar_select %p27, 0, %s26
    %s29 = sadd.s32 1, %s18
    %s30 = scalar_select %p27, %s29, %s18
    %p31 = scmp.ge.s32.totalorder %s30, 2
    %s32 = scalar_select %p31, 0, %s30
    %s33 = sadd.s32 1, %s17
    %s34 = scalar_select %p31, %s33, %s17
    %p35 = scmp.ge.s32.totalorder %s34, 1
    %s36 = scalar_select %p35, 0, %s34
    %s37 = ssub.s32 %s18, %s32
    %p38 = scmp.eq.s32.totalorder %s37, 0
    %s40 = sadd.s32 %s39, 1
    %s41 = scalar_select %p38, %s39, %s40
    %p44 = pneg %p38
    %p45 = scmp.eq.s32.totalorder %s10, 3
    %p46 = por %p44, %p45
    %p47 = scmp.ne.s32.totalorder %s39, %s42
    %p48 = scmp.eq.s32.totalorder %s10, 0
    %p49 = por %p47, %p48
    %p50 = scmp.ne.s32.totalorder %s39, %s42
    %p51 = scmp.eq.s32.totalorder %s15, 3
    %p52 = por %p50, %p51
    %p53 = scmp.ne.s32.totalorder %s42, %s43
    %p54 = scmp.eq.s32.totalorder %s15, 0
    %p55 = por %p53, %p54
    %p56 = scmp.ne.s32.totalorder %s42, %s43
    %p57 = scmp.eq.s32.totalorder %s16, 3
    %p58 = por %p56, %p57
    %p60 = scmp.ne.s32.totalorder %s43, %s59
    %p61 = scmp.eq.s32.totalorder %s16, 0
    %p62 = por %p60, %p61
    %s63 = ssub.s32 %s17, %s36
    %p64 = scmp.eq.s32.totalorder %s63, 0
    %s66 = sadd.s32 %s65, 1
    %s67 = scalar_select %p64, %s65, %s66
    %p70 = pneg %p64
    %p71 = scmp.eq.s32.totalorder %s10, 3
    %p72 = por %p70, %p71
    %p73 = scmp.ne.s32.totalorder %s65, %s68
    %p74 = scmp.eq.s32.totalorder %s10, 0
    %p75 = por %p73, %p74
    %p76 = scmp.ne.s32.totalorder %s65, %s68
    %p77 = scmp.eq.s32.totalorder %s15, 3
    %p78 = por %p76, %p77
    %p79 = scmp.ne.s32.totalorder %s68, %s69
    %p80 = scmp.eq.s32.totalorder %s15, 0
    %p81 = por %p79, %p80
    %p82 = scmp.ne.s32.totalorder %s68, %s69
    %p83 = scmp.eq.s32.totalorder %s16, 3
    %p84 = por %p82, %p83
    %p86 = scmp.ne.s32.totalorder %s69, %s85
    %p87 = scmp.eq.s32.totalorder %s16, 0
    %p88 = por %p86, %p87
    %s89 = smul.u32 %s18, 2
    %s90 = sadd.s32 %s89, %s19
    %s91 = smul.u32 %s32, 2
    %s92 = sadd.s32 %s91, %s28
    %s93 = ssub.s32 %s90, %s92
    %s94 = ssub.s32 %s17, %s36
    %s95 = sor.u32 %s93, %s94
    %p96 = scmp.eq.s32.totalorder %s95, 0
    %s98 = sadd.s32 %s97, 1
    %s99 = scalar_select %p96, %s97, %s98
    %p102 = pneg %p96
    %p103 = scmp.eq.s32.totalorder %s10, 3
    %p104 = por %p102, %p103
    %p105 = scmp.ne.s32.totalorder %s97, %s100
    %p106 = scmp.eq.s32.totalorder %s10, 0
    %p107 = por %p105, %p106
    %p108 = scmp.ne.s32.totalorder %s97, %s100
    %p109 = scmp.eq.s32.totalorder %s15, 3
    %p110 = por %p108, %p109
    %p111 = scmp.ne.s32.totalorder %s100, %s101
    %p112 = scmp.eq.s32.totalorder %s15, 0
    %p113 = por %p111, %p112
    %p114 = scmp.ne.s32.totalorder %s100, %s101
    %p115 = scmp.eq.s32.totalorder %s16, 3
    %p116 = por %p114, %p115
    %p118 = scmp.ne.s32.totalorder %s101, %s117
    %p119 = scmp.eq.s32.totalorder %s16, 0
    %p120 = por %p118, %p119
    %s121 = ssub.s32 %s18, %s32
    %s122 = ssub.s32 %s19, %s28
    %s123 = sor.u32 %s121, %s122
    %s124 = ssub.s32 %s17, %s36
    %s125 = sor.u32 %s123, %s124
    %p126 = scmp.eq.s32.totalorder %s125, 0
    %s128 = sadd.s32 %s127, 1
    %s129 = scalar_select %p126, %s127, %s128
    %p132 = pneg %p126
    %p133 = scmp.eq.s32.totalorder %s10, 3
    %p134 = por %p132, %p133
    %p135 = scmp.ne.s32.totalorder %s127, %s130
    %p136 = scmp.eq.s32.totalorder %s10, 0
    %p137 = por %p135, %p136
    %p138 = scmp.ne.s32.totalorder %s127, %s130
    %p139 = scmp.eq.s32.totalorder %s15, 3
    %p140 = por %p138, %p139
    %p141 = scmp.ne.s32.totalorder %s130, %s131
    %p142 = scmp.eq.s32.totalorder %s15, 0
    %p143 = por %p141, %p142
    %p144 = scmp.ne.s32.totalorder %s130, %s131
    %p145 = scmp.eq.s32.totalorder %s16, 3
    %p146 = por %p144, %p145
    %p148 = scmp.ne.s32.totalorder %s131, %s147
    %p149 = scmp.eq.s32.totalorder %s16, 0
    %p150 = por %p148, %p149
    %p151 = scmp.le.s32.totalorder 1, %s10
    %p152 = scmp.lt.s32.totalorder %s10, 5
    %p153 = pnand %p151, %p152
    %p154 = pneg %p153
    // Predicated region
    $region9: #{down_forward.6} parent=5 // pred_check
      _
    $region10: #{down_forward.6} parent=5 // pred_check_branch
      %156 = sbr.rel (%p153) target = $region12
    $region11: #{down_forward.6} parent=5 // pred_region
      %s157 = ssub.s32 %s10, 1
      // Predicated region
      $region13: #{down_forward.6} parent=11 // pred_check
        %p158 = pneg %p81
      $region14: #{down_forward.6} parent=11 // pred_check_branch
        %160 = sbr.rel (%p158) target = $region16
      $region15: #{down_forward.6} parent=11 // pred_region
        %p161 = scmp.lt.s32.totalorder %s20, 0
        %s162 = scalar_select %p161, %s20, 0
        %s163 = smul.addr %s162, 4
        %s164 = scalar_lea.vmem %s1, %s163
      $region16: #{down_forward.6} parent=11 // pred_fallthru
        _
    $region12: #{down_forward.6} parent=5 // pred_fallthru
      _
    %p165 = scmp.lt.s32.totalorder %s10, 4
    // Predicated region
    $region17: #{down_forward.6} parent=5 // pred_check
      %p166 = pneg %p165
    $region18: #{down_forward.6} parent=5 // pred_check_branch
      %168 = sbr.rel (%p166) target = $region20
    $region19: #{down_forward.6} parent=5 // pred_region
      // Predicated region
      $region21: #{down_forward.6} parent=19 // pred_check
        %p169 = pneg %p49
      $region22: #{down_forward.6} parent=19 // pred_check_branch
        %171 = sbr.rel (%p169) target = $region24
      $region23: #{down_forward.6} parent=19 // pred_region
        %p172 = scmp.lt.s32.totalorder %s18, 1
        %s173 = scalar_select %p172, %s18, 1
        %s174 = smul.addr %s173, 16
        %s175 = smul.addr %s174, 4
        %s176 = scalar_lea.vmem %s0, %s175
      $region24: #{down_forward.6} parent=19 // pred_fallthru
        _
    $region20: #{down_forward.6} parent=5 // pred_fallthru
      _
    %p177 = scmp.le.s32.totalorder 1, %s10
    %p178 = scmp.lt.s32.totalorder %s10, 5
    %p179 = pnand %p177, %p178
    %p180 = pneg %p179
    // Predicated region
    $region25: #{down_forward.6} parent=5 // pred_check
      _
    $region26: #{down_forward.6} parent=5 // pred_check_branch
      %182 = sbr.rel (%p179) target = $region28
    $region27: #{down_forward.6} parent=5 // pred_region
      %s183 = ssub.s32 %s10, 1
      %p184 = scmp.lt.s32.totalorder %s21, 1
      %s185 = scalar_select %p184, %s21, 1
      %s186 = smul.addr %s185, 16
      %s187 = smul.addr %s186, 4
      %s188 = scalar_lea.vmem %s0, %s187
      %p189 = pneg %p55
      %p190 = pneg %p52
      %p191 = scmp.lt.s32.totalorder %s20, 0
      %s192 = scalar_select %p191, %s20, 0
      %s193 = smul.addr %s192, 4
      %s194 = scalar_lea.vmem %s1, %s193
      %p195 = pneg %p81
      %p196 = pneg %p78
      %p197 = pneg %p113
      %p198 = pneg %p110
      %s199 = smul.u32 %s21, 2
      %s200 = sadd.s32 %s199, %s22
      %s201 = smul.u32 4, %s200
      %p202 = scmp.lt.s32.totalorder %s201, 15
      %s203 = scalar_select %p202, %s201, 15
      %p204 = scmp.lt.s32.totalorder %s20, 0
      %s205 = scalar_select %p204, %s20, 0
      %s206 = sadd.s32 %s205, %s203
      %s207 = smul.addr %s206, 8
      %s208 = scalar_lea.vmem %s2, %s207
      %p209 = pneg %p143
      %p210 = pneg %p140
      %p211 = scmp.lt.s32.totalorder %s21, 1
      %s212 = scalar_select %p211, %s21, 1
      %p213 = scmp.lt.s32.totalorder %s22, 1
      %s214 = scalar_select %p213, %s22, 1
      %p215 = scmp.lt.s32.totalorder %s20, 0
      %s216 = scalar_select %p215, %s20, 0
      %s217 = sadd.s32 %s216, %s214
      %s218 = smul.addr %s212, 2
      %s219 = sadd.s32 %s217, %s218
      %s220 = smul.addr %s219, 2
      %s221 = scalar_lea.vmem %s3, %s220
      %p222 = scmp.lt.s32.totalorder %s21, 1
      %s223 = scalar_select %p222, %s21, 1
      %s224 = smul.addr %s223, 16
      %s225 = smul.addr %s224, 4
      %s226 = scalar_lea.vmem %s0, %s225
      %p227 = scmp.lt.s32.totalorder %s20, 0
      %s228 = scalar_select %p227, %s20, 0
      %s229 = smul.addr %s228, 4
      %s230 = scalar_lea.vmem %s1, %s229
      %s231 = smul.u32 %s21, 2
      %s232 = sadd.s32 %s231, %s22
      %s233 = smul.u32 4, %s232
      %p234 = scmp.lt.s32.totalorder %s233, 15
      %s235 = scalar_select %p234, %s233, 15
      %p236 = scmp.lt.s32.totalorder %s20, 0
      %s237 = scalar_select %p236, %s20, 0
      %s238 = sadd.s32 %s237, %s235
      %s239 = smul.addr %s238, 8
      %s240 = scalar_lea.vmem %s2, %s239
      %s241 = smul.u32 %s21, 2
      %s242 = sadd.s32 %s241, %s22
      %s243 = smul.u32 4, %s242
      %p244 = scmp.lt.s32.totalorder %s21, 1
      %s245 = scalar_select %p244, %s21, 1
      %p246 = scmp.lt.s32.totalorder %s22, 1
      %s247 = scalar_select %p246, %s22, 1
      %p248 = scmp.lt.s32.totalorder %s20, 0
      %s249 = scalar_select %p248, %s20, 0
      %s250 = sadd.s32 %s249, %s247
      %s251 = smul.addr %s245, 2
      %s252 = sadd.s32 %s250, %s251
      %s253 = smul.addr %s252, 2
      %s254 = scalar_lea.vmem %s3, %s253
      %s256 = smul.u32 %s22, 4
      %s257 = smul.u32 %s256, 2
      %s258 = smul.addr %s257, 4
      %s259 = scalar_lea.vmem %s226, %s258
      %v260 = vld [vmem:[%s259] sm:$0xf]
      %v261 = vld [vmem:[%s259 + $0x4] sm:$0x1]
      %v262 = vld [vmem:[%s259 + $0x8] sm:$0xf]
      %v263 = vld [vmem:[%s259 + $0xc] sm:$0x1]
      %v264 = vld [vmem:[%s259 + $0x10] sm:$0xf]
      %v265 = vld [vmem:[%s259 + $0x14] sm:$0x1]
      %v266 = vld [vmem:[%s259 + $0x18] sm:$0xf]
      %v267 = vld [vmem:[%s259 + $0x1c] sm:$0x1]
      %s268 = scalar_lea.vmem [#allocation2], 8
      %269 = vst [vmem:[%s268] sm:$0xf] %v260
      %270 = vst [vmem:[%s268 + $0x4] sm:$0x1] %v261
      %271 = vst [vmem:[%s268 + $0x8] sm:$0xf] %v262
      %272 = vst [vmem:[%s268 + $0xc] sm:$0x1] %v263
      %273 = vst [vmem:[%s268 + $0x10] sm:$0xf] %v264
      %274 = vst [vmem:[%s268 + $0x14] sm:$0x1] %v265
      %275 = vst [vmem:[%s268 + $0x18] sm:$0xf] %v266
      %276 = vst [vmem:[%s268 + $0x1c] sm:$0x1] %v267
      %s277 = ssub.s32 %s256, 1
      %p278 = scmp.gt.s32.totalorder %s277, 0
      %s279 = scalar_select %p278, %s277, 0
      %s280 = smul.u32 %s279, 2
      %s281 = smul.addr %s280, 4
      %s282 = scalar_lea.vmem %s226, %s281
      %v283 = vld [vmem:[%s282] sm:$0xf]
      %v284 = vld [vmem:[%s282 + $0x4] sm:$0x1]
      %285 = vst [vmem:[#allocation2] sm:$0xf] %v283
      %286 = vst [vmem:[#allocation2 + $0x4] sm:$0x1] %v284
      %s287 = sadd.s32 %s256, 4
      %p288 = scmp.lt.s32.totalorder %s287, 7
      %s289 = scalar_select %p288, %s287, 7
      %s290 = smul.u32 %s289, 2
      %s291 = smul.addr %s290, 4
      %s292 = scalar_lea.vmem %s226, %s291
      %v293 = vld [vmem:[%s292] sm:$0xf]
      %v294 = vld [vmem:[%s292 + $0x4] sm:$0x1]
      %s295 = scalar_lea.vmem [#allocation2], 40
      %296 = vst [vmem:[%s295] sm:$0xf] %v293
      %297 = vst [vmem:[%s295 + $0x4] sm:$0x1] %v294
      %p298 = scmp.eq.s32.totalorder %s22, 0
      // Predicated region
      $region29: #{down_forward.6} parent=27 // pred_check
        %p299 = pneg %p298
      $region30: #{down_forward.6} parent=27 // pred_check_branch
        %301 = sbr.rel (%p299) target = $region32
      $region31: #{down_forward.6} parent=27 // pred_region
        %302 = vst [vmem:[#allocation2] sm:$0xf] 0
        %303 = vst [vmem:[#allocation2 + $0x4] sm:$0x1] 0
      $region32: #{down_forward.6} parent=27 // pred_fallthru
        _
      %p304 = scmp.eq.s32.totalorder %s22, 1
      // Predicated region
      $region33: #{down_forward.6} parent=27 // pred_check
        %p305 = pneg %p304
      $region34: #{down_forward.6} parent=27 // pred_check_branch
        %307 = sbr.rel (%p305) target = $region36
      $region35: #{down_forward.6} parent=27 // pred_region
        %308 = vst [vmem:[%s295] sm:$0xf] 0
        %309 = vst [vmem:[%s295 + $0x4] sm:$0x1] 0
      $region36: #{down_forward.6} parent=27 // pred_fallthru
        _
      %v310 = vld [vmem:[#allocation2] sm:$0xf]
      %v311 = vld [vmem:[#allocation2 + $0x8] sm:$0xf]
      %v312 = vld [vmem:[#allocation2 + $0x10] sm:$0xf]
      %v313 = vld [vmem:[#allocation2 + $0x18] sm:$0xf]
      %v314 = vld [vmem:[#allocation2 + $0x4] sm:$0x1]
      %v315 = vld [vmem:[#allocation2 + $0xc] sm:$0x1]
      %v316 = vld [vmem:[#allocation2 + $0x14] sm:$0x1]
      %v317 = vld [vmem:[#allocation2 + $0x1c] sm:$0x1]
      %vm318 = vsmask.f32 3328
      %vm319 = vsmask.f32 7440
      %vm320 = vmor %vm318, %vm319
      %v322 = vshrl.u32 %v310, 16
      %v324 = vrot.slane %v322, 4
      %v325 = vshll.u32 %v310, 16
      %v327 = vrot.slane %v325, 5
      %v328 = vor.u32 %v324, %v327
      %v329 = vrot.slane %v328, 4
      %v331 = vshll.u32 %v314, 16
      %v333 = vrot.slane %v331, 5
      %v334 = vsel %vm320, %v329, %v333
      %v336 = vshrl.u32 %v311, 16
      %v338 = vrot.slane %v336, 4
      %v339 = vshll.u32 %v311, 16
      %v341 = vrot.slane %v339, 5
      %v342 = vor.u32 %v338, %v341
      %v343 = vrot.slane %v342, 4
      %v345 = vshll.u32 %v315, 16
      %v347 = vrot.slane %v345, 5
      %v348 = vsel %vm320, %v343, %v347
      %v350 = vshrl.u32 %v312, 16
      %v352 = vrot.slane %v350, 4
      %v353 = vshll.u32 %v312, 16
      %v355 = vrot.slane %v353, 5
      %v356 = vor.u32 %v352, %v355
      %v357 = vrot.slane %v356, 4
      %v359 = vshll.u32 %v316, 16
      %v361 = vrot.slane %v359, 5
      %v362 = vsel %vm320, %v357, %v361
      %v364 = vshrl.u32 %v313, 16
      %v366 = vrot.slane %v364, 4
      %v367 = vshll.u32 %v313, 16
      %v369 = vrot.slane %v367, 5
      %v370 = vor.u32 %v366, %v369
      %v371 = vrot.slane %v370, 4
      %v373 = vshll.u32 %v317, 16
      %v375 = vrot.slane %v373, 5
      %v376 = vsel %vm320, %v371, %v375
      %v377 = vld [vmem:[#allocation2] sm:$0xe]
      %v378 = vld [vmem:[#allocation2 + $0x8] sm:$0xe]
      %v379 = vld [vmem:[#allocation2 + $0x10] sm:$0xe]
      %v380 = vld [vmem:[#allocation2 + $0x18] sm:$0xe]
      %vm389 = vcmask 1042432
      %vm390 = vcmask 1046532
      %vm391 = vmor %vm389, %vm390
      %v392 = vrot.slane %v377, 5
      %v393 = vrot.slane %v392, 4
      %v394 = vrot.slane %v314, 5
      %v395 = vsel %vm391, %v393, %v394
      %v396 = vrot.slane %v378, 5
      %v397 = vrot.slane %v396, 4
      %v398 = vrot.slane %v315, 5
      %v399 = vsel %vm391, %v397, %v398
      %v400 = vrot.slane %v379, 5
      %v401 = vrot.slane %v400, 4
      %v402 = vrot.slane %v316, 5
      %v403 = vsel %vm391, %v401, %v402
      %v404 = vrot.slane %v380, 5
      %v405 = vrot.slane %v404, 4
      %v406 = vrot.slane %v317, 5
      %v407 = vsel %vm391, %v405, %v406
      %v408 = vld [vmem:[%s268] sm:$0xf]
      %v409 = vld [vmem:[%s268 + $0x8] sm:$0xf]
      %v410 = vld [vmem:[%s268 + $0x10] sm:$0xf]
      %v411 = vld [vmem:[%s268 + $0x18] sm:$0xf]
      %v412 = vld [vmem:[%s268 + $0x4] sm:$0x1]
      %v413 = vld [vmem:[%s268 + $0xc] sm:$0x1]
      %v414 = vld [vmem:[%s268 + $0x14] sm:$0x1]
      %v415 = vld [vmem:[%s268 + $0x1c] sm:$0x1]
      %v417 = vshrl.u32 %v408, 16
      %v419 = vrot.slane %v417, 4
      %v420 = vshll.u32 %v408, 16
      %v422 = vrot.slane %v420, 5
      %v423 = vor.u32 %v419, %v422
      %v424 = vrot.slane %v423, 4
      %v426 = vshll.u32 %v412, 16
      %v428 = vrot.slane %v426, 5
      %v429 = vsel %vm320, %v424, %v428
      %v431 = vshrl.u32 %v409, 16
      %v433 = vrot.slane %v431, 4
      %v434 = vshll.u32 %v409, 16
      %v436 = vrot.slane %v434, 5
      %v437 = vor.u32 %v433, %v436
      %v438 = vrot.slane %v437, 4
      %v440 = vshll.u32 %v413, 16
      %v442 = vrot.slane %v440, 5
      %v443 = vsel %vm320, %v438, %v442
      %v445 = vshrl.u32 %v410, 16
      %v447 = vrot.slane %v445, 4
      %v448 = vshll.u32 %v410, 16
      %v450 = vrot.slane %v448, 5
      %v451 = vor.u32 %v447, %v450
      %v452 = vrot.slane %v451, 4
      %v454 = vshll.u32 %v414, 16
      %v456 = vrot.slane %v454, 5
      %v457 = vsel %vm320, %v452, %v456
      %v459 = vshrl.u32 %v411, 16
      %v461 = vrot.slane %v459, 4
      %v462 = vshll.u32 %v411, 16
      %v464 = vrot.slane %v462, 5
      %v465 = vor.u32 %v461, %v464
      %v466 = vrot.slane %v465, 4
      %v468 = vshll.u32 %v415, 16
      %v470 = vrot.slane %v468, 5
      %v471 = vsel %vm320, %v466, %v470
      %v472 = vld [vmem:[%s268] sm:$0xe]
      %v473 = vld [vmem:[%s268 + $0x8] sm:$0xe]
      %v474 = vld [vmem:[%s268 + $0x10] sm:$0xe]
      %v475 = vld [vmem:[%s268 + $0x18] sm:$0xe]
      %v484 = vrot.slane %v472, 5
      %v485 = vrot.slane %v484, 4
      %v486 = vrot.slane %v412, 5
      %v487 = vsel %vm391, %v485, %v486
      %v488 = vrot.slane %v473, 5
      %v489 = vrot.slane %v488, 4
      %v490 = vrot.slane %v413, 5
      %v491 = vsel %vm391, %v489, %v490
      %v492 = vrot.slane %v474, 5
      %v493 = vrot.slane %v492, 4
      %v494 = vrot.slane %v414, 5
      %v495 = vsel %vm391, %v493, %v494
      %v496 = vrot.slane %v475, 5
      %v497 = vrot.slane %v496, 4
      %v498 = vrot.slane %v415, 5
      %v499 = vsel %vm391, %v497, %v498
      %s500 = scalar_lea.vmem [#allocation2], 16
      %v501 = vld [vmem:[%s500] sm:$0xf]
      %v502 = vld [vmem:[%s500 + $0x8] sm:$0xf]
      %v503 = vld [vmem:[%s500 + $0x10] sm:$0xf]
      %v504 = vld [vmem:[%s500 + $0x18] sm:$0xf]
      %v505 = vld [vmem:[%s500 + $0x4] sm:$0x1]
      %v506 = vld [vmem:[%s500 + $0xc] sm:$0x1]
      %v507 = vld [vmem:[%s500 + $0x14] sm:$0x1]
      %v508 = vld [vmem:[%s500 + $0x1c] sm:$0x1]
      %v510 = vshrl.u32 %v501, 16
      %v512 = vrot.slane %v510, 4
      %v513 = vshll.u32 %v501, 16
      %v515 = vrot.slane %v513, 5
      %v516 = vor.u32 %v512, %v515
      %v517 = vrot.slane %v516, 4
      %v519 = vshll.u32 %v505, 16
      %v521 = vrot.slane %v519, 5
      %v522 = vsel %vm320, %v517, %v521
      %v524 = vshrl.u32 %v502, 16
      %v526 = vrot.slane %v524, 4
      %v527 = vshll.u32 %v502, 16
      %v529 = vrot.slane %v527, 5
      %v530 = vor.u32 %v526, %v529
      %v531 = vrot.slane %v530, 4
      %v533 = vshll.u32 %v506, 16
      %v535 = vrot.slane %v533, 5
      %v536 = vsel %vm320, %v531, %v535
      %v538 = vshrl.u32 %v503, 16
      %v540 = vrot.slane %v538, 4
      %v541 = vshll.u32 %v503, 16
      %v543 = vrot.slane %v541, 5
      %v544 = vor.u32 %v540, %v543
      %v545 = vrot.slane %v544, 4
      %v547 = vshll.u32 %v507, 16
      %v549 = vrot.slane %v547, 5
      %v550 = vsel %vm320, %v545, %v549
      %v552 = vshrl.u32 %v504, 16
      %v554 = vrot.slane %v552, 4
      %v555 = vshll.u32 %v504, 16
      %v557 = vrot.slane %v555, 5
      %v558 = vor.u32 %v554, %v557
      %v559 = vrot.slane %v558, 4
      %v561 = vshll.u32 %v508, 16
      %v563 = vrot.slane %v561, 5
      %v564 = vsel %vm320, %v559, %v563
      %v565 = vld [vmem:[%s500] sm:$0xe]
      %v566 = vld [vmem:[%s500 + $0x8] sm:$0xe]
      %v567 = vld [vmem:[%s500 + $0x10] sm:$0xe]
      %v568 = vld [vmem:[%s500 + $0x18] sm:$0xe]
      %v577 = vrot.slane %v565, 5
      %v578 = vrot.slane %v577, 4
      %v579 = vrot.slane %v505, 5
      %v580 = vsel %vm391, %v578, %v579
      %v581 = vrot.slane %v566, 5
      %v582 = vrot.slane %v581, 4
      %v583 = vrot.slane %v506, 5
      %v584 = vsel %vm391, %v582, %v583
      %v585 = vrot.slane %v567, 5
      %v586 = vrot.slane %v585, 4
      %v587 = vrot.slane %v507, 5
      %v588 = vsel %vm391, %v586, %v587
      %v589 = vrot.slane %v568, 5
      %v590 = vrot.slane %v589, 4
      %v591 = vrot.slane %v508, 5
      %v592 = vsel %vm391, %v590, %v591
      %v597 = vunpack.c.l.b16 %v310
      %v598 = vunpack.c.l.b16 %v311
      %v599 = vunpack.c.l.b16 %v312
      %v600 = vunpack.c.l.b16 %v313
      %v601 = vpack.c.b16 %v598, %v597
      %v602 = vpack.c.b16 %v600, %v599
      %v605 = vunpack.c.l.b16 %v334
      %v606 = vunpack.c.l.b16 %v348
      %v607 = vunpack.c.l.b16 %v362
      %v608 = vunpack.c.l.b16 %v376
      %v609 = vpack.c.b16 %v606, %v605
      %v610 = vpack.c.b16 %v608, %v607
      %v613 = vunpack.c.l.b16 %v395
      %v614 = vunpack.c.l.b16 %v399
      %v615 = vunpack.c.l.b16 %v403
      %v616 = vunpack.c.l.b16 %v407
      %v617 = vpack.c.b16 %v614, %v613
      %v618 = vpack.c.b16 %v616, %v615
      %v625 = vunpack.c.l.b16 %v408
      %v626 = vunpack.c.l.b16 %v409
      %v627 = vunpack.c.l.b16 %v410
      %v628 = vunpack.c.l.b16 %v411
      %v629 = vpack.c.b16 %v626, %v625
      %v630 = vpack.c.b16 %v628, %v627
      %v633 = vunpack.c.l.b16 %v429
      %v634 = vunpack.c.l.b16 %v443
      %v635 = vunpack.c.l.b16 %v457
      %v636 = vunpack.c.l.b16 %v471
      %v637 = vpack.c.b16 %v634, %v633
      %v638 = vpack.c.b16 %v636, %v635
      %v641 = vunpack.c.l.b16 %v487
      %v642 = vunpack.c.l.b16 %v491
      %v643 = vunpack.c.l.b16 %v495
      %v644 = vunpack.c.l.b16 %v499
      %v645 = vpack.c.b16 %v642, %v641
      %v646 = vpack.c.b16 %v644, %v643
      %v653 = vunpack.c.l.b16 %v501
      %v654 = vunpack.c.l.b16 %v502
      %v655 = vunpack.c.l.b16 %v503
      %v656 = vunpack.c.l.b16 %v504
      %v657 = vpack.c.b16 %v654, %v653
      %v658 = vpack.c.b16 %v656, %v655
      %v661 = vunpack.c.l.b16 %v522
      %v662 = vunpack.c.l.b16 %v536
      %v663 = vunpack.c.l.b16 %v550
      %v664 = vunpack.c.l.b16 %v564
      %v665 = vpack.c.b16 %v662, %v661
      %v666 = vpack.c.b16 %v664, %v663
      %v669 = vunpack.c.l.b16 %v580
      %v670 = vunpack.c.l.b16 %v584
      %v671 = vunpack.c.l.b16 %v588
      %v672 = vunpack.c.l.b16 %v592
      %v673 = vpack.c.b16 %v670, %v669
      %v674 = vpack.c.b16 %v672, %v671
      %v677 = vld [vmem:[%s230] sm:$0xf]
      %v678 = vld [vmem:[%s230 + $0x4] sm:$0xf]
      %v679 = vld [vmem:[%s230 + $0x8] sm:$0xf]
      %v680 = vld [vmem:[%s230 + $0xc] sm:$0xf]
      %v681 = vld [vmem:[%s230 + $0x10] sm:$0xf]
      %v682 = vld [vmem:[%s230 + $0x14] sm:$0xf]
      %v683 = vld [vmem:[%s230 + $0x18] sm:$0xf]
      %v684 = vld [vmem:[%s230 + $0x1c] sm:$0xf]
      %v685 = vld [vmem:[%s230 + $0x20] sm:$0xf]
      %v686 = vld [vmem:[%s230 + $0x24] sm:$0xf]
      %v687 = vld [vmem:[%s230 + $0x28] sm:$0xf]
      %v688 = vld [vmem:[%s230 + $0x2c] sm:$0xf]
      %v689 = vld [vmem:[%s230 + $0x30] sm:$0xf]
      %v690 = vld [vmem:[%s230 + $0x34] sm:$0xf]
      %v691 = vld [vmem:[%s230 + $0x38] sm:$0xf]
      %v692 = vld [vmem:[%s230 + $0x3c] sm:$0xf]
      %v693 = vld [vmem:[%s230 + $0x40] sm:$0xf]
      %v694 = vld [vmem:[%s230 + $0x44] sm:$0xf]
      %v695 = vld [vmem:[%s230 + $0x48] sm:$0xf]
      %v696 = vld [vmem:[%s230 + $0x4c] sm:$0xf]
      %v697 = vld [vmem:[%s230 + $0x50] sm:$0xf]
      %v698 = vld [vmem:[%s230 + $0x54] sm:$0xf]
      %v699 = vld [vmem:[%s230 + $0x58] sm:$0xf]
      %v700 = vld [vmem:[%s230 + $0x5c] sm:$0xf]
      %v701 = vld [vmem:[%s230 + $0x60] sm:$0xf]
      %v702 = vld [vmem:[%s230 + $0x64] sm:$0xf]
      %v703 = vld [vmem:[%s230 + $0x68] sm:$0xf]
      %v704 = vld [vmem:[%s230 + $0x6c] sm:$0xf]
      %v705 = vld [vmem:[%s230 + $0x70] sm:$0xf]
      %v706 = vld [vmem:[%s230 + $0x74] sm:$0xf]
      %v707 = vld [vmem:[%s230 + $0x78] sm:$0xf]
      %v708 = vld [vmem:[%s230 + $0x7c] sm:$0xf]
      %v709 = vld [vmem:[%s230 + $0x80] sm:$0xf]
      %v710 = vld [vmem:[%s230 + $0x84] sm:$0xf]
      %v711 = vld [vmem:[%s230 + $0x88] sm:$0xf]
      %v712 = vld [vmem:[%s230 + $0x8c] sm:$0xf]
      %v713 = vld [vmem:[%s230 + $0x90] sm:$0xf]
      %v714 = vld [vmem:[%s230 + $0x94] sm:$0xf]
      %v715 = vld [vmem:[%s230 + $0x98] sm:$0xf]
      %v716 = vld [vmem:[%s230 + $0x9c] sm:$0xf]
      %v717 = vld [vmem:[%s230 + $0xa0] sm:$0xf]
      %v718 = vld [vmem:[%s230 + $0xa4] sm:$0xf]
      %v719 = vld [vmem:[%s230 + $0xa8] sm:$0xf]
      %v720 = vld [vmem:[%s230 + $0xac] sm:$0xf]
      %v721 = vld [vmem:[%s230 + $0xb0] sm:$0xf]
      %v722 = vld [vmem:[%s230 + $0xb4] sm:$0xf]
      %v723 = vld [vmem:[%s230 + $0xb8] sm:$0xf]
      %v724 = vld [vmem:[%s230 + $0xbc] sm:$0xf]
      %v725 = vld [vmem:[%s230 + $0xc0] sm:$0xf]
      %v726 = vld [vmem:[%s230 + $0xc4] sm:$0xf]
      %v727 = vld [vmem:[%s230 + $0xc8] sm:$0xf]
      %v728 = vld [vmem:[%s230 + $0xcc] sm:$0xf]
      %v729 = vld [vmem:[%s230 + $0xd0] sm:$0xf]
      %v730 = vld [vmem:[%s230 + $0xd4] sm:$0xf]
      %v731 = vld [vmem:[%s230 + $0xd8] sm:$0xf]
      %v732 = vld [vmem:[%s230 + $0xdc] sm:$0xf]
      %v733 = vld [vmem:[%s230 + $0xe0] sm:$0xf]
      %v734 = vld [vmem:[%s230 + $0xe4] sm:$0xf]
      %v735 = vld [vmem:[%s230 + $0xe8] sm:$0xf]
      %v736 = vld [vmem:[%s230 + $0xec] sm:$0xf]
      %v737 = vld [vmem:[%s230 + $0xf0] sm:$0xf]
      %v738 = vld [vmem:[%s230 + $0xf4] sm:$0xf]
      %v739 = vld [vmem:[%s230 + $0xf8] sm:$0xf]
      %v740 = vld [vmem:[%s230 + $0xfc] sm:$0xf]
      %v741 = vld [vmem:[%s230 + $0x100] sm:$0xf]
      %v742 = vld [vmem:[%s230 + $0x104] sm:$0xf]
      %v743 = vld [vmem:[%s230 + $0x108] sm:$0xf]
      %v744 = vld [vmem:[%s230 + $0x10c] sm:$0xf]
      %v745 = vld [vmem:[%s230 + $0x110] sm:$0xf]
      %v746 = vld [vmem:[%s230 + $0x114] sm:$0xf]
      %v747 = vld [vmem:[%s230 + $0x118] sm:$0xf]
      %v748 = vld [vmem:[%s230 + $0x11c] sm:$0xf]
      %v749 = vld [vmem:[%s230 + $0x120] sm:$0xf]
      %v750 = vld [vmem:[%s230 + $0x124] sm:$0xf]
      %v751 = vld [vmem:[%s230 + $0x128] sm:$0xf]
      %v752 = vld [vmem:[%s230 + $0x12c] sm:$0xf]
      %v753 = vld [vmem:[%s230 + $0x130] sm:$0xf]
      %v754 = vld [vmem:[%s230 + $0x134] sm:$0xf]
      %v755 = vld [vmem:[%s230 + $0x138] sm:$0xf]
      %v756 = vld [vmem:[%s230 + $0x13c] sm:$0xf]
      %v757 = vld [vmem:[%s230 + $0x140] sm:$0xf]
      %v758 = vld [vmem:[%s230 + $0x144] sm:$0xf]
      %v759 = vld [vmem:[%s230 + $0x148] sm:$0xf]
      %v760 = vld [vmem:[%s230 + $0x14c] sm:$0xf]
      %v761 = vld [vmem:[%s230 + $0x150] sm:$0xf]
      %v762 = vld [vmem:[%s230 + $0x154] sm:$0xf]
      %v763 = vld [vmem:[%s230 + $0x158] sm:$0xf]
      %v764 = vld [vmem:[%s230 + $0x15c] sm:$0xf]
      %v765 = vld [vmem:[%s230 + $0x160] sm:$0xf]
      %v766 = vld [vmem:[%s230 + $0x164] sm:$0xf]
      %v767 = vld [vmem:[%s230 + $0x168] sm:$0xf]
      %v768 = vld [vmem:[%s230 + $0x16c] sm:$0xf]
      %v769 = vld [vmem:[%s230 + $0x170] sm:$0xf]
      %v770 = vld [vmem:[%s230 + $0x174] sm:$0xf]
      %v771 = vld [vmem:[%s230 + $0x178] sm:$0xf]
      %v772 = vld [vmem:[%s230 + $0x17c] sm:$0xf]
      %v773 = vld [vmem:[%s230 + $0x180] sm:$0xf]
      %v774 = vld [vmem:[%s230 + $0x184] sm:$0xf]
      %v775 = vld [vmem:[%s230 + $0x188] sm:$0xf]
      %v776 = vld [vmem:[%s230 + $0x18c] sm:$0xf]
      %v777 = vld [vmem:[%s230 + $0x190] sm:$0xf]
      %v778 = vld [vmem:[%s230 + $0x194] sm:$0xf]
      %v779 = vld [vmem:[%s230 + $0x198] sm:$0xf]
      %v780 = vld [vmem:[%s230 + $0x19c] sm:$0xf]
      %v781 = vld [vmem:[%s230 + $0x1a0] sm:$0xf]
      %v782 = vld [vmem:[%s230 + $0x1a4] sm:$0xf]
      %v783 = vld [vmem:[%s230 + $0x1a8] sm:$0xf]
      %v784 = vld [vmem:[%s230 + $0x1ac] sm:$0xf]
      %v785 = vld [vmem:[%s230 + $0x1b0] sm:$0xf]
      %v786 = vld [vmem:[%s230 + $0x1b4] sm:$0xf]
      %v787 = vld [vmem:[%s230 + $0x1b8] sm:$0xf]
      %v788 = vld [vmem:[%s230 + $0x1bc] sm:$0xf]
      %v789 = vld [vmem:[%s230 + $0x1c0] sm:$0xf]
      %v790 = vld [vmem:[%s230 + $0x1c4] sm:$0xf]
      %v791 = vld [vmem:[%s230 + $0x1c8] sm:$0xf]
      %v792 = vld [vmem:[%s230 + $0x1cc] sm:$0xf]
      %v793 = vld [vmem:[%s230 + $0x1d0] sm:$0xf]
      %v794 = vld [vmem:[%s230 + $0x1d4] sm:$0xf]
      %v795 = vld [vmem:[%s230 + $0x1d8] sm:$0xf]
      %v796 = vld [vmem:[%s230 + $0x1dc] sm:$0xf]
      %v797 = vld [vmem:[%s230 + $0x1e0] sm:$0xf]
      %v798 = vld [vmem:[%s230 + $0x1e4] sm:$0xf]
      %v799 = vld [vmem:[%s230 + $0x1e8] sm:$0xf]
      %v800 = vld [vmem:[%s230 + $0x1ec] sm:$0xf]
      %v801 = vld [vmem:[%s230 + $0x1f0] sm:$0xf]
      %v802 = vld [vmem:[%s230 + $0x1f4] sm:$0xf]
      %v803 = vld [vmem:[%s230 + $0x1f8] sm:$0xf]
      %v804 = vld [vmem:[%s230 + $0x1fc] sm:$0xf]
      %v805 = vld [vmem:[%s230 + $0x200] sm:$0xf]
      %v806 = vld [vmem:[%s230 + $0x204] sm:$0xf]
      %v807 = vld [vmem:[%s230 + $0x208] sm:$0xf]
      %v808 = vld [vmem:[%s230 + $0x20c] sm:$0xf]
      %v809 = vld [vmem:[%s230 + $0x210] sm:$0xf]
      %v810 = vld [vmem:[%s230 + $0x214] sm:$0xf]
      %v811 = vld [vmem:[%s230 + $0x218] sm:$0xf]
      %v812 = vld [vmem:[%s230 + $0x21c] sm:$0xf]
      %v813 = vld [vmem:[%s230 + $0x220] sm:$0xf]
      %v814 = vld [vmem:[%s230 + $0x224] sm:$0xf]
      %v815 = vld [vmem:[%s230 + $0x228] sm:$0xf]
      %v816 = vld [vmem:[%s230 + $0x22c] sm:$0xf]
      %v817 = vld [vmem:[%s230 + $0x230] sm:$0xf]
      %v818 = vld [vmem:[%s230 + $0x234] sm:$0xf]
      %v819 = vld [vmem:[%s230 + $0x238] sm:$0xf]
      %v820 = vld [vmem:[%s230 + $0x23c] sm:$0xf]
      %v965 = vunpack.c.l.b16 %v677
      %v966 = vunpack.c.l.b16 %v678
      %v967 = vunpack.c.l.b16 %v679
      %v968 = vunpack.c.l.b16 %v680
      %v969 = vunpack.c.l.b16 %v681
      %v970 = vunpack.c.l.b16 %v682
      %v971 = vunpack.c.l.b16 %v683
      %v972 = vunpack.c.l.b16 %v684
      %v973 = vunpack.c.l.b16 %v685
      %v974 = vunpack.c.l.b16 %v686
      %v975 = vunpack.c.l.b16 %v687
      %v976 = vunpack.c.l.b16 %v688
      %v977 = vunpack.c.l.b16 %v689
      %v978 = vunpack.c.l.b16 %v690
      %v979 = vunpack.c.l.b16 %v691
      %v980 = vunpack.c.l.b16 %v692
      %v981 = vunpack.c.l.b16 %v693
      %v982 = vunpack.c.l.b16 %v694
      %v983 = vunpack.c.l.b16 %v695
      %v984 = vunpack.c.l.b16 %v696
      %v985 = vunpack.c.l.b16 %v697
      %v986 = vunpack.c.l.b16 %v698
      %v987 = vunpack.c.l.b16 %v699
      %v988 = vunpack.c.l.b16 %v700
      %v989 = vunpack.c.l.b16 %v701
      %v990 = vunpack.c.l.b16 %v702
      %v991 = vunpack.c.l.b16 %v703
      %v992 = vunpack.c.l.b16 %v704
      %v993 = vunpack.c.l.b16 %v705
      %v994 = vunpack.c.l.b16 %v706
      %v995 = vunpack.c.l.b16 %v707
      %v996 = vunpack.c.l.b16 %v708
      %v997 = vunpack.c.l.b16 %v709
      %v998 = vunpack.c.l.b16 %v710
      %v999 = vunpack.c.l.b16 %v711
      %v1000 = vunpack.c.l.b16 %v712
      %v1001 = vunpack.c.l.b16 %v713
      %v1002 = vunpack.c.l.b16 %v714
      %v1003 = vunpack.c.l.b16 %v715
      %v1004 = vunpack.c.l.b16 %v716
      %v1005 = vunpack.c.l.b16 %v717
      %v1006 = vunpack.c.l.b16 %v718
      %v1007 = vunpack.c.l.b16 %v719
      %v1008 = vunpack.c.l.b16 %v720
      %v1009 = vunpack.c.l.b16 %v721
      %v1010 = vunpack.c.l.b16 %v722
      %v1011 = vunpack.c.l.b16 %v723
      %v1012 = vunpack.c.l.b16 %v724
      %v1013 = vunpack.c.l.b16 %v725
      %v1014 = vunpack.c.l.b16 %v726
      %v1015 = vunpack.c.l.b16 %v727
      %v1016 = vunpack.c.l.b16 %v728
      %v1017 = vunpack.c.l.b16 %v729
      %v1018 = vunpack.c.l.b16 %v730
      %v1019 = vunpack.c.l.b16 %v731
      %v1020 = vunpack.c.l.b16 %v732
      %v1021 = vunpack.c.l.b16 %v733
      %v1022 = vunpack.c.l.b16 %v734
      %v1023 = vunpack.c.l.b16 %v735
      %v1024 = vunpack.c.l.b16 %v736
      %v1025 = vunpack.c.l.b16 %v737
      %v1026 = vunpack.c.l.b16 %v738
      %v1027 = vunpack.c.l.b16 %v739
      %v1028 = vunpack.c.l.b16 %v740
      %v1029 = vunpack.c.l.b16 %v741
      %v1030 = vunpack.c.l.b16 %v742
      %v1031 = vunpack.c.l.b16 %v743
      %v1032 = vunpack.c.l.b16 %v744
      %v1033 = vunpack.c.l.b16 %v745
      %v1034 = vunpack.c.l.b16 %v746
      %v1035 = vunpack.c.l.b16 %v747
      %v1036 = vunpack.c.l.b16 %v748
      %v1037 = vunpack.c.l.b16 %v749
      %v1038 = vunpack.c.l.b16 %v750
      %v1039 = vunpack.c.l.b16 %v751
      %v1040 = vunpack.c.l.b16 %v752
      %v1041 = vunpack.c.l.b16 %v753
      %v1042 = vunpack.c.l.b16 %v754
      %v1043 = vunpack.c.l.b16 %v755
      %v1044 = vunpack.c.l.b16 %v756
      %v1045 = vunpack.c.l.b16 %v757
      %v1046 = vunpack.c.l.b16 %v758
      %v1047 = vunpack.c.l.b16 %v759
      %v1048 = vunpack.c.l.b16 %v760
      %v1049 = vunpack.c.l.b16 %v761
      %v1050 = vunpack.c.l.b16 %v762
      %v1051 = vunpack.c.l.b16 %v763
      %v1052 = vunpack.c.l.b16 %v764
      %v1053 = vunpack.c.l.b16 %v765
      %v1054 = vunpack.c.l.b16 %v766
      %v1055 = vunpack.c.l.b16 %v767
      %v1056 = vunpack.c.l.b16 %v768
      %v1057 = vunpack.c.l.b16 %v769
      %v1058 = vunpack.c.l.b16 %v770
      %v1059 = vunpack.c.l.b16 %v771
      %v1060 = vunpack.c.l.b16 %v772
      %v1061 = vunpack.c.l.b16 %v773
      %v1062 = vunpack.c.l.b16 %v774
      %v1063 = vunpack.c.l.b16 %v775
      %v1064 = vunpack.c.l.b16 %v776
      %v1065 = vunpack.c.l.b16 %v777
      %v1066 = vunpack.c.l.b16 %v778
      %v1067 = vunpack.c.l.b16 %v779
      %v1068 = vunpack.c.l.b16 %v780
      %v1069 = vunpack.c.l.b16 %v781
      %v1070 = vunpack.c.l.b16 %v782
      %v1071 = vunpack.c.l.b16 %v783
      %v1072 = vunpack.c.l.b16 %v784
      %v1073 = vunpack.c.l.b16 %v785
      %v1074 = vunpack.c.l.b16 %v786
      %v1075 = vunpack.c.l.b16 %v787
      %v1076 = vunpack.c.l.b16 %v788
      %v1077 = vunpack.c.l.b16 %v789
      %v1078 = vunpack.c.l.b16 %v790
      %v1079 = vunpack.c.l.b16 %v791
      %v1080 = vunpack.c.l.b16 %v792
      %v1081 = vunpack.c.l.b16 %v793
      %v1082 = vunpack.c.l.b16 %v794
      %v1083 = vunpack.c.l.b16 %v795
      %v1084 = vunpack.c.l.b16 %v796
      %v1085 = vunpack.c.l.b16 %v797
      %v1086 = vunpack.c.l.b16 %v798
      %v1087 = vunpack.c.l.b16 %v799
      %v1088 = vunpack.c.l.b16 %v800
      %v1089 = vunpack.c.l.b16 %v801
      %v1090 = vunpack.c.l.b16 %v802
      %v1091 = vunpack.c.l.b16 %v803
      %v1092 = vunpack.c.l.b16 %v804
      %v1093 = vunpack.c.l.b16 %v805
      %v1094 = vunpack.c.l.b16 %v806
      %v1095 = vunpack.c.l.b16 %v807
      %v1096 = vunpack.c.l.b16 %v808
      %v1097 = vunpack.c.l.b16 %v809
      %v1098 = vunpack.c.l.b16 %v810
      %v1099 = vunpack.c.l.b16 %v811
      %v1100 = vunpack.c.l.b16 %v812
      %v1101 = vunpack.c.l.b16 %v813
      %v1102 = vunpack.c.l.b16 %v814
      %v1103 = vunpack.c.l.b16 %v815
      %v1104 = vunpack.c.l.b16 %v816
      %v1105 = vunpack.c.l.b16 %v817
      %v1106 = vunpack.c.l.b16 %v818
      %v1107 = vunpack.c.l.b16 %v819
      %v1108 = vunpack.c.l.b16 %v820
      %v1109 = vpack.c.b16 %v966, %v965
      %v1110 = vpack.c.b16 %v968, %v967
      %v1111 = vpack.c.b16 %v970, %v969
      %v1112 = vpack.c.b16 %v972, %v971
      %v1113 = vpack.c.b16 %v974, %v973
      %v1114 = vpack.c.b16 %v976, %v975
      %v1115 = vpack.c.b16 %v978, %v977
      %v1116 = vpack.c.b16 %v980, %v979
      %v1117 = vpack.c.b16 %v982, %v981
      %v1118 = vpack.c.b16 %v984, %v983
      %v1119 = vpack.c.b16 %v986, %v985
      %v1120 = vpack.c.b16 %v988, %v987
      %v1121 = vpack.c.b16 %v990, %v989
      %v1122 = vpack.c.b16 %v992, %v991
      %v1123 = vpack.c.b16 %v994, %v993
      %v1124 = vpack.c.b16 %v996, %v995
      %v1125 = vpack.c.b16 %v998, %v997
      %v1126 = vpack.c.b16 %v1000, %v999
      %v1127 = vpack.c.b16 %v1002, %v1001
      %v1128 = vpack.c.b16 %v1004, %v1003
      %v1129 = vpack.c.b16 %v1006, %v1005
      %v1130 = vpack.c.b16 %v1008, %v1007
      %v1131 = vpack.c.b16 %v1010, %v1009
      %v1132 = vpack.c.b16 %v1012, %v1011
      %v1133 = vpack.c.b16 %v1014, %v1013
      %v1134 = vpack.c.b16 %v1016, %v1015
      %v1135 = vpack.c.b16 %v1018, %v1017
      %v1136 = vpack.c.b16 %v1020, %v1019
      %v1137 = vpack.c.b16 %v1022, %v1021
      %v1138 = vpack.c.b16 %v1024, %v1023
      %v1139 = vpack.c.b16 %v1026, %v1025
      %v1140 = vpack.c.b16 %v1028, %v1027
      %v1141 = vpack.c.b16 %v1030, %v1029
      %v1142 = vpack.c.b16 %v1032, %v1031
      %v1143 = vpack.c.b16 %v1034, %v1033
      %v1144 = vpack.c.b16 %v1036, %v1035
      %v1145 = vpack.c.b16 %v1038, %v1037
      %v1146 = vpack.c.b16 %v1040, %v1039
      %v1147 = vpack.c.b16 %v1042, %v1041
      %v1148 = vpack.c.b16 %v1044, %v1043
      %v1149 = vpack.c.b16 %v1046, %v1045
      %v1150 = vpack.c.b16 %v1048, %v1047
      %v1151 = vpack.c.b16 %v1050, %v1049
      %v1152 = vpack.c.b16 %v1052, %v1051
      %v1153 = vpack.c.b16 %v1054, %v1053
      %v1154 = vpack.c.b16 %v1056, %v1055
      %v1155 = vpack.c.b16 %v1058, %v1057
      %v1156 = vpack.c.b16 %v1060, %v1059
      %v1157 = vpack.c.b16 %v1062, %v1061
      %v1158 = vpack.c.b16 %v1064, %v1063
      %v1159 = vpack.c.b16 %v1066, %v1065
      %v1160 = vpack.c.b16 %v1068, %v1067
      %v1161 = vpack.c.b16 %v1070, %v1069
      %v1162 = vpack.c.b16 %v1072, %v1071
      %v1163 = vpack.c.b16 %v1074, %v1073
      %v1164 = vpack.c.b16 %v1076, %v1075
      %v1165 = vpack.c.b16 %v1078, %v1077
      %v1166 = vpack.c.b16 %v1080, %v1079
      %v1167 = vpack.c.b16 %v1082, %v1081
      %v1168 = vpack.c.b16 %v1084, %v1083
      %v1169 = vpack.c.b16 %v1086, %v1085
      %v1170 = vpack.c.b16 %v1088, %v1087
      %v1171 = vpack.c.b16 %v1090, %v1089
      %v1172 = vpack.c.b16 %v1092, %v1091
      %v1173 = vpack.c.b16 %v1094, %v1093
      %v1174 = vpack.c.b16 %v1096, %v1095
      %v1175 = vpack.c.b16 %v1098, %v1097
      %v1176 = vpack.c.b16 %v1100, %v1099
      %v1177 = vpack.c.b16 %v1102, %v1101
      %v1178 = vpack.c.b16 %v1104, %v1103
      %v1179 = vpack.c.b16 %v1106, %v1105
      %v1180 = vpack.c.b16 %v1108, %v1107
      %1253 = vmatpush.bf16.msra.mxu0 %v1116
      %1254 = vmatpush.bf16.msra.mxu0 %v1115
      %1255 = vmatpush.bf16.msra.mxu0 %v1114
      %1256 = vmatpush.bf16.msra.mxu0 %v1113
      %1257 = vmatpush.bf16.msra.mxu0 %v1112
      %1258 = vmatpush.bf16.msra.mxu0 %v1111
      %1259 = vmatpush.bf16.msra.mxu0 %v1110
      %1260 = vmatpush.bf16.msra.mxu0 %v1109
      %1261 = vmatmul.bf16.gmra.mxu0 %v601
      %v1262 = vpop.f32.mrf.mxu0
      %v1263 = vadd.f32 0.0, %v1262
      %v1264 = vpop.f32.mrf.mxu0
      %v1265 = vadd.f32 0.0, %v1264
      %1266 = vmatmul.bf16.gmra.mxu0 %v602
      %v1267 = vpop.f32.mrf.mxu0
      %v1268 = vadd.f32 0.0, %v1267
      %v1269 = vpop.f32.mrf.mxu0
      %v1270 = vadd.f32 0.0, %v1269
      %1271 = vdwg.mxu0
      %1272 = vmatpush.bf16.msra.mxu0 %v1124
      %1273 = vmatpush.bf16.msra.mxu0 %v1123
      %1274 = vmatpush.bf16.msra.mxu0 %v1122
      %1275 = vmatpush.bf16.msra.mxu0 %v1121
      %1276 = vmatpush.bf16.msra.mxu0 %v1120
      %1277 = vmatpush.bf16.msra.mxu0 %v1119
      %1278 = vmatpush.bf16.msra.mxu0 %v1118
      %1279 = vmatpush.bf16.msra.mxu0 %v1117
      %1280 = vmatmul.bf16.gmra.mxu0 %v609
      %v1281 = vpop.f32.mrf.mxu0
      %v1282 = vadd.f32 %v1263, %v1281
      %v1283 = vpop.f32.mrf.mxu0
      %v1284 = vadd.f32 %v1265, %v1283
      %1285 = vmatmul.bf16.gmra.mxu0 %v610
      %v1286 = vpop.f32.mrf.mxu0
      %v1287 = vadd.f32 %v1268, %v1286
      %v1288 = vpop.f32.mrf.mxu0
      %v1289 = vadd.f32 %v1270, %v1288
      %1290 = vdwg.mxu0
      %1291 = vmatpush.bf16.msra.mxu0 %v1132
      %1292 = vmatpush.bf16.msra.mxu0 %v1131
      %1293 = vmatpush.bf16.msra.mxu0 %v1130
      %1294 = vmatpush.bf16.msra.mxu0 %v1129
      %1295 = vmatpush.bf16.msra.mxu0 %v1128
      %1296 = vmatpush.bf16.msra.mxu0 %v1127
      %1297 = vmatpush.bf16.msra.mxu0 %v1126
      %1298 = vmatpush.bf16.msra.mxu0 %v1125
      %1299 = vmatmul.bf16.gmra.mxu0 %v617
      %v1300 = vpop.f32.mrf.mxu0
      %v1301 = vadd.f32 %v1282, %v1300
      %v1302 = vpop.f32.mrf.mxu0
      %v1303 = vadd.f32 %v1284, %v1302
      %1304 = vmatmul.bf16.gmra.mxu0 %v618
      %v1305 = vpop.f32.mrf.mxu0
      %v1306 = vadd.f32 %v1287, %v1305
      %v1307 = vpop.f32.mrf.mxu0
      %v1308 = vadd.f32 %v1289, %v1307
      %1309 = vdwg.mxu0
      %1310 = vmatpush.bf16.msra.mxu0 %v1140
      %1311 = vmatpush.bf16.msra.mxu0 %v1139
      %1312 = vmatpush.bf16.msra.mxu0 %v1138
      %1313 = vmatpush.bf16.msra.mxu0 %v1137
      %1314 = vmatpush.bf16.msra.mxu0 %v1136
      %1315 = vmatpush.bf16.msra.mxu0 %v1135
      %1316 = vmatpush.bf16.msra.mxu0 %v1134
      %1317 = vmatpush.bf16.msra.mxu0 %v1133
      %1318 = vmatmul.bf16.gmra.mxu0 %v629
      %v1319 = vpop.f32.mrf.mxu0
      %v1320 = vadd.f32 %v1301, %v1319
      %v1321 = vpop.f32.mrf.mxu0
      %v1322 = vadd.f32 %v1303, %v1321
      %1323 = vmatmul.bf16.gmra.mxu0 %v630
      %v1324 = vpop.f32.mrf.mxu0
      %v1325 = vadd.f32 %v1306, %v1324
      %v1326 = vpop.f32.mrf.mxu0
      %v1327 = vadd.f32 %v1308, %v1326
      %1328 = vdwg.mxu0
      %1329 = vmatpush.bf16.msra.mxu0 %v1148
      %1330 = vmatpush.bf16.msra.mxu0 %v1147
      %1331 = vmatpush.bf16.msra.mxu0 %v1146
      %1332 = vmatpush.bf16.msra.mxu0 %v1145
      %1333 = vmatpush.bf16.msra.mxu0 %v1144
      %1334 = vmatpush.bf16.msra.mxu0 %v1143
      %1335 = vmatpush.bf16.msra.mxu0 %v1142
      %1336 = vmatpush.bf16.msra.mxu0 %v1141
      %1337 = vmatmul.bf16.gmra.mxu0 %v637
      %v1338 = vpop.f32.mrf.mxu0
      %v1339 = vadd.f32 %v1320, %v1338
      %v1340 = vpop.f32.mrf.mxu0
      %v1341 = vadd.f32 %v1322, %v1340
      %1342 = vmatmul.bf16.gmra.mxu0 %v638
      %v1343 = vpop.f32.mrf.mxu0
      %v1344 = vadd.f32 %v1325, %v1343
      %v1345 = vpop.f32.mrf.mxu0
      %v1346 = vadd.f32 %v1327, %v1345
      %1347 = vdwg.mxu0
      %1348 = vmatpush.bf16.msra.mxu0 %v1156
      %1349 = vmatpush.bf16.msra.mxu0 %v1155
      %1350 = vmatpush.bf16.msra.mxu0 %v1154
      %1351 = vmatpush.bf16.msra.mxu0 %v1153
      %1352 = vmatpush.bf16.msra.mxu0 %v1152
      %1353 = vmatpush.bf16.msra.mxu0 %v1151
      %1354 = vmatpush.bf16.msra.mxu0 %v1150
      %1355 = vmatpush.bf16.msra.mxu0 %v1149
      %1356 = vmatmul.bf16.gmra.mxu0 %v645
      %v1357 = vpop.f32.mrf.mxu0
      %v1358 = vadd.f32 %v1339, %v1357
      %v1359 = vpop.f32.mrf.mxu0
      %v1360 = vadd.f32 %v1341, %v1359
      %1361 = vmatmul.bf16.gmra.mxu0 %v646
      %v1362 = vpop.f32.mrf.mxu0
      %v1363 = vadd.f32 %v1344, %v1362
      %v1364 = vpop.f32.mrf.mxu0
      %v1365 = vadd.f32 %v1346, %v1364
      %1366 = vdwg.mxu0
      %1367 = vmatpush.bf16.msra.mxu0 %v1164
      %1368 = vmatpush.bf16.msra.mxu0 %v1163
      %1369 = vmatpush.bf16.msra.mxu0 %v1162
      %1370 = vmatpush.bf16.msra.mxu0 %v1161
      %1371 = vmatpush.bf16.msra.mxu0 %v1160
      %1372 = vmatpush.bf16.msra.mxu0 %v1159
      %1373 = vmatpush.bf16.msra.mxu0 %v1158
      %1374 = vmatpush.bf16.msra.mxu0 %v1157
      %1375 = vmatmul.bf16.gmra.mxu0 %v657
      %v1376 = vpop.f32.mrf.mxu0
      %v1377 = vadd.f32 %v1358, %v1376
      %v1378 = vpop.f32.mrf.mxu0
      %v1379 = vadd.f32 %v1360, %v1378
      %1380 = vmatmul.bf16.gmra.mxu0 %v658
      %v1381 = vpop.f32.mrf.mxu0
      %v1382 = vadd.f32 %v1363, %v1381
      %v1383 = vpop.f32.mrf.mxu0
      %v1384 = vadd.f32 %v1365, %v1383
      %1385 = vdwg.mxu0
      %1386 = vmatpush.bf16.msra.mxu0 %v1172
      %1387 = vmatpush.bf16.msra.mxu0 %v1171
      %1388 = vmatpush.bf16.msra.mxu0 %v1170
      %1389 = vmatpush.bf16.msra.mxu0 %v1169
      %1390 = vmatpush.bf16.msra.mxu0 %v1168
      %1391 = vmatpush.bf16.msra.mxu0 %v1167
      %1392 = vmatpush.bf16.msra.mxu0 %v1166
      %1393 = vmatpush.bf16.msra.mxu0 %v1165
      %1394 = vmatmul.bf16.gmra.mxu0 %v665
      %v1395 = vpop.f32.mrf.mxu0
      %v1396 = vadd.f32 %v1377, %v1395
      %v1397 = vpop.f32.mrf.mxu0
      %v1398 = vadd.f32 %v1379, %v1397
      %1399 = vmatmul.bf16.gmra.mxu0 %v666
      %v1400 = vpop.f32.mrf.mxu0
      %v1401 = vadd.f32 %v1382, %v1400
      %v1402 = vpop.f32.mrf.mxu0
      %v1403 = vadd.f32 %v1384, %v1402
      %1404 = vdwg.mxu0
      %1405 = vmatpush.bf16.msra.mxu0 %v1180
      %1406 = vmatpush.bf16.msra.mxu0 %v1179
      %1407 = vmatpush.bf16.msra.mxu0 %v1178
      %1408 = vmatpush.bf16.msra.mxu0 %v1177
      %1409 = vmatpush.bf16.msra.mxu0 %v1176
      %1410 = vmatpush.bf16.msra.mxu0 %v1175
      %1411 = vmatpush.bf16.msra.mxu0 %v1174
      %1412 = vmatpush.bf16.msra.mxu0 %v1173
      %1413 = vmatmul.bf16.gmra.mxu0 %v673
      %v1414 = vpop.f32.mrf.mxu0
      %v1415 = vadd.f32 %v1396, %v1414
      %v1416 = vpop.f32.mrf.mxu0
      %v1417 = vadd.f32 %v1398, %v1416
      %1418 = vmatmul.bf16.gmra.mxu0 %v674
      %v1419 = vpop.f32.mrf.mxu0
      %v1420 = vadd.f32 %v1401, %v1419
      %v1421 = vpop.f32.mrf.mxu0
      %v1422 = vadd.f32 %v1403, %v1421
      %1423 = vdwg.mxu0
      %1424 = vst [vmem:[%s240] sm:$0xff] %v1415
      %1425 = vst [vmem:[%s240 + $0x8] sm:$0xff] %v1417
      %1426 = vst [vmem:[%s240 + $0x10] sm:$0xff] %v1420
      %1427 = vst [vmem:[%s240 + $0x18] sm:$0xff] %v1422
      %v1428 = vadd.f32 %v1415, %v1417
      %v1429 = vadd.f32 %v1428, %v1420
      %v1430 = vadd.f32 %v1429, %v1422
      %v1431 = vrot.slane %v1430, 4
      %v1432 = vadd.f32 %v1430, %v1431
      %v1433 = vrot.slane %v1432, 2
      %v1434 = vadd.f32 %v1432, %v1433
      %v1435 = vrot.slane %v1434, 1
      %v1436 = vadd.f32 %v1434, %v1435
      %1437 = vst [vmem:[%s254] sm:$0x1] %v1436
      %v1438 = vmul.f32 %v1415, %v1415
      %v1439 = vmul.f32 %v1417, %v1417
      %v1440 = vmul.f32 %v1420, %v1420
      %v1441 = vmul.f32 %v1422, %v1422
      %v1442 = vadd.f32 %v1438, %v1439
      %v1443 = vadd.f32 %v1442, %v1440
      %v1444 = vadd.f32 %v1443, %v1441
      %v1445 = vrot.slane %v1444, 4
      %v1446 = vadd.f32 %v1444, %v1445
      %v1447 = vrot.slane %v1446, 2
      %v1448 = vadd.f32 %v1446, %v1447
      %v1449 = vrot.slane %v1448, 1
      %v1450 = vadd.f32 %v1448, %v1449
      %1451 = vst [vmem:[%s254 + $0x1] sm:$0x1] %v1450
      %s1452 = smul.u32 %s21, 2
      %s1453 = sadd.s32 %s1452, %s22
      %s1454 = smul.u32 4, %s1453
      %p1455 = scmp.lt.s32.totalorder %s1454, 15
      %s1456 = scalar_select %p1455, %s1454, 15
      %p1457 = scmp.lt.s32.totalorder %s20, 0
      %s1458 = scalar_select %p1457, %s20, 0
      %s1459 = sadd.s32 %s1458, %s1456
      %s1460 = smul.addr %s1459, 8
      %s1461 = scalar_lea.vmem %s2, %s1460
      %p1462 = scmp.lt.s32.totalorder %s21, 1
      %s1463 = scalar_select %p1462, %s21, 1
      %p1464 = scmp.lt.s32.totalorder %s22, 1
      %s1465 = scalar_select %p1464, %s22, 1
      %p1466 = scmp.lt.s32.totalorder %s20, 0
      %s1467 = scalar_select %p1466, %s20, 0
      %s1468 = sadd.s32 %s1467, %s1465
      %s1469 = smul.addr %s1463, 2
      %s1470 = sadd.s32 %s1468, %s1469
      %s1471 = smul.addr %s1470, 2
      %s1472 = scalar_lea.vmem %s3, %s1471
      // Predicated region
      $region37: #{down_forward.6} parent=27 // pred_check
        %p1473 = pneg %p110
      $region38: #{down_forward.6} parent=27 // pred_check_branch
        %1475 = sbr.rel (%p1473) target = $region40
      $region39: #{down_forward.6} parent=27 // pred_region
        %s1476 = smul.u32 %s21, 2
        %s1477 = sadd.s32 %s1476, %s22
        %s1478 = smul.u32 4, %s1477
      $region40: #{down_forward.6} parent=27 // pred_fallthru
        _
      // Predicated region
      $region41: #{down_forward.6} parent=27 // pred_check
        %p1479 = pneg %p140
      $region42: #{down_forward.6} parent=27 // pred_check_branch
        %1481 = sbr.rel (%p1479) target = $region44
      $region43: #{down_forward.6} parent=27 // pred_region
        _
      $region44: #{down_forward.6} parent=27 // pred_fallthru
        _
    $region28: #{down_forward.6} parent=5 // pred_fallthru
      _
    %p1482 = scmp.le.s32.totalorder 2, %s10
    // Predicated region
    $region45: #{down_forward.6} parent=5 // pred_check
      %p1483 = pneg %p1482
    $region46: #{down_forward.6} parent=5 // pred_check_branch
      %1485 = sbr.rel (%p1483) target = $region48
    $region47: #{down_forward.6} parent=5 // pred_region
      %s1486 = ssub.s32 %s10, 2
      // Predicated region
      $region49: #{down_forward.6} parent=47 // pred_check
        %p1487 = pneg %p116
      $region50: #{down_forward.6} parent=47 // pred_check_branch
        %1489 = sbr.rel (%p1487) target = $region52
      $region51: #{down_forward.6} parent=47 // pred_region
        %s1490 = smul.u32 %s24, 2
        %s1491 = sadd.s32 %s1490, %s25
        %s1492 = smul.u32 4, %s1491
        %p1493 = scmp.lt.s32.totalorder %s1492, 15
        %s1494 = scalar_select %p1493, %s1492, 15
        %p1495 = scmp.lt.s32.totalorder %s23, 0
        %s1496 = scalar_select %p1495, %s23, 0
        %s1497 = sadd.s32 %s1496, %s1494
        %s1498 = smul.addr %s1497, 8
        %s1499 = scalar_lea.vmem %s2, %s1498
      $region52: #{down_forward.6} parent=47 // pred_fallthru
        _
      // Predicated region
      $region53: #{down_forward.6} parent=47 // pred_check
        %p1500 = pneg %p146
      $region54: #{down_forward.6} parent=47 // pred_check_branch
        %1502 = sbr.rel (%p1500) target = $region56
      $region55: #{down_forward.6} parent=47 // pred_region
        %p1503 = scmp.lt.s32.totalorder %s24, 1
        %s1504 = scalar_select %p1503, %s24, 1
        %p1505 = scmp.lt.s32.totalorder %s25, 1
        %s1506 = scalar_select %p1505, %s25, 1
        %p1507 = scmp.lt.s32.totalorder %s23, 0
        %s1508 = scalar_select %p1507, %s23, 0
        %s1509 = sadd.s32 %s1508, %s1506
        %s1510 = smul.addr %s1504, 2
        %s1511 = sadd.s32 %s1509, %s1510
        %s1512 = smul.addr %s1511, 2
        %s1513 = scalar_lea.vmem %s3, %s1512
      $region56: #{down_forward.6} parent=47 // pred_fallthru
        _
    $region48: #{down_forward.6} parent=5 // pred_fallthru
      _
  $region6: #{down_forward.6} parent=0 // loop_footer
    %s14 = sadd.s32 1, %s10
  $region7: #{down_forward.6} parent=0 // loop_footer_branch
    %9 = sbr.rel target = $region3
  $region8: #{down_forward.6} parent=0 // loop_exit
    _

</llo_original>
